<compile_context>
chip_gen: v5e
topology: v5e:2x2
jax: 0.10.0
libtpu: 0.0.40
codegen_flags: <defaults>
</compile_context>

<pallas_src>
import math

import jax
import jax.numpy as jnp
from jax.experimental import pallas as pl
from jax.experimental.pallas import tpu as pltpu

C_HEAD = 256        # Head() default channel count
NUM_CLASSES = 2
BN_EPS = 1e-5
VMEM_LIMIT = 32 * 1024 * 1024   # explicit; > v5e's 16 MiB scoped default


# ----------------------------------------------------------------- kernel ----

def _topformer_kernel(f0_ref, f1_ref, f2_ref, wk1_ref, wk2_ref,
                      wf_ref, bb_ref, ws_ref, bs_ref, wkf_ref, o_ref):
    # One batch element per grid step.  All refs are channel-major and
    # lane-dense on the flattened spatial axis.
    #   f0: (C, S0)   f1: (C, S1)   f2: (C, S2)
    #   wk1: (S1, S0) wk2: (S2, S0)            -- kron(Wy, Wx)^T resize weights
    #   wf:  (C, C)   BN scale pre-folded      bb: (C, 1) folded BN bias
    #   ws:  (2, C)   bs: (2, 1)               wkf: (S0, H*W) final resize
    #   o:   (2, H*W)
    # xx = x[0] + upsample(x[1]) + upsample(x[2])
    xx = f0_ref[...]
    xx = xx + jnp.dot(f1_ref[...], wk1_ref[...],
                      preferred_element_type=jnp.float32)
    xx = xx + jnp.dot(f2_ref[...], wk2_ref[...],
                      preferred_element_type=jnp.float32)
    # ReLU6(BN(Conv1x1_nobias(xx)))  (BN scale folded into wf, eval mode)
    h = jnp.dot(wf_ref[...], xx, preferred_element_type=jnp.float32) + bb_ref[...]
    h = jnp.clip(h, 0.0, 6.0)
    # Dropout2d(0.1) is identity in eval mode.
    # conv_seg (1x1, C -> 2, with bias)
    seg = jnp.dot(ws_ref[...], h, preferred_element_type=jnp.float32) + bs_ref[...]
    # Final bilinear upsample to (H, W), expressed as one lane-dense matmul.
    o_ref[...] = jnp.dot(seg, wkf_ref[...], preferred_element_type=jnp.float32)


# ---------------------------------------------------------------- wrapper ----

def topformer_fused(f0, f1, f2, wk1, wk2, w_fuse_folded, bn_bias,
                    w_seg, b_seg, wkf):
    """All features flattened channel-major: f*: (B, C, h*w).  Returns
    (B, NUM_CLASSES, H*W)."""
    B, C, S0 = f0.shape
    S1 = f1.shape[2]
    S2 = f2.shape[2]
    S_out = wkf.shape[1]

    def const2(a):
        # Same block every grid step -> DMA'd once, never re-fetched.
        return pl.BlockSpec(a.shape, lambda b: (0, 0))

    return pl.pallas_call(
        _topformer_kernel,
        out_shape=jax.ShapeDtypeStruct((B, NUM_CLASSES, S_out), jnp.float32),
        grid=(B,),
        in_specs=[
            pl.BlockSpec((None, C, S0), lambda b: (b, 0, 0)),
            pl.BlockSpec((None, C, S1), lambda b: (b, 0, 0)),
            pl.BlockSpec((None, C, S2), lambda b: (b, 0, 0)),
            const2(wk1), const2(wk2),
            const2(w_fuse_folded), const2(bn_bias),
            const2(w_seg), const2(b_seg),
            const2(wkf),
        ],
        out_specs=pl.BlockSpec((None, NUM_CLASSES, S_out), lambda b: (b, 0, 0)),
        compiler_params=pltpu.CompilerParams(
            dimension_semantics=("parallel",),
            vmem_limit_bytes=VMEM_LIMIT),
    )(f0, f1, f2, wk1, wk2, w_fuse_folded, bn_bias, w_seg, b_seg, wkf)


# -------------------------------------------------- bilinear weight helpers --

def bilinear_matrix(out_size, in_size):
    # Matches torch.nn.functional.interpolate(mode="bilinear", align_corners=False)
    scale = in_size / out_size
    dst = jnp.arange(out_size, dtype=jnp.float32)
    src = jnp.maximum((dst + 0.5) * scale - 0.5, 0.0)
    i0 = jnp.clip(jnp.floor(src).astype(jnp.int32), 0, in_size - 1)
    i1 = jnp.minimum(i0 + 1, in_size - 1)
    lam = src - i0.astype(jnp.float32)
    rows = jnp.arange(out_size)
    w = jnp.zeros((out_size, in_size), jnp.float32)
    w = w.at[rows, i0].add(1.0 - lam)
    w = w.at[rows, i1].add(lam)
    return w


def kron_resize_weight(h_out, w_out, h_in, w_in):
    # Flattened-spatial bilinear resize as a single matrix:
    #   out_flat (C, h_out*w_out) = in_flat (C, h_in*w_in) @ W
    wy = bilinear_matrix(h_out, h_in)
    wx = bilinear_matrix(w_out, w_in)
    return jnp.kron(wy, wx).T          # (h_in*w_in, h_out*w_out), constant-folded


# ------------------------------------------------------- synthetic backbone --

def synthetic_backbone(x, bb_w, bb_b, strides=(4, 8, 16)):
    # TODO(synk): stand-in for the undefined `Backbone` class.
    feats = []
    for s, w, b in zip(strides, bb_w, bb_b):
        p = jax.lax.reduce_window(x, 0.0, jax.lax.add,
                                  (1, 1, s, s), (1, 1, s, s), "VALID") / float(s * s)
        f = jnp.einsum("bchw,oc->bohw", p, w) + b[None, :, None, None]   # 1x1 conv
        feats.append(f.astype(jnp.float32))
    return feats


# -------------------------------------------------------------- parameters ---

def init_params(key):
    ks = jax.random.split(key, 8)
    params = {}
    std_bb = math.sqrt(2.0 / C_HEAD)                 # n = 1*1*256
    params["bb_w"] = [jax.random.normal(ks[i], (C_HEAD, 3), jnp.float32) * std_bb
                      for i in range(3)]
    params["bb_b"] = [jnp.zeros((C_HEAD,), jnp.float32) for _ in range(3)]
    # Head.linear_fuse.conv : 1x1, 256->256, no bias (PyTorch layout (Cout, Cin))
    params["w_fuse"] = (jax.random.normal(ks[3], (C_HEAD, C_HEAD), jnp.float32)
                        * math.sqrt(2.0 / C_HEAD))
    # BatchNorm2d eval (gamma=1, beta=0, running mean=0, var=1), folded
    gamma = jnp.ones((C_HEAD,), jnp.float32)
    beta = jnp.zeros((C_HEAD,), jnp.float32)
    rmean = jnp.zeros((C_HEAD,), jnp.float32)
    rvar = jnp.ones((C_HEAD,), jnp.float32)
    scale = gamma / jnp.sqrt(rvar + BN_EPS)
    params["bn_scale"] = scale
    params["bn_bias"] = beta - rmean * scale
    # Head.conv_seg : 1x1, 256->2, bias zero, n = 1*1*2
    params["w_seg"] = (jax.random.normal(ks[4], (NUM_CLASSES, C_HEAD), jnp.float32)
                       * math.sqrt(2.0 / NUM_CLASSES))
    params["b_seg"] = jnp.zeros((NUM_CLASSES,), jnp.float32)
    return params


# ------------------------------------------------------------ full forward ---

def topformer_forward(x, params):
    B, _, H, W = x.shape
    f0, f1, f2 = synthetic_backbone(x, params["bb_w"], params["bb_b"])
    h0, w0 = f0.shape[2], f0.shape[3]
    h1, w1 = f1.shape[2], f1.shape[3]
    h2, w2 = f2.shape[2], f2.shape[3]

    # Constant resize weights (shape-only -> constant-folded at compile time).
    wk1 = kron_resize_weight(h0, w0, h1, w1)          # (h1*w1, h0*w0)
    wk2 = kron_resize_weight(h0, w0, h2, w2)          # (h2*w2, h0*w0)
    wkf = kron_resize_weight(H, W, h0, w0)            # (h0*w0, H*W)

    # Fold eval-mode BatchNorm scale into the 1x1 fuse conv weight.
    w_fuse_folded = params["bn_scale"][:, None] * params["w_fuse"]

    out = topformer_fused(
        f0.reshape(B, C_HEAD, h0 * w0),               # free views of NCHW buffers
        f1.reshape(B, C_HEAD, h1 * w1),
        f2.reshape(B, C_HEAD, h2 * w2),
        wk1, wk2,
        w_fuse_folded,
        params["bn_bias"][:, None],
        params["w_seg"],
        params["b_seg"][:, None],
        wkf)
    return out.reshape(B, NUM_CLASSES, H, W)          # free view


# --------------------------------------------------- pure-JAX reference path --

def reference_forward(x, params):
    B, _, H, W = x.shape
    feats = synthetic_backbone(x, params["bb_w"], params["bb_b"])
    h0, w0 = feats[0].shape[2], feats[0].shape[3]

    def resize(f, out_hw):
        wy = bilinear_matrix(out_hw[0], f.shape[2])
        wx = bilinear_matrix(out_hw[1], f.shape[3])
        return jnp.einsum("yh,bchw,xw->bcyx", wy, f, wx)

    xx = feats[0]
    for f in feats[1:]:
        xx = xx + resize(f, (h0, w0))
    h = jnp.einsum("oc,bchw->bohw", params["w_fuse"], xx)
    h = (h * params["bn_scale"][None, :, None, None]
         + params["bn_bias"][None, :, None, None])
    h = jnp.clip(h, 0.0, 6.0)
    seg = (jnp.einsum("oc,bchw->bohw", params["w_seg"], h)
           + params["b_seg"][None, :, None, None])
    return resize(seg, (H, W))


if __name__ == "__main__":
    key = jax.random.PRNGKey(0)
    kx, kp = jax.random.split(key)
    x = jax.random.normal(kx, (2, 3, 64, 64), jnp.float32)   # NCHW like PyTorch
    params = init_params(kp)

    fwd = jax.jit(topformer_forward)
    out = jax.block_until_ready(fwd(x, params))
    ref = jax.block_until_ready(reference_forward(x, params))

    assert out.shape == (2, NUM_CLASSES, 64, 64), out.shape
    err = float(jnp.max(jnp.abs(out - ref)))
    assert jnp.allclose(out, ref, rtol=1e-4, atol=1e-4), err
    print("KERNEL_OK")
</pallas_src>

<mosaic_0001>
module attributes {stable_mosaic.version = 11 : i64} {
  func.func @_topformer_kernel(%arg0: i32, %arg1: memref<1x256x256xf32, #tpu.memory_space<vmem>>, %arg2: memref<1x256x64xf32, #tpu.memory_space<vmem>>, %arg3: memref<1x256x16xf32, #tpu.memory_space<vmem>>, %arg4: memref<64x256xf32, #tpu.memory_space<vmem>>, %arg5: memref<16x256xf32, #tpu.memory_space<vmem>>, %arg6: memref<256x256xf32, #tpu.memory_space<vmem>>, %arg7: memref<256x1xf32, #tpu.memory_space<vmem>>, %arg8: memref<2x256xf32, #tpu.memory_space<vmem>>, %arg9: memref<2x1xf32, #tpu.memory_space<vmem>>, %arg10: memref<256x4096xf32, #tpu.memory_space<vmem>>, %arg11: memref<1x2x4096xf32, #tpu.memory_space<vmem>>) attributes {dimension_semantics = [#tpu.dimension_semantics<parallel>], iteration_bounds = array<i64: 2>, scalar_prefetch = 0 : i64, scratch_operands = 0 : i64, tpu.core_type = #tpu.core_type<tc>, window_params = [{transform_indices = @transform_0, window_bounds = array<i64: 1, 256, 256>}, {transform_indices = @transform_1, window_bounds = array<i64: 1, 256, 64>}, {transform_indices = @transform_2, window_bounds = array<i64: 1, 256, 16>}, {pipeline_mode = #tpu.pipeline_mode<synchronous>, transform_indices = @transform_3, window_bounds = array<i64: 64, 256>}, {pipeline_mode = #tpu.pipeline_mode<synchronous>, transform_indices = @transform_4, window_bounds = array<i64: 16, 256>}, {pipeline_mode = #tpu.pipeline_mode<synchronous>, transform_indices = @transform_5, window_bounds = array<i64: 256, 256>}, {pipeline_mode = #tpu.pipeline_mode<synchronous>, transform_indices = @transform_6, window_bounds = array<i64: 256, 1>}, {pipeline_mode = #tpu.pipeline_mode<synchronous>, transform_indices = @transform_7, window_bounds = array<i64: 2, 256>}, {pipeline_mode = #tpu.pipeline_mode<synchronous>, transform_indices = @transform_8, window_bounds = array<i64: 2, 1>}, {pipeline_mode = #tpu.pipeline_mode<synchronous>, transform_indices = @transform_9, window_bounds = array<i64: 256, 4096>}, {transform_indices = @transform_10, window_bounds = array<i64: 1, 2, 4096>}]} {
    %c0 = arith.constant 0 : index
    %c0_0 = arith.constant 0 : index
    %c0_1 = arith.constant 0 : index
    %0 = vector.load %arg1[%c0, %c0_0, %c0_1] : memref<1x256x256xf32, #tpu.memory_space<vmem>>, vector<1x256x256xf32>
    %1 = vector.shape_cast %0 : vector<1x256x256xf32> to vector<256x256xf32>
    %c0_2 = arith.constant 0 : index
    %c0_3 = arith.constant 0 : index
    %c0_4 = arith.constant 0 : index
    %2 = vector.load %arg2[%c0_2, %c0_3, %c0_4] : memref<1x256x64xf32, #tpu.memory_space<vmem>>, vector<1x256x64xf32>
    %3 = vector.shape_cast %2 : vector<1x256x64xf32> to vector<256x64xf32>
    %c0_5 = arith.constant 0 : index
    %c0_6 = arith.constant 0 : index
    %4 = vector.load %arg4[%c0_5, %c0_6] : memref<64x256xf32, #tpu.memory_space<vmem>>, vector<64x256xf32>
    %cst = arith.constant dense<0.000000e+00> : vector<256x256xf32>
    %5 = tpu.matmul %3, %4, %cst {dimension_numbers = #tpu.dot_dimension_numbers<[1], [0], [0], [1], [0, 0, 1, 1], [], []>} : vector<256x64xf32>, vector<64x256xf32>, vector<256x256xf32> -> vector<256x256xf32>
    %6 = arith.addf %1, %5 : vector<256x256xf32>
    %c0_7 = arith.constant 0 : index
    %c0_8 = arith.constant 0 : index
    %c0_9 = arith.constant 0 : index
    %7 = vector.load %arg3[%c0_7, %c0_8, %c0_9] : memref<1x256x16xf32, #tpu.memory_space<vmem>>, vector<1x256x16xf32>
    %8 = vector.shape_cast %7 : vector<1x256x16xf32> to vector<256x16xf32>
    %c0_10 = arith.constant 0 : index
    %c0_11 = arith.constant 0 : index
    %9 = vector.load %arg5[%c0_10, %c0_11] : memref<16x256xf32, #tpu.memory_space<vmem>>, vector<16x256xf32>
    %cst_12 = arith.constant dense<0.000000e+00> : vector<256x256xf32>
    %10 = tpu.matmul %8, %9, %cst_12 {dimension_numbers = #tpu.dot_dimension_numbers<[1], [0], [0], [1], [0, 0, 1, 1], [], []>} : vector<256x16xf32>, vector<16x256xf32>, vector<256x256xf32> -> vector<256x256xf32>
    %11 = arith.addf %6, %10 : vector<256x256xf32>
    %c0_13 = arith.constant 0 : index
    %c0_14 = arith.constant 0 : index
    %12 = vector.load %arg6[%c0_13, %c0_14] : memref<256x256xf32, #tpu.memory_space<vmem>>, vector<256x256xf32>
    %cst_15 = arith.constant dense<0.000000e+00> : vector<256x256xf32>
    %13 = tpu.matmul %12, %11, %cst_15 {dimension_numbers = #tpu.dot_dimension_numbers<[1], [0], [0], [1], [0, 0, 1, 1], [], []>} : vector<256x256xf32>, vector<256x256xf32>, vector<256x256xf32> -> vector<256x256xf32>
    %c0_16 = arith.constant 0 : index
    %c0_17 = arith.constant 0 : index
    %14 = vector.load %arg7[%c0_16, %c0_17] : memref<256x1xf32, #tpu.memory_space<vmem>>, vector<256x1xf32>
    %15 = vector.broadcast %14 : vector<256x1xf32> to vector<256x256xf32>
    %16 = arith.addf %13, %15 : vector<256x256xf32>
    %cst_18 = arith.constant 0.000000e+00 : f32
    %cst_19 = arith.constant 6.000000e+00 : f32
    %17 = vector.broadcast %cst_18 : f32 to vector<256x256xf32>
    %18 = arith.maximumf %17, %16 : vector<256x256xf32>
    %19 = vector.broadcast %cst_19 : f32 to vector<256x256xf32>
    %20 = arith.minimumf %19, %18 : vector<256x256xf32>
    %c0_20 = arith.constant 0 : index
    %c0_21 = arith.constant 0 : index
    %21 = vector.load %arg8[%c0_20, %c0_21] : memref<2x256xf32, #tpu.memory_space<vmem>>, vector<2x256xf32>
    %cst_22 = arith.constant dense<0.000000e+00> : vector<2x256xf32>
    %22 = tpu.matmul %21, %20, %cst_22 {dimension_numbers = #tpu.dot_dimension_numbers<[1], [0], [0], [1], [0, 0, 1, 1], [], []>} : vector<2x256xf32>, vector<256x256xf32>, vector<2x256xf32> -> vector<2x256xf32>
    %c0_23 = arith.constant 0 : index
    %c0_24 = arith.constant 0 : index
    %23 = vector.load %arg9[%c0_23, %c0_24] : memref<2x1xf32, #tpu.memory_space<vmem>>, vector<2x1xf32>
    %24 = vector.broadcast %23 : vector<2x1xf32> to vector<2x256xf32>
    %25 = arith.addf %22, %24 : vector<2x256xf32>
    %c0_25 = arith.constant 0 : index
    %c0_26 = arith.constant 0 : index
    %26 = vector.load %arg10[%c0_25, %c0_26] : memref<256x4096xf32, #tpu.memory_space<vmem>>, vector<256x4096xf32>
    %cst_27 = arith.constant dense<0.000000e+00> : vector<2x4096xf32>
    %27 = tpu.matmul %25, %26, %cst_27 {dimension_numbers = #tpu.dot_dimension_numbers<[1], [0], [0], [1], [0, 0, 1, 1], [], []>} : vector<2x256xf32>, vector<256x4096xf32>, vector<2x4096xf32> -> vector<2x4096xf32>
    %c0_28 = arith.constant 0 : index
    %c0_29 = arith.constant 0 : index
    %c0_30 = arith.constant 0 : index
    %28 = vector.load %arg11[%c0_28, %c0_29, %c0_30] : memref<1x2x4096xf32, #tpu.memory_space<vmem>>, vector<1x2x4096xf32>
    %29 = vector.shape_cast %28 : vector<1x2x4096xf32> to vector<2x4096xf32>
    %30 = vector.shape_cast %27 : vector<2x4096xf32> to vector<1x2x4096xf32>
    tpu.vector_store %arg11[%c0_28, %c0_29, %c0_30], %30 {strides = array<i32>} : memref<1x2x4096xf32, #tpu.memory_space<vmem>>, vector<1x2x4096xf32>,
    return
  }
  func.func @transform_0(%arg0: i32) -> (i32, i32, i32) {
    %c0_i32 = arith.constant 0 : i32
    %c0_i32_0 = arith.constant 0 : i32
    %c0_i32_1 = arith.constant 0 : i32
    return %arg0, %c0_i32, %c0_i32_0 : i32, i32, i32
  }
  func.func @transform_1(%arg0: i32) -> (i32, i32, i32) {
    %c0_i32 = arith.constant 0 : i32
    %c0_i32_0 = arith.constant 0 : i32
    %c0_i32_1 = arith.constant 0 : i32
    return %arg0, %c0_i32, %c0_i32_0 : i32, i32, i32
  }
  func.func @transform_2(%arg0: i32) -> (i32, i32, i32) {
    %c0_i32 = arith.constant 0 : i32
    %c0_i32_0 = arith.constant 0 : i32
    %c0_i32_1 = arith.constant 0 : i32
    return %arg0, %c0_i32, %c0_i32_0 : i32, i32, i32
  }
  func.func @transform_3(%arg0: i32) -> (i32, i32) {
    %c0_i32 = arith.constant 0 : i32
    %c0_i32_0 = arith.constant 0 : i32
    %c0_i32_1 = arith.constant 0 : i32
    return %c0_i32, %c0_i32_0 : i32, i32
  }
  func.func @transform_4(%arg0: i32) -> (i32, i32) {
    %c0_i32 = arith.constant 0 : i32
    %c0_i32_0 = arith.constant 0 : i32
    %c0_i32_1 = arith.constant 0 : i32
    return %c0_i32, %c0_i32_0 : i32, i32
  }
  func.func @transform_5(%arg0: i32) -> (i32, i32) {
    %c0_i32 = arith.constant 0 : i32
    %c0_i32_0 = arith.constant 0 : i32
    %c0_i32_1 = arith.constant 0 : i32
    return %c0_i32, %c0_i32_0 : i32, i32
  }
  func.func @transform_6(%arg0: i32) -> (i32, i32) {
    %c0_i32 = arith.constant 0 : i32
    %c0_i32_0 = arith.constant 0 : i32
    %c0_i32_1 = arith.constant 0 : i32
    return %c0_i32, %c0_i32_0 : i32, i32
  }
  func.func @transform_7(%arg0: i32) -> (i32, i32) {
    %c0_i32 = arith.constant 0 : i32
    %c0_i32_0 = arith.constant 0 : i32
    %c0_i32_1 = arith.constant 0 : i32
    return %c0_i32, %c0_i32_0 : i32, i32
  }
  func.func @transform_8(%arg0: i32) -> (i32, i32) {
    %c0_i32 = arith.constant 0 : i32
    %c0_i32_0 = arith.constant 0 : i32
    %c0_i32_1 = arith.constant 0 : i32
    return %c0_i32, %c0_i32_0 : i32, i32
  }
  func.func @transform_9(%arg0: i32) -> (i32, i32) {
    %c0_i32 = arith.constant 0 : i32
    %c0_i32_0 = arith.constant 0 : i32
    %c0_i32_1 = arith.constant 0 : i32
    return %c0_i32, %c0_i32_0 : i32, i32
  }
  func.func @transform_10(%arg0: i32) -> (i32, i32, i32) {
    %c0_i32 = arith.constant 0 : i32
    %c0_i32_0 = arith.constant 0 : i32
    %c0_i32_1 = arith.constant 0 : i32
    return %arg0, %c0_i32, %c0_i32_0 : i32, i32, i32
  }
}

</mosaic_0001>

<llo_original>
// kernel: topformer_forward.1
$region0: #{topformer_forward.1}
  #allocation0 [shape = 'u32[]', space=smem, size = 0x4, offset = 0x4, fixed_abs, tag = 'smem constant byte address 0x4 - core index']
  #allocation1 [shape = 'u32[72,128]{1,0:T(1,128)}', space=vmem, size = 0x9000, scoped, tag = 'internal scratch']
  %s0 = inlined_call_operand.vmem [shape: f32[2,256,256], index: 0, kind: input, shape index: {}]
  %s1 = inlined_call_operand.vmem [shape: f32[2,256,64], index: 1, kind: input, shape index: {}]
  %s2 = inlined_call_operand.vmem [shape: f32[2,256,16], index: 2, kind: input, shape index: {}]
  %s3 = inlined_call_operand.vmem [shape: f32[64,256], index: 3, kind: input, shape index: {}]
  %s4 = inlined_call_operand.vmem [shape: f32[16,256], index: 4, kind: input, shape index: {}]
  %s5 = inlined_call_operand.vmem [shape: f32[256,256], index: 5, kind: input, shape index: {}]
  %s6 = inlined_call_operand.vmem [shape: f32[256,1], index: 6, kind: input, shape index: {}]
  %s7 = inlined_call_operand.vmem [shape: f32[2,256], index: 7, kind: input, shape index: {}]
  %s8 = inlined_call_operand.vmem [shape: f32[2,1], index: 8, kind: input, shape index: {}]
  %s9 = inlined_call_operand.vmem [shape: f32[256,4096], index: 9, kind: input, shape index: {}]
  %s10 = inlined_call_operand.vmem [shape: f32[2,2,4096], index: 10, kind: output, shape index: {}]
  %s11 = sld [smem:[#allocation0]]
  $region73: #{topformer_forward.1} parent=0
    _
  %s13 = ssub.s32 1, %s11
  %s14 = scalar_select 0, %s13, %s11
  loop: start=0, step=1, limit=4
  $region2: #{topformer_forward.1} parent=0 // loop_pre_header
    _
  $region3: #{topformer_forward.1} parent=0 // loop_header
    %s16 = sphi 0, %s20
    %p17 = scmp.ge.s32.totalorder %s16, 4
    %s26 = sphi 0, %s28
    %s29 = sphi 0, %s26
    %s30 = sphi 0, %s29
    %s46 = sphi 0, %s30
    %s52 = sphi 0, %s54
    %s55 = sphi 0, %s52
    %s56 = sphi 0, %s55
    %s72 = sphi 0, %s56
    %s78 = sphi 0, %s80
    %s81 = sphi 0, %s78
    %s82 = sphi 0, %s81
    %s98 = sphi 0, %s82
    %s102 = sphi 0, %s102
    %s104 = sphi 0, %s102
    %s105 = sphi 0, %s104
    %s119 = sphi 0, %s105
    %s123 = sphi 0, %s123
    %s125 = sphi 0, %s123
    %s126 = sphi 0, %s125
    %s140 = sphi 0, %s126
    %s144 = sphi 0, %s144
    %s146 = sphi 0, %s144
    %s147 = sphi 0, %s146
    %s161 = sphi 0, %s147
    %s165 = sphi 0, %s165
    %s167 = sphi 0, %s165
    %s168 = sphi 0, %s167
    %s182 = sphi 0, %s168
    %s186 = sphi 0, %s186
    %s188 = sphi 0, %s186
    %s189 = sphi 0, %s188
    %s203 = sphi 0, %s189
    %s207 = sphi 0, %s207
    %s209 = sphi 0, %s207
    %s210 = sphi 0, %s209
    %s224 = sphi 0, %s210
    %s228 = sphi 0, %s228
    %s230 = sphi 0, %s228
    %s231 = sphi 0, %s230
    %s245 = sphi 0, %s231
    %s251 = sphi 0, %s253
    %s254 = sphi 0, %s251
    %s255 = sphi 0, %s254
    %s271 = sphi 0, %s255
  $region4: #{topformer_forward.1} parent=0 // loop_header_branch
    %19 = sbr.rel (%p17) target = $region8
  $region5: #{topformer_forward.1} parent=0 // loop_body
    %s21 = ssub.s32 %s16, 1
    %s22 = ssub.s32 %s16, 2
    %s23 = sadd.s32 %s16, 1
    %s24 = ssub.s32 %s16, %s23
    %p25 = scmp.eq.s32.totalorder %s24, 0
    %s27 = sadd.s32 %s26, 1
    %s28 = scalar_select %p25, %s26, %s27
    %p31 = pneg %p25
    %p32 = scmp.eq.s32.totalorder %s16, 1
    %p33 = por %p31, %p32
    %p34 = scmp.ne.s32.totalorder %s26, %s29
    %p35 = scmp.eq.s32.totalorder %s16, 0
    %p36 = por %p34, %p35
    %p37 = scmp.ne.s32.totalorder %s26, %s29
    %p38 = scmp.eq.s32.totalorder %s21, 1
    %p39 = por %p37, %p38
    %p40 = scmp.ne.s32.totalorder %s29, %s30
    %p41 = scmp.eq.s32.totalorder %s21, 0
    %p42 = por %p40, %p41
    %p43 = scmp.ne.s32.totalorder %s29, %s30
    %p44 = scmp.eq.s32.totalorder %s22, 1
    %p45 = por %p43, %p44
    %p47 = scmp.ne.s32.totalorder %s30, %s46
    %p48 = scmp.eq.s32.totalorder %s22, 0
    %p49 = por %p47, %p48
    %s50 = ssub.s32 %s16, %s23
    %p51 = scmp.eq.s32.totalorder %s50, 0
    %s53 = sadd.s32 %s52, 1
    %s54 = scalar_select %p51, %s52, %s53
    %p57 = pneg %p51
    %p58 = scmp.eq.s32.totalorder %s16, 1
    %p59 = por %p57, %p58
    %p60 = scmp.ne.s32.totalorder %s52, %s55
    %p61 = scmp.eq.s32.totalorder %s16, 0
    %p62 = por %p60, %p61
    %p63 = scmp.ne.s32.totalorder %s52, %s55
    %p64 = scmp.eq.s32.totalorder %s21, 1
    %p65 = por %p63, %p64
    %p66 = scmp.ne.s32.totalorder %s55, %s56
    %p67 = scmp.eq.s32.totalorder %s21, 0
    %p68 = por %p66, %p67
    %p69 = scmp.ne.s32.totalorder %s55, %s56
    %p70 = scmp.eq.s32.totalorder %s22, 1
    %p71 = por %p69, %p70
    %p73 = scmp.ne.s32.totalorder %s56, %s72
    %p74 = scmp.eq.s32.totalorder %s22, 0
    %p75 = por %p73, %p74
    %s76 = ssub.s32 %s16, %s23
    %p77 = scmp.eq.s32.totalorder %s76, 0
    %s79 = sadd.s32 %s78, 1
    %s80 = scalar_select %p77, %s78, %s79
    %p83 = pneg %p77
    %p84 = scmp.eq.s32.totalorder %s16, 1
    %p85 = por %p83, %p84
    %p86 = scmp.ne.s32.totalorder %s78, %s81
    %p87 = scmp.eq.s32.totalorder %s16, 0
    %p88 = por %p86, %p87
    %p89 = scmp.ne.s32.totalorder %s78, %s81
    %p90 = scmp.eq.s32.totalorder %s21, 1
    %p91 = por %p89, %p90
    %p92 = scmp.ne.s32.totalorder %s81, %s82
    %p93 = scmp.eq.s32.totalorder %s21, 0
    %p94 = por %p92, %p93
    %p95 = scmp.ne.s32.totalorder %s81, %s82
    %p96 = scmp.eq.s32.totalorder %s22, 1
    %p97 = por %p95, %p96
    %p99 = scmp.ne.s32.totalorder %s82, %s98
    %p100 = scmp.eq.s32.totalorder %s22, 0
    %p101 = por %p99, %p100
    %s103 = sadd.s32 %s102, 1
    %p106 = scmp.eq.s32.totalorder %s16, 1
    %p107 = scmp.ne.s32.totalorder %s102, %s104
    %p108 = scmp.eq.s32.totalorder %s16, 0
    %p109 = por %p107, %p108
    %p110 = scmp.ne.s32.totalorder %s102, %s104
    %p111 = scmp.eq.s32.totalorder %s21, 1
    %p112 = por %p110, %p111
    %p113 = scmp.ne.s32.totalorder %s104, %s105
    %p114 = scmp.eq.s32.totalorder %s21, 0
    %p115 = por %p113, %p114
    %p116 = scmp.ne.s32.totalorder %s104, %s105
    %p117 = scmp.eq.s32.totalorder %s22, 1
    %p118 = por %p116, %p117
    %p120 = scmp.ne.s32.totalorder %s105, %s119
    %p121 = scmp.eq.s32.totalorder %s22, 0
    %p122 = por %p120, %p121
    %s124 = sadd.s32 %s123, 1
    %p127 = scmp.eq.s32.totalorder %s16, 1
    %p128 = scmp.ne.s32.totalorder %s123, %s125
    %p129 = scmp.eq.s32.totalorder %s16, 0
    %p130 = por %p128, %p129
    %p131 = scmp.ne.s32.totalorder %s123, %s125
    %p132 = scmp.eq.s32.totalorder %s21, 1
    %p133 = por %p131, %p132
    %p134 = scmp.ne.s32.totalorder %s125, %s126
    %p135 = scmp.eq.s32.totalorder %s21, 0
    %p136 = por %p134, %p135
    %p137 = scmp.ne.s32.totalorder %s125, %s126
    %p138 = scmp.eq.s32.totalorder %s22, 1
    %p139 = por %p137, %p138
    %p141 = scmp.ne.s32.totalorder %s126, %s140
    %p142 = scmp.eq.s32.totalorder %s22, 0
    %p143 = por %p141, %p142
    %s145 = sadd.s32 %s144, 1
    %p148 = scmp.eq.s32.totalorder %s16, 1
    %p149 = scmp.ne.s32.totalorder %s144, %s146
    %p150 = scmp.eq.s32.totalorder %s16, 0
    %p151 = por %p149, %p150
    %p152 = scmp.ne.s32.totalorder %s144, %s146
    %p153 = scmp.eq.s32.totalorder %s21, 1
    %p154 = por %p152, %p153
    %p155 = scmp.ne.s32.totalorder %s146, %s147
    %p156 = scmp.eq.s32.totalorder %s21, 0
    %p157 = por %p155, %p156
    %p158 = scmp.ne.s32.totalorder %s146, %s147
    %p159 = scmp.eq.s32.totalorder %s22, 1
    %p160 = por %p158, %p159
    %p162 = scmp.ne.s32.totalorder %s147, %s161
    %p163 = scmp.eq.s32.totalorder %s22, 0
    %p164 = por %p162, %p163
    %s166 = sadd.s32 %s165, 1
    %p169 = scmp.eq.s32.totalorder %s16, 1
    %p170 = scmp.ne.s32.totalorder %s165, %s167
    %p171 = scmp.eq.s32.totalorder %s16, 0
    %p172 = por %p170, %p171
    %p173 = scmp.ne.s32.totalorder %s165, %s167
    %p174 = scmp.eq.s32.totalorder %s21, 1
    %p175 = por %p173, %p174
    %p176 = scmp.ne.s32.totalorder %s167, %s168
    %p177 = scmp.eq.s32.totalorder %s21, 0
    %p178 = por %p176, %p177
    %p179 = scmp.ne.s32.totalorder %s167, %s168
    %p180 = scmp.eq.s32.totalorder %s22, 1
    %p181 = por %p179, %p180
    %p183 = scmp.ne.s32.totalorder %s168, %s182
    %p184 = scmp.eq.s32.totalorder %s22, 0
    %p185 = por %p183, %p184
    %s187 = sadd.s32 %s186, 1
    %p190 = scmp.eq.s32.totalorder %s16, 1
    %p191 = scmp.ne.s32.totalorder %s186, %s188
    %p192 = scmp.eq.s32.totalorder %s16, 0
    %p193 = por %p191, %p192
    %p194 = scmp.ne.s32.totalorder %s186, %s188
    %p195 = scmp.eq.s32.totalorder %s21, 1
    %p196 = por %p194, %p195
    %p197 = scmp.ne.s32.totalorder %s188, %s189
    %p198 = scmp.eq.s32.totalorder %s21, 0
    %p199 = por %p197, %p198
    %p200 = scmp.ne.s32.totalorder %s188, %s189
    %p201 = scmp.eq.s32.totalorder %s22, 1
    %p202 = por %p200, %p201
    %p204 = scmp.ne.s32.totalorder %s189, %s203
    %p205 = scmp.eq.s32.totalorder %s22, 0
    %p206 = por %p204, %p205
    %s208 = sadd.s32 %s207, 1
    %p211 = scmp.eq.s32.totalorder %s16, 1
    %p212 = scmp.ne.s32.totalorder %s207, %s209
    %p213 = scmp.eq.s32.totalorder %s16, 0
    %p214 = por %p212, %p213
    %p215 = scmp.ne.s32.totalorder %s207, %s209
    %p216 = scmp.eq.s32.totalorder %s21, 1
    %p217 = por %p215, %p216
    %p218 = scmp.ne.s32.totalorder %s209, %s210
    %p219 = scmp.eq.s32.totalorder %s21, 0
    %p220 = por %p218, %p219
    %p221 = scmp.ne.s32.totalorder %s209, %s210
    %p222 = scmp.eq.s32.totalorder %s22, 1
    %p223 = por %p221, %p222
    %p225 = scmp.ne.s32.totalorder %s210, %s224
    %p226 = scmp.eq.s32.totalorder %s22, 0
    %p227 = por %p225, %p226
    %s229 = sadd.s32 %s228, 1
    %p232 = scmp.eq.s32.totalorder %s16, 1
    %p233 = scmp.ne.s32.totalorder %s228, %s230
    %p234 = scmp.eq.s32.totalorder %s16, 0
    %p235 = por %p233, %p234
    %p236 = scmp.ne.s32.totalorder %s228, %s230
    %p237 = scmp.eq.s32.totalorder %s21, 1
    %p238 = por %p236, %p237
    %p239 = scmp.ne.s32.totalorder %s230, %s231
    %p240 = scmp.eq.s32.totalorder %s21, 0
    %p241 = por %p239, %p240
    %p242 = scmp.ne.s32.totalorder %s230, %s231
    %p243 = scmp.eq.s32.totalorder %s22, 1
    %p244 = por %p242, %p243
    %p246 = scmp.ne.s32.totalorder %s231, %s245
    %p247 = scmp.eq.s32.totalorder %s22, 0
    %p248 = por %p246, %p247
    %s249 = ssub.s32 %s16, %s23
    %p250 = scmp.eq.s32.totalorder %s249, 0
    %s252 = sadd.s32 %s251, 1
    %s253 = scalar_select %p250, %s251, %s252
    %p256 = pneg %p250
    %p257 = scmp.eq.s32.totalorder %s16, 1
    %p258 = por %p256, %p257
    %p259 = scmp.ne.s32.totalorder %s251, %s254
    %p260 = scmp.eq.s32.totalorder %s16, 0
    %p261 = por %p259, %p260
    %p262 = scmp.ne.s32.totalorder %s251, %s254
    %p263 = scmp.eq.s32.totalorder %s21, 1
    %p264 = por %p262, %p263
    %p265 = scmp.ne.s32.totalorder %s254, %s255
    %p266 = scmp.eq.s32.totalorder %s21, 0
    %p267 = por %p265, %p266
    %p268 = scmp.ne.s32.totalorder %s254, %s255
    %p269 = scmp.eq.s32.totalorder %s22, 1
    %p270 = por %p268, %p269
    %p272 = scmp.ne.s32.totalorder %s255, %s271
    %p273 = scmp.eq.s32.totalorder %s22, 0
    %p274 = por %p272, %p273
    %p275 = scmp.le.s32.totalorder 1, %s16
    %p276 = scmp.lt.s32.totalorder %s16, 3
    %p277 = pnand %p275, %p276
    %p278 = pneg %p277
    // Predicated region
    $region9: #{topformer_forward.1} parent=5 // pred_check
      _
    $region10: #{topformer_forward.1} parent=5 // pred_check_branch
      %280 = sbr.rel (%p277) target = $region12
    $region11: #{topformer_forward.1} parent=5 // pred_region
      %s281 = ssub.s32 %s16, 1
      // Predicated region
      $region13: #{topformer_forward.1} parent=11 // pred_check
        %p282 = pneg %p115
      $region14: #{topformer_forward.1} parent=11 // pred_check_branch
        %284 = sbr.rel (%p282) target = $region16
      $region15: #{topformer_forward.1} parent=11 // pred_region
        _
      $region16: #{topformer_forward.1} parent=11 // pred_fallthru
        _
      // Predicated region
      $region17: #{topformer_forward.1} parent=11 // pred_check
        %p285 = pneg %p136
      $region18: #{topformer_forward.1} parent=11 // pred_check_branch
        %287 = sbr.rel (%p285) target = $region20
      $region19: #{topformer_forward.1} parent=11 // pred_region
        _
      $region20: #{topformer_forward.1} parent=11 // pred_fallthru
        _
      // Predicated region
      $region21: #{topformer_forward.1} parent=11 // pred_check
        %p288 = pneg %p157
      $region22: #{topformer_forward.1} parent=11 // pred_check_branch
        %290 = sbr.rel (%p288) target = $region24
      $region23: #{topformer_forward.1} parent=11 // pred_region
        _
      $region24: #{topformer_forward.1} parent=11 // pred_fallthru
        _
      // Predicated region
      $region25: #{topformer_forward.1} parent=11 // pred_check
        %p291 = pneg %p178
      $region26: #{topformer_forward.1} parent=11 // pred_check_branch
        %293 = sbr.rel (%p291) target = $region28
      $region27: #{topformer_forward.1} parent=11 // pred_region
        _
      $region28: #{topformer_forward.1} parent=11 // pred_fallthru
        _
      // Predicated region
      $region29: #{topformer_forward.1} parent=11 // pred_check
        %p294 = pneg %p199
      $region30: #{topformer_forward.1} parent=11 // pred_check_branch
        %296 = sbr.rel (%p294) target = $region32
      $region31: #{topformer_forward.1} parent=11 // pred_region
        _
      $region32: #{topformer_forward.1} parent=11 // pred_fallthru
        _
      // Predicated region
      $region33: #{topformer_forward.1} parent=11 // pred_check
        %p297 = pneg %p220
      $region34: #{topformer_forward.1} parent=11 // pred_check_branch
        %299 = sbr.rel (%p297) target = $region36
      $region35: #{topformer_forward.1} parent=11 // pred_region
        _
      $region36: #{topformer_forward.1} parent=11 // pred_fallthru
        _
      // Predicated region
      $region37: #{topformer_forward.1} parent=11 // pred_check
        %p300 = pneg %p241
      $region38: #{topformer_forward.1} parent=11 // pred_check_branch
        %302 = sbr.rel (%p300) target = $region40
      $region39: #{topformer_forward.1} parent=11 // pred_region
        _
      $region40: #{topformer_forward.1} parent=11 // pred_fallthru
        _
    $region12: #{topformer_forward.1} parent=5 // pred_fallthru
      _
    %p303 = scmp.lt.s32.totalorder %s16, 2
    // Predicated region
    $region41: #{topformer_forward.1} parent=5 // pred_check
      %p304 = pneg %p303
    $region42: #{topformer_forward.1} parent=5 // pred_check_branch
      %306 = sbr.rel (%p304) target = $region44
    $region43: #{topformer_forward.1} parent=5 // pred_region
      // Predicated region
      $region45: #{topformer_forward.1} parent=43 // pred_check
        %p307 = pneg %p36
      $region46: #{topformer_forward.1} parent=43 // pred_check_branch
        %309 = sbr.rel (%p307) target = $region48
      $region47: #{topformer_forward.1} parent=43 // pred_region
        %p310 = scmp.lt.s32.totalorder %s16, 1
        %s311 = scalar_select %p310, %s16, 1
        %s312 = smul.addr %s311, 64
        %s313 = smul.addr %s312, 8
        %s314 = scalar_lea.vmem %s0, %s313
      $region48: #{topformer_forward.1} parent=43 // pred_fallthru
        _
      // Predicated region
      $region49: #{topformer_forward.1} parent=43 // pred_check
        %p315 = pneg %p62
      $region50: #{topformer_forward.1} parent=43 // pred_check_branch
        %317 = sbr.rel (%p315) target = $region52
      $region51: #{topformer_forward.1} parent=43 // pred_region
        %p318 = scmp.lt.s32.totalorder %s16, 1
        %s319 = scalar_select %p318, %s16, 1
        %s320 = smul.addr %s319, 32
        %s321 = smul.addr %s320, 8
        %s322 = scalar_lea.vmem %s1, %s321
      $region52: #{topformer_forward.1} parent=43 // pred_fallthru
        _
      // Predicated region
      $region53: #{topformer_forward.1} parent=43 // pred_check
        %p323 = pneg %p88
      $region54: #{topformer_forward.1} parent=43 // pred_check_branch
        %325 = sbr.rel (%p323) target = $region56
      $region55: #{topformer_forward.1} parent=43 // pred_region
        %p326 = scmp.lt.s32.totalorder %s16, 1
        %s327 = scalar_select %p326, %s16, 1
        %s328 = smul.addr %s327, 32
        %s329 = smul.addr %s328, 8
        %s330 = scalar_lea.vmem %s2, %s329
      $region56: #{topformer_forward.1} parent=43 // pred_fallthru
        _
    $region44: #{topformer_forward.1} parent=5 // pred_fallthru
      _
    %p331 = scmp.le.s32.totalorder 1, %s16
    %p332 = scmp.lt.s32.totalorder %s16, 3
    %p333 = pnand %p331, %p332
    %p334 = pneg %p333
    // Predicated region
    $region57: #{topformer_forward.1} parent=5 // pred_check
      _
    $region58: #{topformer_forward.1} parent=5 // pred_check_branch
      %336 = sbr.rel (%p333) target = $region60
    $region59: #{topformer_forward.1} parent=5 // pred_region
      %s337 = ssub.s32 %s16, 1
      %p338 = scmp.lt.s32.totalorder %s21, 1
      %s339 = scalar_select %p338, %s21, 1
      %s340 = smul.addr %s339, 64
      %s341 = smul.addr %s340, 8
      %s342 = scalar_lea.vmem %s0, %s341
      %p343 = pneg %p42
      %p344 = pneg %p39
      %p345 = scmp.lt.s32.totalorder %s21, 1
      %s346 = scalar_select %p345, %s21, 1
      %s347 = smul.addr %s346, 32
      %s348 = smul.addr %s347, 8
      %s349 = scalar_lea.vmem %s1, %s348
      %p350 = pneg %p68
      %p351 = pneg %p65
      %p352 = scmp.lt.s32.totalorder %s21, 1
      %s353 = scalar_select %p352, %s21, 1
      %s354 = smul.addr %s353, 32
      %s355 = smul.addr %s354, 8
      %s356 = scalar_lea.vmem %s2, %s355
      %p357 = pneg %p94
      %p358 = pneg %p91
      %p359 = pneg %p115
      %p360 = pneg %p112
      %p361 = pneg %p136
      %p362 = pneg %p133
      %p363 = pneg %p157
      %p364 = pneg %p154
      %p365 = pneg %p178
      %p366 = pneg %p175
      %p367 = pneg %p199
      %p368 = pneg %p196
      %p369 = pneg %p220
      %p370 = pneg %p217
      %p371 = pneg %p241
      %p372 = pneg %p238
      %p373 = pneg %p267
      %p374 = pneg %p264
      %p375 = scmp.lt.s32.totalorder %s21, 1
      %s376 = scalar_select %p375, %s21, 1
      %s377 = smul.addr %s376, 32
      %s378 = smul.addr %s377, 2
      %s379 = scalar_lea.vmem %s10, %s378
      %p380 = scmp.lt.s32.totalorder %s21, 1
      %s381 = scalar_select %p380, %s21, 1
      %s382 = smul.addr %s381, 64
      %s383 = smul.addr %s382, 8
      %s384 = scalar_lea.vmem %s0, %s383
      %p385 = scmp.lt.s32.totalorder %s21, 1
      %s386 = scalar_select %p385, %s21, 1
      %s387 = smul.addr %s386, 32
      %s388 = smul.addr %s387, 8
      %s389 = scalar_lea.vmem %s1, %s388
      %p390 = scmp.lt.s32.totalorder %s21, 1
      %s391 = scalar_select %p390, %s21, 1
      %s392 = smul.addr %s391, 32
      %s393 = smul.addr %s392, 8
      %s394 = scalar_lea.vmem %s2, %s393
      %p395 = scmp.lt.s32.totalorder %s21, 1
      %s396 = scalar_select %p395, %s21, 1
      %s397 = smul.addr %s396, 32
      %s398 = smul.addr %s397, 2
      %s399 = scalar_lea.vmem %s10, %s398
      %v400 = vld [vmem:[%s384] sm:$0xff]
      %v401 = vld [vmem:[%s384 + $0x8] sm:$0xff]
      %v402 = vld [vmem:[%s384 + $0x10] sm:$0xff]
      %v403 = vld [vmem:[%s384 + $0x18] sm:$0xff]
      %v404 = vld [vmem:[%s384 + $0x20] sm:$0xff]
      %v405 = vld [vmem:[%s384 + $0x28] sm:$0xff]
      %v406 = vld [vmem:[%s384 + $0x30] sm:$0xff]
      %v407 = vld [vmem:[%s384 + $0x38] sm:$0xff]
      %v408 = vld [vmem:[%s384 + $0x40] sm:$0xff]
      %v409 = vld [vmem:[%s384 + $0x48] sm:$0xff]
      %v410 = vld [vmem:[%s384 + $0x50] sm:$0xff]
      %v411 = vld [vmem:[%s384 + $0x58] sm:$0xff]
      %v412 = vld [vmem:[%s384 + $0x60] sm:$0xff]
      %v413 = vld [vmem:[%s384 + $0x68] sm:$0xff]
      %v414 = vld [vmem:[%s384 + $0x70] sm:$0xff]
      %v415 = vld [vmem:[%s384 + $0x78] sm:$0xff]
      %v416 = vld [vmem:[%s384 + $0x80] sm:$0xff]
      %v417 = vld [vmem:[%s384 + $0x88] sm:$0xff]
      %v418 = vld [vmem:[%s384 + $0x90] sm:$0xff]
      %v419 = vld [vmem:[%s384 + $0x98] sm:$0xff]
      %v420 = vld [vmem:[%s384 + $0xa0] sm:$0xff]
      %v421 = vld [vmem:[%s384 + $0xa8] sm:$0xff]
      %v422 = vld [vmem:[%s384 + $0xb0] sm:$0xff]
      %v423 = vld [vmem:[%s384 + $0xb8] sm:$0xff]
      %v424 = vld [vmem:[%s384 + $0xc0] sm:$0xff]
      %v425 = vld [vmem:[%s384 + $0xc8] sm:$0xff]
      %v426 = vld [vmem:[%s384 + $0xd0] sm:$0xff]
      %v427 = vld [vmem:[%s384 + $0xd8] sm:$0xff]
      %v428 = vld [vmem:[%s384 + $0xe0] sm:$0xff]
      %v429 = vld [vmem:[%s384 + $0xe8] sm:$0xff]
      %v430 = vld [vmem:[%s384 + $0xf0] sm:$0xff]
      %v431 = vld [vmem:[%s384 + $0xf8] sm:$0xff]
      %v432 = vld [vmem:[%s384 + $0x100] sm:$0xff]
      %v433 = vld [vmem:[%s384 + $0x108] sm:$0xff]
      %v434 = vld [vmem:[%s384 + $0x110] sm:$0xff]
      %v435 = vld [vmem:[%s384 + $0x118] sm:$0xff]
      %v436 = vld [vmem:[%s384 + $0x120] sm:$0xff]
      %v437 = vld [vmem:[%s384 + $0x128] sm:$0xff]
      %v438 = vld [vmem:[%s384 + $0x130] sm:$0xff]
      %v439 = vld [vmem:[%s384 + $0x138] sm:$0xff]
      %v440 = vld [vmem:[%s384 + $0x140] sm:$0xff]
      %v441 = vld [vmem:[%s384 + $0x148] sm:$0xff]
      %v442 = vld [vmem:[%s384 + $0x150] sm:$0xff]
      %v443 = vld [vmem:[%s384 + $0x158] sm:$0xff]
      %v444 = vld [vmem:[%s384 + $0x160] sm:$0xff]
      %v445 = vld [vmem:[%s384 + $0x168] sm:$0xff]
      %v446 = vld [vmem:[%s384 + $0x170] sm:$0xff]
      %v447 = vld [vmem:[%s384 + $0x178] sm:$0xff]
      %v448 = vld [vmem:[%s384 + $0x180] sm:$0xff]
      %v449 = vld [vmem:[%s384 + $0x188] sm:$0xff]
      %v450 = vld [vmem:[%s384 + $0x190] sm:$0xff]
      %v451 = vld [vmem:[%s384 + $0x198] sm:$0xff]
      %v452 = vld [vmem:[%s384 + $0x1a0] sm:$0xff]
      %v453 = vld [vmem:[%s384 + $0x1a8] sm:$0xff]
      %v454 = vld [vmem:[%s384 + $0x1b0] sm:$0xff]
      %v455 = vld [vmem:[%s384 + $0x1b8] sm:$0xff]
      %v456 = vld [vmem:[%s384 + $0x1c0] sm:$0xff]
      %v457 = vld [vmem:[%s384 + $0x1c8] sm:$0xff]
      %v458 = vld [vmem:[%s384 + $0x1d0] sm:$0xff]
      %v459 = vld [vmem:[%s384 + $0x1d8] sm:$0xff]
      %v460 = vld [vmem:[%s384 + $0x1e0] sm:$0xff]
      %v461 = vld [vmem:[%s384 + $0x1e8] sm:$0xff]
      %v462 = vld [vmem:[%s384 + $0x1f0] sm:$0xff]
      %v463 = vld [vmem:[%s384 + $0x1f8] sm:$0xff]
      %v464 = vld [vmem:[%s389] sm:$0xff]
      %v465 = vld [vmem:[%s389 + $0x8] sm:$0xff]
      %v466 = vld [vmem:[%s389 + $0x10] sm:$0xff]
      %v467 = vld [vmem:[%s389 + $0x18] sm:$0xff]
      %v468 = vld [vmem:[%s389 + $0x20] sm:$0xff]
      %v469 = vld [vmem:[%s389 + $0x28] sm:$0xff]
      %v470 = vld [vmem:[%s389 + $0x30] sm:$0xff]
      %v471 = vld [vmem:[%s389 + $0x38] sm:$0xff]
      %v472 = vld [vmem:[%s389 + $0x40] sm:$0xff]
      %v473 = vld [vmem:[%s389 + $0x48] sm:$0xff]
      %v474 = vld [vmem:[%s389 + $0x50] sm:$0xff]
      %v475 = vld [vmem:[%s389 + $0x58] sm:$0xff]
      %v476 = vld [vmem:[%s389 + $0x60] sm:$0xff]
      %v477 = vld [vmem:[%s389 + $0x68] sm:$0xff]
      %v478 = vld [vmem:[%s389 + $0x70] sm:$0xff]
      %v479 = vld [vmem:[%s389 + $0x78] sm:$0xff]
      %v480 = vld [vmem:[%s389 + $0x80] sm:$0xff]
      %v481 = vld [vmem:[%s389 + $0x88] sm:$0xff]
      %v482 = vld [vmem:[%s389 + $0x90] sm:$0xff]
      %v483 = vld [vmem:[%s389 + $0x98] sm:$0xff]
      %v484 = vld [vmem:[%s389 + $0xa0] sm:$0xff]
      %v485 = vld [vmem:[%s389 + $0xa8] sm:$0xff]
      %v486 = vld [vmem:[%s389 + $0xb0] sm:$0xff]
      %v487 = vld [vmem:[%s389 + $0xb8] sm:$0xff]
      %v488 = vld [vmem:[%s389 + $0xc0] sm:$0xff]
      %v489 = vld [vmem:[%s389 + $0xc8] sm:$0xff]
      %v490 = vld [vmem:[%s389 + $0xd0] sm:$0xff]
      %v491 = vld [vmem:[%s389 + $0xd8] sm:$0xff]
      %v492 = vld [vmem:[%s389 + $0xe0] sm:$0xff]
      %v493 = vld [vmem:[%s389 + $0xe8] sm:$0xff]
      %v494 = vld [vmem:[%s389 + $0xf0] sm:$0xff]
      %v495 = vld [vmem:[%s389 + $0xf8] sm:$0xff]
      %v496 = vld [vmem:[%s3] sm:$0xff]
      %v497 = vld [vmem:[%s3 + $0x8] sm:$0xff]
      %v498 = vld [vmem:[%s3 + $0x10] sm:$0xff]
      %v499 = vld [vmem:[%s3 + $0x18] sm:$0xff]
      %v500 = vld [vmem:[%s3 + $0x20] sm:$0xff]
      %v501 = vld [vmem:[%s3 + $0x28] sm:$0xff]
      %v502 = vld [vmem:[%s3 + $0x30] sm:$0xff]
      %v503 = vld [vmem:[%s3 + $0x38] sm:$0xff]
      %v504 = vld [vmem:[%s3 + $0x40] sm:$0xff]
      %v505 = vld [vmem:[%s3 + $0x48] sm:$0xff]
      %v506 = vld [vmem:[%s3 + $0x50] sm:$0xff]
      %v507 = vld [vmem:[%s3 + $0x58] sm:$0xff]
      %v508 = vld [vmem:[%s3 + $0x60] sm:$0xff]
      %v509 = vld [vmem:[%s3 + $0x68] sm:$0xff]
      %v510 = vld [vmem:[%s3 + $0x70] sm:$0xff]
      %v511 = vld [vmem:[%s3 + $0x78] sm:$0xff]
      %vm512 = vcmask 523264
      %v514 = vsel %vm512, %v464, 0
      %v517 = vsel %vm512, %v465, 0
      %v520 = vsel %vm512, %v466, 0
      %v523 = vsel %vm512, %v467, 0
      %v526 = vsel %vm512, %v468, 0
      %v529 = vsel %vm512, %v469, 0
      %v532 = vsel %vm512, %v470, 0
      %v535 = vsel %vm512, %v471, 0
      %v538 = vsel %vm512, %v472, 0
      %v541 = vsel %vm512, %v473, 0
      %v544 = vsel %vm512, %v474, 0
      %v547 = vsel %vm512, %v475, 0
      %v550 = vsel %vm512, %v476, 0
      %v553 = vsel %vm512, %v477, 0
      %v556 = vsel %vm512, %v478, 0
      %v559 = vsel %vm512, %v479, 0
      %v562 = vsel %vm512, %v480, 0
      %v565 = vsel %vm512, %v481, 0
      %v568 = vsel %vm512, %v482, 0
      %v571 = vsel %vm512, %v483, 0
      %v574 = vsel %vm512, %v484, 0
      %v577 = vsel %vm512, %v485, 0
      %v580 = vsel %vm512, %v486, 0
      %v583 = vsel %vm512, %v487, 0
      %v586 = vsel %vm512, %v488, 0
      %v589 = vsel %vm512, %v489, 0
      %v592 = vsel %vm512, %v490, 0
      %v595 = vsel %vm512, %v491, 0
      %v598 = vsel %vm512, %v492, 0
      %v601 = vsel %vm512, %v493, 0
      %v604 = vsel %vm512, %v494, 0
      %v607 = vsel %vm512, %v495, 0
      %609 = vmatpush.msra.mxu0 0.0
      %610 = vmatpush.msra.mxu0 0.0
      %611 = vmatpush.msra.mxu0 0.0
      %612 = vmatpush.msra.mxu0 0.0
      %613 = vmatpush.msra.mxu0 0.0
      %614 = vmatpush.msra.mxu0 0.0
      %615 = vmatpush.msra.mxu0 0.0
      %616 = vmatpush.msra.mxu0 0.0
      %617 = vmatpush.msra.mxu0 %v510
      %618 = vmatpush.msra.mxu0 %v508
      %619 = vmatpush.msra.mxu0 %v506
      %620 = vmatpush.msra.mxu0 %v504
      %621 = vmatpush.msra.mxu0 %v502
      %622 = vmatpush.msra.mxu0 %v500
      %623 = vmatpush.msra.mxu0 %v498
      %624 = vmatpush.msra.mxu0 %v496
      %625 = vmatmul.f32.gmra.mxu0 %v514
      %v626 = vpop.f32.mrf.mxu0
      %v627 = vadd.f32 0.0, %v626
      %628 = vmatmul.f32.gmra.mxu0 %v517
      %v629 = vpop.f32.mrf.mxu0
      %v630 = vadd.f32 0.0, %v629
      %631 = vmatmul.f32.gmra.mxu0 %v520
      %v632 = vpop.f32.mrf.mxu0
      %v633 = vadd.f32 0.0, %v632
      %634 = vmatmul.f32.gmra.mxu0 %v523
      %v635 = vpop.f32.mrf.mxu0
      %v636 = vadd.f32 0.0, %v635
      %637 = vmatmul.f32.gmra.mxu0 %v526
      %v638 = vpop.f32.mrf.mxu0
      %v639 = vadd.f32 0.0, %v638
      %640 = vmatmul.f32.gmra.mxu0 %v529
      %v641 = vpop.f32.mrf.mxu0
      %v642 = vadd.f32 0.0, %v641
      %643 = vmatmul.f32.gmra.mxu0 %v532
      %v644 = vpop.f32.mrf.mxu0
      %v645 = vadd.f32 0.0, %v644
      %646 = vmatmul.f32.gmra.mxu0 %v535
      %v647 = vpop.f32.mrf.mxu0
      %v648 = vadd.f32 0.0, %v647
      %649 = vmatmul.f32.gmra.mxu0 %v538
      %v650 = vpop.f32.mrf.mxu0
      %v651 = vadd.f32 0.0, %v650
      %652 = vmatmul.f32.gmra.mxu0 %v541
      %v653 = vpop.f32.mrf.mxu0
      %v654 = vadd.f32 0.0, %v653
      %655 = vmatmul.f32.gmra.mxu0 %v544
      %v656 = vpop.f32.mrf.mxu0
      %v657 = vadd.f32 0.0, %v656
      %658 = vmatmul.f32.gmra.mxu0 %v547
      %v659 = vpop.f32.mrf.mxu0
      %v660 = vadd.f32 0.0, %v659
      %661 = vmatmul.f32.gmra.mxu0 %v550
      %v662 = vpop.f32.mrf.mxu0
      %v663 = vadd.f32 0.0, %v662
      %664 = vmatmul.f32.gmra.mxu0 %v553
      %v665 = vpop.f32.mrf.mxu0
      %v666 = vadd.f32 0.0, %v665
      %667 = vmatmul.f32.gmra.mxu0 %v556
      %v668 = vpop.f32.mrf.mxu0
      %v669 = vadd.f32 0.0, %v668
      %670 = vmatmul.f32.gmra.mxu0 %v559
      %v671 = vpop.f32.mrf.mxu0
      %v672 = vadd.f32 0.0, %v671
      %673 = vmatmul.f32.gmra.mxu0 %v562
      %v674 = vpop.f32.mrf.mxu0
      %v675 = vadd.f32 0.0, %v674
      %676 = vmatmul.f32.gmra.mxu0 %v565
      %v677 = vpop.f32.mrf.mxu0
      %v678 = vadd.f32 0.0, %v677
      %679 = vmatmul.f32.gmra.mxu0 %v568
      %v680 = vpop.f32.mrf.mxu0
      %v681 = vadd.f32 0.0, %v680
      %682 = vmatmul.f32.gmra.mxu0 %v571
      %v683 = vpop.f32.mrf.mxu0
      %v684 = vadd.f32 0.0, %v683
      %685 = vmatmul.f32.gmra.mxu0 %v574
      %v686 = vpop.f32.mrf.mxu0
      %v687 = vadd.f32 0.0, %v686
      %688 = vmatmul.f32.gmra.mxu0 %v577
      %v689 = vpop.f32.mrf.mxu0
      %v690 = vadd.f32 0.0, %v689
      %691 = vmatmul.f32.gmra.mxu0 %v580
      %v692 = vpop.f32.mrf.mxu0
      %v693 = vadd.f32 0.0, %v692
      %694 = vmatmul.f32.gmra.mxu0 %v583
      %v695 = vpop.f32.mrf.mxu0
      %v696 = vadd.f32 0.0, %v695
      %697 = vmatmul.f32.gmra.mxu0 %v586
      %v698 = vpop.f32.mrf.mxu0
      %v699 = vadd.f32 0.0, %v698
      %700 = vmatmul.f32.gmra.mxu0 %v589
      %v701 = vpop.f32.mrf.mxu0
      %v702 = vadd.f32 0.0, %v701
      %703 = vmatmul.f32.gmra.mxu0 %v592
      %v704 = vpop.f32.mrf.mxu0
      %v705 = vadd.f32 0.0, %v704
      %706 = vmatmul.f32.gmra.mxu0 %v595
      %v707 = vpop.f32.mrf.mxu0
      %v708 = vadd.f32 0.0, %v707
      %709 = vmatmul.f32.gmra.mxu0 %v598
      %v710 = vpop.f32.mrf.mxu0
      %v711 = vadd.f32 0.0, %v710
      %712 = vmatmul.f32.gmra.mxu0 %v601
      %v713 = vpop.f32.mrf.mxu0
      %v714 = vadd.f32 0.0, %v713
      %715 = vmatmul.f32.gmra.mxu0 %v604
      %v716 = vpop.f32.mrf.mxu0
      %v717 = vadd.f32 0.0, %v716
      %718 = vmatmul.f32.gmra.mxu0 %v607
      %v719 = vpop.f32.mrf.mxu0
      %v720 = vadd.f32 0.0, %v719
      %721 = vdwg.mxu0
      %722 = vmatpush.msra.mxu0 0.0
      %723 = vmatpush.msra.mxu0 0.0
      %724 = vmatpush.msra.mxu0 0.0
      %725 = vmatpush.msra.mxu0 0.0
      %726 = vmatpush.msra.mxu0 0.0
      %727 = vmatpush.msra.mxu0 0.0
      %728 = vmatpush.msra.mxu0 0.0
      %729 = vmatpush.msra.mxu0 0.0
      %730 = vmatpush.msra.mxu0 %v511
      %731 = vmatpush.msra.mxu0 %v509
      %732 = vmatpush.msra.mxu0 %v507
      %733 = vmatpush.msra.mxu0 %v505
      %734 = vmatpush.msra.mxu0 %v503
      %735 = vmatpush.msra.mxu0 %v501
      %736 = vmatpush.msra.mxu0 %v499
      %737 = vmatpush.msra.mxu0 %v497
      %738 = vmatmul.f32.gmra.mxu0 %v514
      %v739 = vpop.f32.mrf.mxu0
      %v740 = vadd.f32 0.0, %v739
      %741 = vmatmul.f32.gmra.mxu0 %v517
      %v742 = vpop.f32.mrf.mxu0
      %v743 = vadd.f32 0.0, %v742
      %744 = vmatmul.f32.gmra.mxu0 %v520
      %v745 = vpop.f32.mrf.mxu0
      %v746 = vadd.f32 0.0, %v745
      %747 = vmatmul.f32.gmra.mxu0 %v523
      %v748 = vpop.f32.mrf.mxu0
      %v749 = vadd.f32 0.0, %v748
      %750 = vmatmul.f32.gmra.mxu0 %v526
      %v751 = vpop.f32.mrf.mxu0
      %v752 = vadd.f32 0.0, %v751
      %753 = vmatmul.f32.gmra.mxu0 %v529
      %v754 = vpop.f32.mrf.mxu0
      %v755 = vadd.f32 0.0, %v754
      %756 = vmatmul.f32.gmra.mxu0 %v532
      %v757 = vpop.f32.mrf.mxu0
      %v758 = vadd.f32 0.0, %v757
      %759 = vmatmul.f32.gmra.mxu0 %v535
      %v760 = vpop.f32.mrf.mxu0
      %v761 = vadd.f32 0.0, %v760
      %762 = vmatmul.f32.gmra.mxu0 %v538
      %v763 = vpop.f32.mrf.mxu0
      %v764 = vadd.f32 0.0, %v763
      %765 = vmatmul.f32.gmra.mxu0 %v541
      %v766 = vpop.f32.mrf.mxu0
      %v767 = vadd.f32 0.0, %v766
      %768 = vmatmul.f32.gmra.mxu0 %v544
      %v769 = vpop.f32.mrf.mxu0
      %v770 = vadd.f32 0.0, %v769
      %771 = vmatmul.f32.gmra.mxu0 %v547
      %v772 = vpop.f32.mrf.mxu0
      %v773 = vadd.f32 0.0, %v772
      %774 = vmatmul.f32.gmra.mxu0 %v550
      %v775 = vpop.f32.mrf.mxu0
      %v776 = vadd.f32 0.0, %v775
      %777 = vmatmul.f32.gmra.mxu0 %v553
      %v778 = vpop.f32.mrf.mxu0
      %v779 = vadd.f32 0.0, %v778
      %780 = vmatmul.f32.gmra.mxu0 %v556
      %v781 = vpop.f32.mrf.mxu0
      %v782 = vadd.f32 0.0, %v781
      %783 = vmatmul.f32.gmra.mxu0 %v559
      %v784 = vpop.f32.mrf.mxu0
      %v785 = vadd.f32 0.0, %v784
      %786 = vmatmul.f32.gmra.mxu0 %v562
      %v787 = vpop.f32.mrf.mxu0
      %v788 = vadd.f32 0.0, %v787
      %789 = vmatmul.f32.gmra.mxu0 %v565
      %v790 = vpop.f32.mrf.mxu0
      %v791 = vadd.f32 0.0, %v790
      %792 = vmatmul.f32.gmra.mxu0 %v568
      %v793 = vpop.f32.mrf.mxu0
      %v794 = vadd.f32 0.0, %v793
      %795 = vmatmul.f32.gmra.mxu0 %v571
      %v796 = vpop.f32.mrf.mxu0
      %v797 = vadd.f32 0.0, %v796
      %798 = vmatmul.f32.gmra.mxu0 %v574
      %v799 = vpop.f32.mrf.mxu0
      %v800 = vadd.f32 0.0, %v799
      %801 = vmatmul.f32.gmra.mxu0 %v577
      %v802 = vpop.f32.mrf.mxu0
      %v803 = vadd.f32 0.0, %v802
      %804 = vmatmul.f32.gmra.mxu0 %v580
      %v805 = vpop.f32.mrf.mxu0
      %v806 = vadd.f32 0.0, %v805
      %807 = vmatmul.f32.gmra.mxu0 %v583
      %v808 = vpop.f32.mrf.mxu0
      %v809 = vadd.f32 0.0, %v808
      %810 = vmatmul.f32.gmra.mxu0 %v586
      %v811 = vpop.f32.mrf.mxu0
      %v812 = vadd.f32 0.0, %v811
      %813 = vmatmul.f32.gmra.mxu0 %v589
      %v814 = vpop.f32.mrf.mxu0
      %v815 = vadd.f32 0.0, %v814
      %816 = vmatmul.f32.gmra.mxu0 %v592
      %v817 = vpop.f32.mrf.mxu0
      %v818 = vadd.f32 0.0, %v817
      %819 = vmatmul.f32.gmra.mxu0 %v595
      %v820 = vpop.f32.mrf.mxu0
      %v821 = vadd.f32 0.0, %v820
      %822 = vmatmul.f32.gmra.mxu0 %v598
      %v823 = vpop.f32.mrf.mxu0
      %v824 = vadd.f32 0.0, %v823
      %825 = vmatmul.f32.gmra.mxu0 %v601
      %v826 = vpop.f32.mrf.mxu0
      %v827 = vadd.f32 0.0, %v826
      %828 = vmatmul.f32.gmra.mxu0 %v604
      %v829 = vpop.f32.mrf.mxu0
      %v830 = vadd.f32 0.0, %v829
      %831 = vmatmul.f32.gmra.mxu0 %v607
      %v832 = vpop.f32.mrf.mxu0
      %v833 = vadd.f32 0.0, %v832
      %834 = vdwg.mxu0
      %v835 = vadd.f32 %v400, %v627
      %v836 = vadd.f32 %v401, %v740
      %v837 = vadd.f32 %v402, %v630
      %v838 = vadd.f32 %v403, %v743
      %v839 = vadd.f32 %v404, %v633
      %v840 = vadd.f32 %v405, %v746
      %v841 = vadd.f32 %v406, %v636
      %v842 = vadd.f32 %v407, %v749
      %v843 = vadd.f32 %v408, %v639
      %v844 = vadd.f32 %v409, %v752
      %v845 = vadd.f32 %v410, %v642
      %v846 = vadd.f32 %v411, %v755
      %v847 = vadd.f32 %v412, %v645
      %v848 = vadd.f32 %v413, %v758
      %v849 = vadd.f32 %v414, %v648
      %v850 = vadd.f32 %v415, %v761
      %v851 = vadd.f32 %v416, %v651
      %v852 = vadd.f32 %v417, %v764
      %v853 = vadd.f32 %v418, %v654
      %v854 = vadd.f32 %v419, %v767
      %v855 = vadd.f32 %v420, %v657
      %v856 = vadd.f32 %v421, %v770
      %v857 = vadd.f32 %v422, %v660
      %v858 = vadd.f32 %v423, %v773
      %v859 = vadd.f32 %v424, %v663
      %v860 = vadd.f32 %v425, %v776
      %v861 = vadd.f32 %v426, %v666
      %v862 = vadd.f32 %v427, %v779
      %v863 = vadd.f32 %v428, %v669
      %v864 = vadd.f32 %v429, %v782
      %v865 = vadd.f32 %v430, %v672
      %v866 = vadd.f32 %v431, %v785
      %v867 = vadd.f32 %v432, %v675
      %v868 = vadd.f32 %v433, %v788
      %v869 = vadd.f32 %v434, %v678
      %v870 = vadd.f32 %v435, %v791
      %v871 = vadd.f32 %v436, %v681
      %v872 = vadd.f32 %v437, %v794
      %v873 = vadd.f32 %v438, %v684
      %v874 = vadd.f32 %v439, %v797
      %v875 = vadd.f32 %v440, %v687
      %v876 = vadd.f32 %v441, %v800
      %v877 = vadd.f32 %v442, %v690
      %v878 = vadd.f32 %v443, %v803
      %v879 = vadd.f32 %v444, %v693
      %v880 = vadd.f32 %v445, %v806
      %v881 = vadd.f32 %v446, %v696
      %v882 = vadd.f32 %v447, %v809
      %v883 = vadd.f32 %v448, %v699
      %v884 = vadd.f32 %v449, %v812
      %v885 = vadd.f32 %v450, %v702
      %v886 = vadd.f32 %v451, %v815
      %v887 = vadd.f32 %v452, %v705
      %v888 = vadd.f32 %v453, %v818
      %v889 = vadd.f32 %v454, %v708
      %v890 = vadd.f32 %v455, %v821
      %v891 = vadd.f32 %v456, %v711
      %v892 = vadd.f32 %v457, %v824
      %v893 = vadd.f32 %v458, %v714
      %v894 = vadd.f32 %v459, %v827
      %v895 = vadd.f32 %v460, %v717
      %v896 = vadd.f32 %v461, %v830
      %v897 = vadd.f32 %v462, %v720
      %v898 = vadd.f32 %v463, %v833
      %v899 = vld [vmem:[%s394] sm:$0xff]
      %v900 = vld [vmem:[%s394 + $0x8] sm:$0xff]
      %v901 = vld [vmem:[%s394 + $0x10] sm:$0xff]
      %v902 = vld [vmem:[%s394 + $0x18] sm:$0xff]
      %v903 = vld [vmem:[%s394 + $0x20] sm:$0xff]
      %v904 = vld [vmem:[%s394 + $0x28] sm:$0xff]
      %v905 = vld [vmem:[%s394 + $0x30] sm:$0xff]
      %v906 = vld [vmem:[%s394 + $0x38] sm:$0xff]
      %v907 = vld [vmem:[%s394 + $0x40] sm:$0xff]
      %v908 = vld [vmem:[%s394 + $0x48] sm:$0xff]
      %v909 = vld [vmem:[%s394 + $0x50] sm:$0xff]
      %v910 = vld [vmem:[%s394 + $0x58] sm:$0xff]
      %v911 = vld [vmem:[%s394 + $0x60] sm:$0xff]
      %v912 = vld [vmem:[%s394 + $0x68] sm:$0xff]
      %v913 = vld [vmem:[%s394 + $0x70] sm:$0xff]
      %v914 = vld [vmem:[%s394 + $0x78] sm:$0xff]
      %v915 = vld [vmem:[%s394 + $0x80] sm:$0xff]
      %v916 = vld [vmem:[%s394 + $0x88] sm:$0xff]
      %v917 = vld [vmem:[%s394 + $0x90] sm:$0xff]
      %v918 = vld [vmem:[%s394 + $0x98] sm:$0xff]
      %v919 = vld [vmem:[%s394 + $0xa0] sm:$0xff]
      %v920 = vld [vmem:[%s394 + $0xa8] sm:$0xff]
      %v921 = vld [vmem:[%s394 + $0xb0] sm:$0xff]
      %v922 = vld [vmem:[%s394 + $0xb8] sm:$0xff]
      %v923 = vld [vmem:[%s394 + $0xc0] sm:$0xff]
      %v924 = vld [vmem:[%s394 + $0xc8] sm:$0xff]
      %v925 = vld [vmem:[%s394 + $0xd0] sm:$0xff]
      %v926 = vld [vmem:[%s394 + $0xd8] sm:$0xff]
      %v927 = vld [vmem:[%s394 + $0xe0] sm:$0xff]
      %v928 = vld [vmem:[%s394 + $0xe8] sm:$0xff]
      %v929 = vld [vmem:[%s394 + $0xf0] sm:$0xff]
      %v930 = vld [vmem:[%s394 + $0xf8] sm:$0xff]
      %v931 = vld [vmem:[%s4] sm:$0xff]
      %v932 = vld [vmem:[%s4 + $0x8] sm:$0xff]
      %v933 = vld [vmem:[%s4 + $0x10] sm:$0xff]
      %v934 = vld [vmem:[%s4 + $0x18] sm:$0xff]
      %vm935 = vcmask 130048
      %v937 = vsel %vm935, %v899, 0
      %v940 = vsel %vm935, %v900, 0
      %v943 = vsel %vm935, %v901, 0
      %v946 = vsel %vm935, %v902, 0
      %v949 = vsel %vm935, %v903, 0
      %v952 = vsel %vm935, %v904, 0
      %v955 = vsel %vm935, %v905, 0
      %v958 = vsel %vm935, %v906, 0
      %v961 = vsel %vm935, %v907, 0
      %v964 = vsel %vm935, %v908, 0
      %v967 = vsel %vm935, %v909, 0
      %v970 = vsel %vm935, %v910, 0
      %v973 = vsel %vm935, %v911, 0
      %v976 = vsel %vm935, %v912, 0
      %v979 = vsel %vm935, %v913, 0
      %v982 = vsel %vm935, %v914, 0
      %v985 = vsel %vm935, %v915, 0
      %v988 = vsel %vm935, %v916, 0
      %v991 = vsel %vm935, %v917, 0
      %v994 = vsel %vm935, %v918, 0
      %v997 = vsel %vm935, %v919, 0
      %v1000 = vsel %vm935, %v920, 0
      %v1003 = vsel %vm935, %v921, 0
      %v1006 = vsel %vm935, %v922, 0
      %v1009 = vsel %vm935, %v923, 0
      %v1012 = vsel %vm935, %v924, 0
      %v1015 = vsel %vm935, %v925, 0
      %v1018 = vsel %vm935, %v926, 0
      %v1021 = vsel %vm935, %v927, 0
      %v1024 = vsel %vm935, %v928, 0
      %v1027 = vsel %vm935, %v929, 0
      %v1030 = vsel %vm935, %v930, 0
      %1032 = vmatpush.msra.mxu0 0.0
      %1033 = vmatpush.msra.mxu0 0.0
      %1034 = vmatpush.msra.mxu0 0.0
      %1035 = vmatpush.msra.mxu0 0.0
      %1036 = vmatpush.msra.mxu0 0.0
      %1037 = vmatpush.msra.mxu0 0.0
      %1038 = vmatpush.msra.mxu0 0.0
      %1039 = vmatpush.msra.mxu0 0.0
      %1040 = vmatpush.msra.mxu0 0.0
      %1041 = vmatpush.msra.mxu0 0.0
      %1042 = vmatpush.msra.mxu0 0.0
      %1043 = vmatpush.msra.mxu0 0.0
      %1044 = vmatpush.msra.mxu0 0.0
      %1045 = vmatpush.msra.mxu0 0.0
      %1046 = vmatpush.msra.mxu0 %v933
      %1047 = vmatpush.msra.mxu0 %v931
      %1048 = vmatmul.f32.gmra.mxu0 %v937
      %v1049 = vpop.f32.mrf.mxu0
      %v1050 = vadd.f32 0.0, %v1049
      %1051 = vmatmul.f32.gmra.mxu0 %v940
      %v1052 = vpop.f32.mrf.mxu0
      %v1053 = vadd.f32 0.0, %v1052
      %1054 = vmatmul.f32.gmra.mxu0 %v943
      %v1055 = vpop.f32.mrf.mxu0
      %v1056 = vadd.f32 0.0, %v1055
      %1057 = vmatmul.f32.gmra.mxu0 %v946
      %v1058 = vpop.f32.mrf.mxu0
      %v1059 = vadd.f32 0.0, %v1058
      %1060 = vmatmul.f32.gmra.mxu0 %v949
      %v1061 = vpop.f32.mrf.mxu0
      %v1062 = vadd.f32 0.0, %v1061
      %1063 = vmatmul.f32.gmra.mxu0 %v952
      %v1064 = vpop.f32.mrf.mxu0
      %v1065 = vadd.f32 0.0, %v1064
      %1066 = vmatmul.f32.gmra.mxu0 %v955
      %v1067 = vpop.f32.mrf.mxu0
      %v1068 = vadd.f32 0.0, %v1067
      %1069 = vmatmul.f32.gmra.mxu0 %v958
      %v1070 = vpop.f32.mrf.mxu0
      %v1071 = vadd.f32 0.0, %v1070
      %1072 = vmatmul.f32.gmra.mxu0 %v961
      %v1073 = vpop.f32.mrf.mxu0
      %v1074 = vadd.f32 0.0, %v1073
      %1075 = vmatmul.f32.gmra.mxu0 %v964
      %v1076 = vpop.f32.mrf.mxu0
      %v1077 = vadd.f32 0.0, %v1076
      %1078 = vmatmul.f32.gmra.mxu0 %v967
      %v1079 = vpop.f32.mrf.mxu0
      %v1080 = vadd.f32 0.0, %v1079
      %1081 = vmatmul.f32.gmra.mxu0 %v970
      %v1082 = vpop.f32.mrf.mxu0
      %v1083 = vadd.f32 0.0, %v1082
      %1084 = vmatmul.f32.gmra.mxu0 %v973
      %v1085 = vpop.f32.mrf.mxu0
      %v1086 = vadd.f32 0.0, %v1085
      %1087 = vmatmul.f32.gmra.mxu0 %v976
      %v1088 = vpop.f32.mrf.mxu0
      %v1089 = vadd.f32 0.0, %v1088
      %1090 = vmatmul.f32.gmra.mxu0 %v979
      %v1091 = vpop.f32.mrf.mxu0
      %v1092 = vadd.f32 0.0, %v1091
      %1093 = vmatmul.f32.gmra.mxu0 %v982
      %v1094 = vpop.f32.mrf.mxu0
      %v1095 = vadd.f32 0.0, %v1094
      %1096 = vmatmul.f32.gmra.mxu0 %v985
      %v1097 = vpop.f32.mrf.mxu0
      %v1098 = vadd.f32 0.0, %v1097
      %1099 = vmatmul.f32.gmra.mxu0 %v988
      %v1100 = vpop.f32.mrf.mxu0
      %v1101 = vadd.f32 0.0, %v1100
      %1102 = vmatmul.f32.gmra.mxu0 %v991
      %v1103 = vpop.f32.mrf.mxu0
      %v1104 = vadd.f32 0.0, %v1103
      %1105 = vmatmul.f32.gmra.mxu0 %v994
      %v1106 = vpop.f32.mrf.mxu0
      %v1107 = vadd.f32 0.0, %v1106
      %1108 = vmatmul.f32.gmra.mxu0 %v997
      %v1109 = vpop.f32.mrf.mxu0
      %v1110 = vadd.f32 0.0, %v1109
      %1111 = vmatmul.f32.gmra.mxu0 %v1000
      %v1112 = vpop.f32.mrf.mxu0
      %v1113 = vadd.f32 0.0, %v1112
      %1114 = vmatmul.f32.gmra.mxu0 %v1003
      %v1115 = vpop.f32.mrf.mxu0
      %v1116 = vadd.f32 0.0, %v1115
      %1117 = vmatmul.f32.gmra.mxu0 %v1006
      %v1118 = vpop.f32.mrf.mxu0
      %v1119 = vadd.f32 0.0, %v1118
      %1120 = vmatmul.f32.gmra.mxu0 %v1009
      %v1121 = vpop.f32.mrf.mxu0
      %v1122 = vadd.f32 0.0, %v1121
      %1123 = vmatmul.f32.gmra.mxu0 %v1012
      %v1124 = vpop.f32.mrf.mxu0
      %v1125 = vadd.f32 0.0, %v1124
      %1126 = vmatmul.f32.gmra.mxu0 %v1015
      %v1127 = vpop.f32.mrf.mxu0
      %v1128 = vadd.f32 0.0, %v1127
      %1129 = vmatmul.f32.gmra.mxu0 %v1018
      %v1130 = vpop.f32.mrf.mxu0
      %v1131 = vadd.f32 0.0, %v1130
      %1132 = vmatmul.f32.gmra.mxu0 %v1021
      %v1133 = vpop.f32.mrf.mxu0
      %v1134 = vadd.f32 0.0, %v1133
      %1135 = vmatmul.f32.gmra.mxu0 %v1024
      %v1136 = vpop.f32.mrf.mxu0
      %v1137 = vadd.f32 0.0, %v1136
      %1138 = vmatmul.f32.gmra.mxu0 %v1027
      %v1139 = vpop.f32.mrf.mxu0
      %v1140 = vadd.f32 0.0, %v1139
      %1141 = vmatmul.f32.gmra.mxu0 %v1030
      %v1142 = vpop.f32.mrf.mxu0
      %v1143 = vadd.f32 0.0, %v1142
      %1144 = vdwg.mxu0
      %1145 = vmatpush.msra.mxu0 0.0
      %1146 = vmatpush.msra.mxu0 0.0
      %1147 = vmatpush.msra.mxu0 0.0
      %1148 = vmatpush.msra.mxu0 0.0
      %1149 = vmatpush.msra.mxu0 0.0
      %1150 = vmatpush.msra.mxu0 0.0
      %1151 = vmatpush.msra.mxu0 0.0
      %1152 = vmatpush.msra.mxu0 0.0
      %1153 = vmatpush.msra.mxu0 0.0
      %1154 = vmatpush.msra.mxu0 0.0
      %1155 = vmatpush.msra.mxu0 0.0
      %1156 = vmatpush.msra.mxu0 0.0
      %1157 = vmatpush.msra.mxu0 0.0
      %1158 = vmatpush.msra.mxu0 0.0
      %1159 = vmatpush.msra.mxu0 %v934
      %1160 = vmatpush.msra.mxu0 %v932
      %1161 = vmatmul.f32.gmra.mxu0 %v937
      %v1162 = vpop.f32.mrf.mxu0
      %v1163 = vadd.f32 0.0, %v1162
      %1164 = vmatmul.f32.gmra.mxu0 %v940
      %v1165 = vpop.f32.mrf.mxu0
      %v1166 = vadd.f32 0.0, %v1165
      %1167 = vmatmul.f32.gmra.mxu0 %v943
      %v1168 = vpop.f32.mrf.mxu0
      %v1169 = vadd.f32 0.0, %v1168
      %1170 = vmatmul.f32.gmra.mxu0 %v946
      %v1171 = vpop.f32.mrf.mxu0
      %v1172 = vadd.f32 0.0, %v1171
      %1173 = vmatmul.f32.gmra.mxu0 %v949
      %v1174 = vpop.f32.mrf.mxu0
      %v1175 = vadd.f32 0.0, %v1174
      %1176 = vmatmul.f32.gmra.mxu0 %v952
      %v1177 = vpop.f32.mrf.mxu0
      %v1178 = vadd.f32 0.0, %v1177
      %1179 = vmatmul.f32.gmra.mxu0 %v955
      %v1180 = vpop.f32.mrf.mxu0
      %v1181 = vadd.f32 0.0, %v1180
      %1182 = vmatmul.f32.gmra.mxu0 %v958
      %v1183 = vpop.f32.mrf.mxu0
      %v1184 = vadd.f32 0.0, %v1183
      %1185 = vmatmul.f32.gmra.mxu0 %v961
      %v1186 = vpop.f32.mrf.mxu0
      %v1187 = vadd.f32 0.0, %v1186
      %1188 = vmatmul.f32.gmra.mxu0 %v964
      %v1189 = vpop.f32.mrf.mxu0
      %v1190 = vadd.f32 0.0, %v1189
      %1191 = vmatmul.f32.gmra.mxu0 %v967
      %v1192 = vpop.f32.mrf.mxu0
      %v1193 = vadd.f32 0.0, %v1192
      %1194 = vmatmul.f32.gmra.mxu0 %v970
      %v1195 = vpop.f32.mrf.mxu0
      %v1196 = vadd.f32 0.0, %v1195
      %1197 = vmatmul.f32.gmra.mxu0 %v973
      %v1198 = vpop.f32.mrf.mxu0
      %v1199 = vadd.f32 0.0, %v1198
      %1200 = vmatmul.f32.gmra.mxu0 %v976
      %v1201 = vpop.f32.mrf.mxu0
      %v1202 = vadd.f32 0.0, %v1201
      %1203 = vmatmul.f32.gmra.mxu0 %v979
      %v1204 = vpop.f32.mrf.mxu0
      %v1205 = vadd.f32 0.0, %v1204
      %1206 = vmatmul.f32.gmra.mxu0 %v982
      %v1207 = vpop.f32.mrf.mxu0
      %v1208 = vadd.f32 0.0, %v1207
      %1209 = vmatmul.f32.gmra.mxu0 %v985
      %v1210 = vpop.f32.mrf.mxu0
      %v1211 = vadd.f32 0.0, %v1210
      %1212 = vmatmul.f32.gmra.mxu0 %v988
      %v1213 = vpop.f32.mrf.mxu0
      %v1214 = vadd.f32 0.0, %v1213
      %1215 = vmatmul.f32.gmra.mxu0 %v991
      %v1216 = vpop.f32.mrf.mxu0
      %v1217 = vadd.f32 0.0, %v1216
      %1218 = vmatmul.f32.gmra.mxu0 %v994
      %v1219 = vpop.f32.mrf.mxu0
      %v1220 = vadd.f32 0.0, %v1219
      %1221 = vmatmul.f32.gmra.mxu0 %v997
      %v1222 = vpop.f32.mrf.mxu0
      %v1223 = vadd.f32 0.0, %v1222
      %1224 = vmatmul.f32.gmra.mxu0 %v1000
      %v1225 = vpop.f32.mrf.mxu0
      %v1226 = vadd.f32 0.0, %v1225
      %1227 = vmatmul.f32.gmra.mxu0 %v1003
      %v1228 = vpop.f32.mrf.mxu0
      %v1229 = vadd.f32 0.0, %v1228
      %1230 = vmatmul.f32.gmra.mxu0 %v1006
      %v1231 = vpop.f32.mrf.mxu0
      %v1232 = vadd.f32 0.0, %v1231
      %1233 = vmatmul.f32.gmra.mxu0 %v1009
      %v1234 = vpop.f32.mrf.mxu0
      %v1235 = vadd.f32 0.0, %v1234
      %1236 = vmatmul.f32.gmra.mxu0 %v1012
      %v1237 = vpop.f32.mrf.mxu0
      %v1238 = vadd.f32 0.0, %v1237
      %1239 = vmatmul.f32.gmra.mxu0 %v1015
      %v1240 = vpop.f32.mrf.mxu0
      %v1241 = vadd.f32 0.0, %v1240
      %1242 = vmatmul.f32.gmra.mxu0 %v1018
      %v1243 = vpop.f32.mrf.mxu0
      %v1244 = vadd.f32 0.0, %v1243
      %1245 = vmatmul.f32.gmra.mxu0 %v1021
      %v1246 = vpop.f32.mrf.mxu0
      %v1247 = vadd.f32 0.0, %v1246
      %1248 = vmatmul.f32.gmra.mxu0 %v1024
      %v1249 = vpop.f32.mrf.mxu0
      %v1250 = vadd.f32 0.0, %v1249
      %1251 = vmatmul.f32.gmra.mxu0 %v1027
      %v1252 = vpop.f32.mrf.mxu0
      %v1253 = vadd.f32 0.0, %v1252
      %1254 = vmatmul.f32.gmra.mxu0 %v1030
      %v1255 = vpop.f32.mrf.mxu0
      %v1256 = vadd.f32 0.0, %v1255
      %1257 = vdwg.mxu0
      %v1258 = vadd.f32 %v835, %v1050
      %v1259 = vadd.f32 %v836, %v1163
      %v1260 = vadd.f32 %v837, %v1053
      %v1261 = vadd.f32 %v838, %v1166
      %v1262 = vadd.f32 %v839, %v1056
      %v1263 = vadd.f32 %v840, %v1169
      %v1264 = vadd.f32 %v841, %v1059
      %v1265 = vadd.f32 %v842, %v1172
      %v1266 = vadd.f32 %v843, %v1062
      %v1267 = vadd.f32 %v844, %v1175
      %v1268 = vadd.f32 %v845, %v1065
      %v1269 = vadd.f32 %v846, %v1178
      %v1270 = vadd.f32 %v847, %v1068
      %v1271 = vadd.f32 %v848, %v1181
      %v1272 = vadd.f32 %v849, %v1071
      %v1273 = vadd.f32 %v850, %v1184
      %v1274 = vadd.f32 %v851, %v1074
      %v1275 = vadd.f32 %v852, %v1187
      %v1276 = vadd.f32 %v853, %v1077
      %v1277 = vadd.f32 %v854, %v1190
      %v1278 = vadd.f32 %v855, %v1080
      %v1279 = vadd.f32 %v856, %v1193
      %v1280 = vadd.f32 %v857, %v1083
      %v1281 = vadd.f32 %v858, %v1196
      %v1282 = vadd.f32 %v859, %v1086
      %v1283 = vadd.f32 %v860, %v1199
      %v1284 = vadd.f32 %v861, %v1089
      %v1285 = vadd.f32 %v862, %v1202
      %v1286 = vadd.f32 %v863, %v1092
      %v1287 = vadd.f32 %v864, %v1205
      %v1288 = vadd.f32 %v865, %v1095
      %v1289 = vadd.f32 %v866, %v1208
      %v1290 = vadd.f32 %v867, %v1098
      %v1291 = vadd.f32 %v868, %v1211
      %v1292 = vadd.f32 %v869, %v1101
      %v1293 = vadd.f32 %v870, %v1214
      %v1294 = vadd.f32 %v871, %v1104
      %v1295 = vadd.f32 %v872, %v1217
      %v1296 = vadd.f32 %v873, %v1107
      %v1297 = vadd.f32 %v874, %v1220
      %v1298 = vadd.f32 %v875, %v1110
      %v1299 = vadd.f32 %v876, %v1223
      %v1300 = vadd.f32 %v877, %v1113
      %v1301 = vadd.f32 %v878, %v1226
      %v1302 = vadd.f32 %v879, %v1116
      %v1303 = vadd.f32 %v880, %v1229
      %v1304 = vadd.f32 %v881, %v1119
      %v1305 = vadd.f32 %v882, %v1232
      %v1306 = vadd.f32 %v883, %v1122
      %v1307 = vadd.f32 %v884, %v1235
      %v1308 = vadd.f32 %v885, %v1125
      %v1309 = vadd.f32 %v886, %v1238
      %v1310 = vadd.f32 %v887, %v1128
      %v1311 = vadd.f32 %v888, %v1241
      %v1312 = vadd.f32 %v889, %v1131
      %v1313 = vadd.f32 %v890, %v1244
      %v1314 = vadd.f32 %v891, %v1134
      %v1315 = vadd.f32 %v892, %v1247
      %v1316 = vadd.f32 %v893, %v1137
      %v1317 = vadd.f32 %v894, %v1250
      %v1318 = vadd.f32 %v895, %v1140
      %v1319 = vadd.f32 %v896, %v1253
      %v1320 = vadd.f32 %v897, %v1143
      %v1321 = vadd.f32 %v898, %v1256
      %v1322 = vld [vmem:[%s5] sm:$0xff]
      %v1323 = vld [vmem:[%s5 + $0x8] sm:$0xff]
      %v1324 = vld [vmem:[%s5 + $0x10] sm:$0xff]
      %v1325 = vld [vmem:[%s5 + $0x18] sm:$0xff]
      %v1326 = vld [vmem:[%s5 + $0x20] sm:$0xff]
      %v1327 = vld [vmem:[%s5 + $0x28] sm:$0xff]
      %v1328 = vld [vmem:[%s5 + $0x30] sm:$0xff]
      %v1329 = vld [vmem:[%s5 + $0x38] sm:$0xff]
      %v1330 = vld [vmem:[%s5 + $0x40] sm:$0xff]
      %v1331 = vld [vmem:[%s5 + $0x48] sm:$0xff]
      %v1332 = vld [vmem:[%s5 + $0x50] sm:$0xff]
      %v1333 = vld [vmem:[%s5 + $0x58] sm:$0xff]
      %v1334 = vld [vmem:[%s5 + $0x60] sm:$0xff]
      %v1335 = vld [vmem:[%s5 + $0x68] sm:$0xff]
      %v1336 = vld [vmem:[%s5 + $0x70] sm:$0xff]
      %v1337 = vld [vmem:[%s5 + $0x78] sm:$0xff]
      %v1338 = vld [vmem:[%s5 + $0x80] sm:$0xff]
      %v1339 = vld [vmem:[%s5 + $0x88] sm:$0xff]
      %v1340 = vld [vmem:[%s5 + $0x90] sm:$0xff]
      %v1341 = vld [vmem:[%s5 + $0x98] sm:$0xff]
      %v1342 = vld [vmem:[%s5 + $0xa0] sm:$0xff]
      %v1343 = vld [vmem:[%s5 + $0xa8] sm:$0xff]
      %v1344 = vld [vmem:[%s5 + $0xb0] sm:$0xff]
      %v1345 = vld [vmem:[%s5 + $0xb8] sm:$0xff]
      %v1346 = vld [vmem:[%s5 + $0xc0] sm:$0xff]
      %v1347 = vld [vmem:[%s5 + $0xc8] sm:$0xff]
      %v1348 = vld [vmem:[%s5 + $0xd0] sm:$0xff]
      %v1349 = vld [vmem:[%s5 + $0xd8] sm:$0xff]
      %v1350 = vld [vmem:[%s5 + $0xe0] sm:$0xff]
      %v1351 = vld [vmem:[%s5 + $0xe8] sm:$0xff]
      %v1352 = vld [vmem:[%s5 + $0xf0] sm:$0xff]
      %v1353 = vld [vmem:[%s5 + $0xf8] sm:$0xff]
      %v1354 = vld [vmem:[%s5 + $0x100] sm:$0xff]
      %v1355 = vld [vmem:[%s5 + $0x108] sm:$0xff]
      %v1356 = vld [vmem:[%s5 + $0x110] sm:$0xff]
      %v1357 = vld [vmem:[%s5 + $0x118] sm:$0xff]
      %v1358 = vld [vmem:[%s5 + $0x120] sm:$0xff]
      %v1359 = vld [vmem:[%s5 + $0x128] sm:$0xff]
      %v1360 = vld [vmem:[%s5 + $0x130] sm:$0xff]
      %v1361 = vld [vmem:[%s5 + $0x138] sm:$0xff]
      %v1362 = vld [vmem:[%s5 + $0x140] sm:$0xff]
      %v1363 = vld [vmem:[%s5 + $0x148] sm:$0xff]
      %v1364 = vld [vmem:[%s5 + $0x150] sm:$0xff]
      %v1365 = vld [vmem:[%s5 + $0x158] sm:$0xff]
      %v1366 = vld [vmem:[%s5 + $0x160] sm:$0xff]
      %v1367 = vld [vmem:[%s5 + $0x168] sm:$0xff]
      %v1368 = vld [vmem:[%s5 + $0x170] sm:$0xff]
      %v1369 = vld [vmem:[%s5 + $0x178] sm:$0xff]
      %v1370 = vld [vmem:[%s5 + $0x180] sm:$0xff]
      %v1371 = vld [vmem:[%s5 + $0x188] sm:$0xff]
      %v1372 = vld [vmem:[%s5 + $0x190] sm:$0xff]
      %v1373 = vld [vmem:[%s5 + $0x198] sm:$0xff]
      %v1374 = vld [vmem:[%s5 + $0x1a0] sm:$0xff]
      %v1375 = vld [vmem:[%s5 + $0x1a8] sm:$0xff]
      %v1376 = vld [vmem:[%s5 + $0x1b0] sm:$0xff]
      %v1377 = vld [vmem:[%s5 + $0x1b8] sm:$0xff]
      %v1378 = vld [vmem:[%s5 + $0x1c0] sm:$0xff]
      %v1379 = vld [vmem:[%s5 + $0x1c8] sm:$0xff]
      %v1380 = vld [vmem:[%s5 + $0x1d0] sm:$0xff]
      %v1381 = vld [vmem:[%s5 + $0x1d8] sm:$0xff]
      %v1382 = vld [vmem:[%s5 + $0x1e0] sm:$0xff]
      %v1383 = vld [vmem:[%s5 + $0x1e8] sm:$0xff]
      %v1384 = vld [vmem:[%s5 + $0x1f0] sm:$0xff]
      %v1385 = vld [vmem:[%s5 + $0x1f8] sm:$0xff]
      %v1386 = vld [vmem:[%s6] sm:$0xff]
      %v1387 = vld [vmem:[%s6 + $0x8] sm:$0xff]
      %v1388 = vld [vmem:[%s6 + $0x10] sm:$0xff]
      %v1389 = vld [vmem:[%s6 + $0x18] sm:$0xff]
      %v1390 = vld [vmem:[%s6 + $0x20] sm:$0xff]
      %v1391 = vld [vmem:[%s6 + $0x28] sm:$0xff]
      %v1392 = vld [vmem:[%s6 + $0x30] sm:$0xff]
      %v1393 = vld [vmem:[%s6 + $0x38] sm:$0xff]
      %v1394 = vld [vmem:[%s6 + $0x40] sm:$0xff]
      %v1395 = vld [vmem:[%s6 + $0x48] sm:$0xff]
      %v1396 = vld [vmem:[%s6 + $0x50] sm:$0xff]
      %v1397 = vld [vmem:[%s6 + $0x58] sm:$0xff]
      %v1398 = vld [vmem:[%s6 + $0x60] sm:$0xff]
      %v1399 = vld [vmem:[%s6 + $0x68] sm:$0xff]
      %v1400 = vld [vmem:[%s6 + $0x70] sm:$0xff]
      %v1401 = vld [vmem:[%s6 + $0x78] sm:$0xff]
      %v1402 = vld [vmem:[%s6 + $0x80] sm:$0xff]
      %v1403 = vld [vmem:[%s6 + $0x88] sm:$0xff]
      %v1404 = vld [vmem:[%s6 + $0x90] sm:$0xff]
      %v1405 = vld [vmem:[%s6 + $0x98] sm:$0xff]
      %v1406 = vld [vmem:[%s6 + $0xa0] sm:$0xff]
      %v1407 = vld [vmem:[%s6 + $0xa8] sm:$0xff]
      %v1408 = vld [vmem:[%s6 + $0xb0] sm:$0xff]
      %v1409 = vld [vmem:[%s6 + $0xb8] sm:$0xff]
      %v1410 = vld [vmem:[%s6 + $0xc0] sm:$0xff]
      %v1411 = vld [vmem:[%s6 + $0xc8] sm:$0xff]
      %v1412 = vld [vmem:[%s6 + $0xd0] sm:$0xff]
      %v1413 = vld [vmem:[%s6 + $0xd8] sm:$0xff]
      %v1414 = vld [vmem:[%s6 + $0xe0] sm:$0xff]
      %v1415 = vld [vmem:[%s6 + $0xe8] sm:$0xff]
      %v1416 = vld [vmem:[%s6 + $0xf0] sm:$0xff]
      %v1417 = vld [vmem:[%s6 + $0xf8] sm:$0xff]
      %1419 = vset.pattern.permute.xlu0 0
      %1420 = vperm.xlu0 %1419, %v1386
      %v1421 = vpop.permute.xlu0 %1420
      %1424 = vset.pattern.permute.xlu0 0
      %1425 = vperm.xlu0 %1424, %v1387
      %v1426 = vpop.permute.xlu0 %1425
      %1429 = vset.pattern.permute.xlu0 0
      %1430 = vperm.xlu0 %1429, %v1388
      %v1431 = vpop.permute.xlu0 %1430
      %1434 = vset.pattern.permute.xlu0 0
      %1435 = vperm.xlu0 %1434, %v1389
      %v1436 = vpop.permute.xlu0 %1435
      %1439 = vset.pattern.permute.xlu0 0
      %1440 = vperm.xlu0 %1439, %v1390
      %v1441 = vpop.permute.xlu0 %1440
      %1444 = vset.pattern.permute.xlu0 0
      %1445 = vperm.xlu0 %1444, %v1391
      %v1446 = vpop.permute.xlu0 %1445
      %1449 = vset.pattern.permute.xlu0 0
      %1450 = vperm.xlu0 %1449, %v1392
      %v1451 = vpop.permute.xlu0 %1450
      %1454 = vset.pattern.permute.xlu0 0
      %1455 = vperm.xlu0 %1454, %v1393
      %v1456 = vpop.permute.xlu0 %1455
      %1459 = vset.pattern.permute.xlu0 0
      %1460 = vperm.xlu0 %1459, %v1394
      %v1461 = vpop.permute.xlu0 %1460
      %1464 = vset.pattern.permute.xlu0 0
      %1465 = vperm.xlu0 %1464, %v1395
      %v1466 = vpop.permute.xlu0 %1465
      %1469 = vset.pattern.permute.xlu0 0
      %1470 = vperm.xlu0 %1469, %v1396
      %v1471 = vpop.permute.xlu0 %1470
      %1474 = vset.pattern.permute.xlu0 0
      %1475 = vperm.xlu0 %1474, %v1397
      %v1476 = vpop.permute.xlu0 %1475
      %1479 = vset.pattern.permute.xlu0 0
      %1480 = vperm.xlu0 %1479, %v1398
      %v1481 = vpop.permute.xlu0 %1480
      %1484 = vset.pattern.permute.xlu0 0
      %1485 = vperm.xlu0 %1484, %v1399
      %v1486 = vpop.permute.xlu0 %1485
      %1489 = vset.pattern.permute.xlu0 0
      %1490 = vperm.xlu0 %1489, %v1400
      %v1491 = vpop.permute.xlu0 %1490
      %1494 = vset.pattern.permute.xlu0 0
      %1495 = vperm.xlu0 %1494, %v1401
      %v1496 = vpop.permute.xlu0 %1495
      %1499 = vset.pattern.permute.xlu0 0
      %1500 = vperm.xlu0 %1499, %v1402
      %v1501 = vpop.permute.xlu0 %1500
      %1504 = vset.pattern.permute.xlu0 0
      %1505 = vperm.xlu0 %1504, %v1403
      %v1506 = vpop.permute.xlu0 %1505
      %1509 = vset.pattern.permute.xlu0 0
      %1510 = vperm.xlu0 %1509, %v1404
      %v1511 = vpop.permute.xlu0 %1510
      %1514 = vset.pattern.permute.xlu0 0
      %1515 = vperm.xlu0 %1514, %v1405
      %v1516 = vpop.permute.xlu0 %1515
      %1519 = vset.pattern.permute.xlu0 0
      %1520 = vperm.xlu0 %1519, %v1406
      %v1521 = vpop.permute.xlu0 %1520
      %1524 = vset.pattern.permute.xlu0 0
      %1525 = vperm.xlu0 %1524, %v1407
      %v1526 = vpop.permute.xlu0 %1525
      %1529 = vset.pattern.permute.xlu0 0
      %1530 = vperm.xlu0 %1529, %v1408
      %v1531 = vpop.permute.xlu0 %1530
      %1534 = vset.pattern.permute.xlu0 0
      %1535 = vperm.xlu0 %1534, %v1409
      %v1536 = vpop.permute.xlu0 %1535
      %1539 = vset.pattern.permute.xlu0 0
      %1540 = vperm.xlu0 %1539, %v1410
      %v1541 = vpop.permute.xlu0 %1540
      %1544 = vset.pattern.permute.xlu0 0
      %1545 = vperm.xlu0 %1544, %v1411
      %v1546 = vpop.permute.xlu0 %1545
      %1549 = vset.pattern.permute.xlu0 0
      %1550 = vperm.xlu0 %1549, %v1412
      %v1551 = vpop.permute.xlu0 %1550
      %1554 = vset.pattern.permute.xlu0 0
      %1555 = vperm.xlu0 %1554, %v1413
      %v1556 = vpop.permute.xlu0 %1555
      %1559 = vset.pattern.permute.xlu0 0
      %1560 = vperm.xlu0 %1559, %v1414
      %v1561 = vpop.permute.xlu0 %1560
      %1564 = vset.pattern.permute.xlu0 0
      %1565 = vperm.xlu0 %1564, %v1415
      %v1566 = vpop.permute.xlu0 %1565
      %1569 = vset.pattern.permute.xlu0 0
      %1570 = vperm.xlu0 %1569, %v1416
      %v1571 = vpop.permute.xlu0 %1570
      %1574 = vset.pattern.permute.xlu0 0
      %1575 = vperm.xlu0 %1574, %v1417
      %v1576 = vpop.permute.xlu0 %1575
      %1578 = vmatpush.msra.mxu0 %v1288
      %1579 = vmatpush.msra.mxu0 %v1286
      %1580 = vmatpush.msra.mxu0 %v1284
      %1581 = vmatpush.msra.mxu0 %v1282
      %1582 = vmatpush.msra.mxu0 %v1280
      %1583 = vmatpush.msra.mxu0 %v1278
      %1584 = vmatpush.msra.mxu0 %v1276
      %1585 = vmatpush.msra.mxu0 %v1274
      %1586 = vmatpush.msra.mxu0 %v1272
      %1587 = vmatpush.msra.mxu0 %v1270
      %1588 = vmatpush.msra.mxu0 %v1268
      %1589 = vmatpush.msra.mxu0 %v1266
      %1590 = vmatpush.msra.mxu0 %v1264
      %1591 = vmatpush.msra.mxu0 %v1262
      %1592 = vmatpush.msra.mxu0 %v1260
      %1593 = vmatpush.msra.mxu0 %v1258
      %1594 = vmatmul.f32.gmra.mxu0 %v1322
      %v1595 = vpop.f32.mrf.mxu0
      %v1596 = vadd.f32 %v1421, %v1595
      %1597 = vmatmul.f32.gmra.mxu0 %v1324
      %v1598 = vpop.f32.mrf.mxu0
      %v1599 = vadd.f32 %v1426, %v1598
      %1600 = vmatmul.f32.gmra.mxu0 %v1326
      %v1601 = vpop.f32.mrf.mxu0
      %v1602 = vadd.f32 %v1431, %v1601
      %1603 = vmatmul.f32.gmra.mxu0 %v1328
      %v1604 = vpop.f32.mrf.mxu0
      %v1605 = vadd.f32 %v1436, %v1604
      %1606 = vmatmul.f32.gmra.mxu0 %v1330
      %v1607 = vpop.f32.mrf.mxu0
      %v1608 = vadd.f32 %v1441, %v1607
      %1609 = vmatmul.f32.gmra.mxu0 %v1332
      %v1610 = vpop.f32.mrf.mxu0
      %v1611 = vadd.f32 %v1446, %v1610
      %1612 = vmatmul.f32.gmra.mxu0 %v1334
      %v1613 = vpop.f32.mrf.mxu0
      %v1614 = vadd.f32 %v1451, %v1613
      %1615 = vmatmul.f32.gmra.mxu0 %v1336
      %v1616 = vpop.f32.mrf.mxu0
      %v1617 = vadd.f32 %v1456, %v1616
      %1618 = vmatmul.f32.gmra.mxu0 %v1338
      %v1619 = vpop.f32.mrf.mxu0
      %v1620 = vadd.f32 %v1461, %v1619
      %1621 = vmatmul.f32.gmra.mxu0 %v1340
      %v1622 = vpop.f32.mrf.mxu0
      %v1623 = vadd.f32 %v1466, %v1622
      %1624 = vmatmul.f32.gmra.mxu0 %v1342
      %v1625 = vpop.f32.mrf.mxu0
      %v1626 = vadd.f32 %v1471, %v1625
      %1627 = vmatmul.f32.gmra.mxu0 %v1344
      %v1628 = vpop.f32.mrf.mxu0
      %v1629 = vadd.f32 %v1476, %v1628
      %1630 = vmatmul.f32.gmra.mxu0 %v1346
      %v1631 = vpop.f32.mrf.mxu0
      %v1632 = vadd.f32 %v1481, %v1631
      %1633 = vmatmul.f32.gmra.mxu0 %v1348
      %v1634 = vpop.f32.mrf.mxu0
      %v1635 = vadd.f32 %v1486, %v1634
      %1636 = vmatmul.f32.gmra.mxu0 %v1350
      %v1637 = vpop.f32.mrf.mxu0
      %v1638 = vadd.f32 %v1491, %v1637
      %1639 = vmatmul.f32.gmra.mxu0 %v1352
      %v1640 = vpop.f32.mrf.mxu0
      %v1641 = vadd.f32 %v1496, %v1640
      %1642 = vmatmul.f32.gmra.mxu0 %v1354
      %v1643 = vpop.f32.mrf.mxu0
      %v1644 = vadd.f32 %v1501, %v1643
      %1645 = vmatmul.f32.gmra.mxu0 %v1356
      %v1646 = vpop.f32.mrf.mxu0
      %v1647 = vadd.f32 %v1506, %v1646
      %1648 = vmatmul.f32.gmra.mxu0 %v1358
      %v1649 = vpop.f32.mrf.mxu0
      %v1650 = vadd.f32 %v1511, %v1649
      %1651 = vmatmul.f32.gmra.mxu0 %v1360
      %v1652 = vpop.f32.mrf.mxu0
      %v1653 = vadd.f32 %v1516, %v1652
      %1654 = vmatmul.f32.gmra.mxu0 %v1362
      %v1655 = vpop.f32.mrf.mxu0
      %v1656 = vadd.f32 %v1521, %v1655
      %1657 = vmatmul.f32.gmra.mxu0 %v1364
      %v1658 = vpop.f32.mrf.mxu0
      %v1659 = vadd.f32 %v1526, %v1658
      %1660 = vmatmul.f32.gmra.mxu0 %v1366
      %v1661 = vpop.f32.mrf.mxu0
      %v1662 = vadd.f32 %v1531, %v1661
      %1663 = vmatmul.f32.gmra.mxu0 %v1368
      %v1664 = vpop.f32.mrf.mxu0
      %v1665 = vadd.f32 %v1536, %v1664
      %1666 = vmatmul.f32.gmra.mxu0 %v1370
      %v1667 = vpop.f32.mrf.mxu0
      %v1668 = vadd.f32 %v1541, %v1667
      %1669 = vmatmul.f32.gmra.mxu0 %v1372
      %v1670 = vpop.f32.mrf.mxu0
      %v1671 = vadd.f32 %v1546, %v1670
      %1672 = vmatmul.f32.gmra.mxu0 %v1374
      %v1673 = vpop.f32.mrf.mxu0
      %v1674 = vadd.f32 %v1551, %v1673
      %1675 = vmatmul.f32.gmra.mxu0 %v1376
      %v1676 = vpop.f32.mrf.mxu0
      %v1677 = vadd.f32 %v1556, %v1676
      %1678 = vmatmul.f32.gmra.mxu0 %v1378
      %v1679 = vpop.f32.mrf.mxu0
      %v1680 = vadd.f32 %v1561, %v1679
      %1681 = vmatmul.f32.gmra.mxu0 %v1380
      %v1682 = vpop.f32.mrf.mxu0
      %v1683 = vadd.f32 %v1566, %v1682
      %1684 = vmatmul.f32.gmra.mxu0 %v1382
      %v1685 = vpop.f32.mrf.mxu0
      %v1686 = vadd.f32 %v1571, %v1685
      %1687 = vmatmul.f32.gmra.mxu0 %v1384
      %v1688 = vpop.f32.mrf.mxu0
      %v1689 = vadd.f32 %v1576, %v1688
      %1690 = vdwg.mxu0
      %1691 = vmatpush.msra.mxu0 %v1320
      %1692 = vmatpush.msra.mxu0 %v1318
      %1693 = vmatpush.msra.mxu0 %v1316
      %1694 = vmatpush.msra.mxu0 %v1314
      %1695 = vmatpush.msra.mxu0 %v1312
      %1696 = vmatpush.msra.mxu0 %v1310
      %1697 = vmatpush.msra.mxu0 %v1308
      %1698 = vmatpush.msra.mxu0 %v1306
      %1699 = vmatpush.msra.mxu0 %v1304
      %1700 = vmatpush.msra.mxu0 %v1302
      %1701 = vmatpush.msra.mxu0 %v1300
      %1702 = vmatpush.msra.mxu0 %v1298
      %1703 = vmatpush.msra.mxu0 %v1296
      %1704 = vmatpush.msra.mxu0 %v1294
      %1705 = vmatpush.msra.mxu0 %v1292
      %1706 = vmatpush.msra.mxu0 %v1290
      %1707 = vmatmul.f32.gmra.mxu0 %v1323
      %v1708 = vpop.f32.mrf.mxu0
      %v1709 = vadd.f32 %v1596, %v1708
      %1710 = vmatmul.f32.gmra.mxu0 %v1325
      %v1711 = vpop.f32.mrf.mxu0
      %v1712 = vadd.f32 %v1599, %v1711
      %1713 = vmatmul.f32.gmra.mxu0 %v1327
      %v1714 = vpop.f32.mrf.mxu0
      %v1715 = vadd.f32 %v1602, %v1714
      %1716 = vmatmul.f32.gmra.mxu0 %v1329
      %v1717 = vpop.f32.mrf.mxu0
      %v1718 = vadd.f32 %v1605, %v1717
      %1719 = vmatmul.f32.gmra.mxu0 %v1331
      %v1720 = vpop.f32.mrf.mxu0
      %v1721 = vadd.f32 %v1608, %v1720
      %1722 = vmatmul.f32.gmra.mxu0 %v1333
      %v1723 = vpop.f32.mrf.mxu0
      %v1724 = vadd.f32 %v1611, %v1723
      %1725 = vmatmul.f32.gmra.mxu0 %v1335
      %v1726 = vpop.f32.mrf.mxu0
      %v1727 = vadd.f32 %v1614, %v1726
      %1728 = vmatmul.f32.gmra.mxu0 %v1337
      %v1729 = vpop.f32.mrf.mxu0
      %v1730 = vadd.f32 %v1617, %v1729
      %1731 = vmatmul.f32.gmra.mxu0 %v1339
      %v1732 = vpop.f32.mrf.mxu0
      %v1733 = vadd.f32 %v1620, %v1732
      %1734 = vmatmul.f32.gmra.mxu0 %v1341
      %v1735 = vpop.f32.mrf.mxu0
      %v1736 = vadd.f32 %v1623, %v1735
      %1737 = vmatmul.f32.gmra.mxu0 %v1343
      %v1738 = vpop.f32.mrf.mxu0
      %v1739 = vadd.f32 %v1626, %v1738
      %1740 = vmatmul.f32.gmra.mxu0 %v1345
      %v1741 = vpop.f32.mrf.mxu0
      %v1742 = vadd.f32 %v1629, %v1741
      %1743 = vmatmul.f32.gmra.mxu0 %v1347
      %v1744 = vpop.f32.mrf.mxu0
      %v1745 = vadd.f32 %v1632, %v1744
      %1746 = vmatmul.f32.gmra.mxu0 %v1349
      %v1747 = vpop.f32.mrf.mxu0
      %v1748 = vadd.f32 %v1635, %v1747
      %1749 = vmatmul.f32.gmra.mxu0 %v1351
      %v1750 = vpop.f32.mrf.mxu0
      %v1751 = vadd.f32 %v1638, %v1750
      %1752 = vmatmul.f32.gmra.mxu0 %v1353
      %v1753 = vpop.f32.mrf.mxu0
      %v1754 = vadd.f32 %v1641, %v1753
      %1755 = vmatmul.f32.gmra.mxu0 %v1355
      %v1756 = vpop.f32.mrf.mxu0
      %v1757 = vadd.f32 %v1644, %v1756
      %1758 = vmatmul.f32.gmra.mxu0 %v1357
      %v1759 = vpop.f32.mrf.mxu0
      %v1760 = vadd.f32 %v1647, %v1759
      %1761 = vmatmul.f32.gmra.mxu0 %v1359
      %v1762 = vpop.f32.mrf.mxu0
      %v1763 = vadd.f32 %v1650, %v1762
      %1764 = vmatmul.f32.gmra.mxu0 %v1361
      %v1765 = vpop.f32.mrf.mxu0
      %v1766 = vadd.f32 %v1653, %v1765
      %1767 = vmatmul.f32.gmra.mxu0 %v1363
      %v1768 = vpop.f32.mrf.mxu0
      %v1769 = vadd.f32 %v1656, %v1768
      %1770 = vmatmul.f32.gmra.mxu0 %v1365
      %v1771 = vpop.f32.mrf.mxu0
      %v1772 = vadd.f32 %v1659, %v1771
      %1773 = vmatmul.f32.gmra.mxu0 %v1367
      %v1774 = vpop.f32.mrf.mxu0
      %v1775 = vadd.f32 %v1662, %v1774
      %1776 = vmatmul.f32.gmra.mxu0 %v1369
      %v1777 = vpop.f32.mrf.mxu0
      %v1778 = vadd.f32 %v1665, %v1777
      %1779 = vmatmul.f32.gmra.mxu0 %v1371
      %v1780 = vpop.f32.mrf.mxu0
      %v1781 = vadd.f32 %v1668, %v1780
      %1782 = vmatmul.f32.gmra.mxu0 %v1373
      %v1783 = vpop.f32.mrf.mxu0
      %v1784 = vadd.f32 %v1671, %v1783
      %1785 = vmatmul.f32.gmra.mxu0 %v1375
      %v1786 = vpop.f32.mrf.mxu0
      %v1787 = vadd.f32 %v1674, %v1786
      %1788 = vmatmul.f32.gmra.mxu0 %v1377
      %v1789 = vpop.f32.mrf.mxu0
      %v1790 = vadd.f32 %v1677, %v1789
      %1791 = vmatmul.f32.gmra.mxu0 %v1379
      %v1792 = vpop.f32.mrf.mxu0
      %v1793 = vadd.f32 %v1680, %v1792
      %1794 = vmatmul.f32.gmra.mxu0 %v1381
      %v1795 = vpop.f32.mrf.mxu0
      %v1796 = vadd.f32 %v1683, %v1795
      %1797 = vmatmul.f32.gmra.mxu0 %v1383
      %v1798 = vpop.f32.mrf.mxu0
      %v1799 = vadd.f32 %v1686, %v1798
      %1800 = vmatmul.f32.gmra.mxu0 %v1385
      %v1801 = vpop.f32.mrf.mxu0
      %v1802 = vadd.f32 %v1689, %v1801
      %1803 = vdwg.mxu0
      %1804 = vmatpush.msra.mxu0 %v1289
      %1805 = vmatpush.msra.mxu0 %v1287
      %1806 = vmatpush.msra.mxu0 %v1285
      %1807 = vmatpush.msra.mxu0 %v1283
      %1808 = vmatpush.msra.mxu0 %v1281
      %1809 = vmatpush.msra.mxu0 %v1279
      %1810 = vmatpush.msra.mxu0 %v1277
      %1811 = vmatpush.msra.mxu0 %v1275
      %1812 = vmatpush.msra.mxu0 %v1273
      %1813 = vmatpush.msra.mxu0 %v1271
      %1814 = vmatpush.msra.mxu0 %v1269
      %1815 = vmatpush.msra.mxu0 %v1267
      %1816 = vmatpush.msra.mxu0 %v1265
      %1817 = vmatpush.msra.mxu0 %v1263
      %1818 = vmatpush.msra.mxu0 %v1261
      %1819 = vmatpush.msra.mxu0 %v1259
      %1820 = vmatmul.f32.gmra.mxu0 %v1322
      %v1821 = vpop.f32.mrf.mxu0
      %v1822 = vadd.f32 %v1421, %v1821
      %1823 = vmatmul.f32.gmra.mxu0 %v1324
      %v1824 = vpop.f32.mrf.mxu0
      %v1825 = vadd.f32 %v1426, %v1824
      %1826 = vmatmul.f32.gmra.mxu0 %v1326
      %v1827 = vpop.f32.mrf.mxu0
      %v1828 = vadd.f32 %v1431, %v1827
      %1829 = vmatmul.f32.gmra.mxu0 %v1328
      %v1830 = vpop.f32.mrf.mxu0
      %v1831 = vadd.f32 %v1436, %v1830
      %1832 = vmatmul.f32.gmra.mxu0 %v1330
      %v1833 = vpop.f32.mrf.mxu0
      %v1834 = vadd.f32 %v1441, %v1833
      %1835 = vmatmul.f32.gmra.mxu0 %v1332
      %v1836 = vpop.f32.mrf.mxu0
      %v1837 = vadd.f32 %v1446, %v1836
      %1838 = vmatmul.f32.gmra.mxu0 %v1334
      %v1839 = vpop.f32.mrf.mxu0
      %v1840 = vadd.f32 %v1451, %v1839
      %1841 = vmatmul.f32.gmra.mxu0 %v1336
      %v1842 = vpop.f32.mrf.mxu0
      %v1843 = vadd.f32 %v1456, %v1842
      %1844 = vmatmul.f32.gmra.mxu0 %v1338
      %v1845 = vpop.f32.mrf.mxu0
      %v1846 = vadd.f32 %v1461, %v1845
      %1847 = vmatmul.f32.gmra.mxu0 %v1340
      %v1848 = vpop.f32.mrf.mxu0
      %v1849 = vadd.f32 %v1466, %v1848
      %1850 = vmatmul.f32.gmra.mxu0 %v1342
      %v1851 = vpop.f32.mrf.mxu0
      %v1852 = vadd.f32 %v1471, %v1851
      %1853 = vmatmul.f32.gmra.mxu0 %v1344
      %v1854 = vpop.f32.mrf.mxu0
      %v1855 = vadd.f32 %v1476, %v1854
      %1856 = vmatmul.f32.gmra.mxu0 %v1346
      %v1857 = vpop.f32.mrf.mxu0
      %v1858 = vadd.f32 %v1481, %v1857
      %1859 = vmatmul.f32.gmra.mxu0 %v1348
      %v1860 = vpop.f32.mrf.mxu0
      %v1861 = vadd.f32 %v1486, %v1860
      %1862 = vmatmul.f32.gmra.mxu0 %v1350
      %v1863 = vpop.f32.mrf.mxu0
      %v1864 = vadd.f32 %v1491, %v1863
      %1865 = vmatmul.f32.gmra.mxu0 %v1352
      %v1866 = vpop.f32.mrf.mxu0
      %v1867 = vadd.f32 %v1496, %v1866
      %1868 = vmatmul.f32.gmra.mxu0 %v1354
      %v1869 = vpop.f32.mrf.mxu0
      %v1870 = vadd.f32 %v1501, %v1869
      %1871 = vmatmul.f32.gmra.mxu0 %v1356
      %v1872 = vpop.f32.mrf.mxu0
      %v1873 = vadd.f32 %v1506, %v1872
      %1874 = vmatmul.f32.gmra.mxu0 %v1358
      %v1875 = vpop.f32.mrf.mxu0
      %v1876 = vadd.f32 %v1511, %v1875
      %1877 = vmatmul.f32.gmra.mxu0 %v1360
      %v1878 = vpop.f32.mrf.mxu0
      %v1879 = vadd.f32 %v1516, %v1878
      %1880 = vmatmul.f32.gmra.mxu0 %v1362
      %v1881 = vpop.f32.mrf.mxu0
      %v1882 = vadd.f32 %v1521, %v1881
      %1883 = vmatmul.f32.gmra.mxu0 %v1364
      %v1884 = vpop.f32.mrf.mxu0
      %v1885 = vadd.f32 %v1526, %v1884
      %1886 = vmatmul.f32.gmra.mxu0 %v1366
      %v1887 = vpop.f32.mrf.mxu0
      %v1888 = vadd.f32 %v1531, %v1887
      %1889 = vmatmul.f32.gmra.mxu0 %v1368
      %v1890 = vpop.f32.mrf.mxu0
      %v1891 = vadd.f32 %v1536, %v1890
      %1892 = vmatmul.f32.gmra.mxu0 %v1370
      %v1893 = vpop.f32.mrf.mxu0
      %v1894 = vadd.f32 %v1541, %v1893
      %1895 = vmatmul.f32.gmra.mxu0 %v1372
      %v1896 = vpop.f32.mrf.mxu0
      %v1897 = vadd.f32 %v1546, %v1896
      %1898 = vmatmul.f32.gmra.mxu0 %v1374
      %v1899 = vpop.f32.mrf.mxu0
      %v1900 = vadd.f32 %v1551, %v1899
      %1901 = vmatmul.f32.gmra.mxu0 %v1376
      %v1902 = vpop.f32.mrf.mxu0
      %v1903 = vadd.f32 %v1556, %v1902
      %1904 = vmatmul.f32.gmra.mxu0 %v1378
      %v1905 = vpop.f32.mrf.mxu0
      %v1906 = vadd.f32 %v1561, %v1905
      %1907 = vmatmul.f32.gmra.mxu0 %v1380
      %v1908 = vpop.f32.mrf.mxu0
      %v1909 = vadd.f32 %v1566, %v1908
      %1910 = vmatmul.f32.gmra.mxu0 %v1382
      %v1911 = vpop.f32.mrf.mxu0
      %v1912 = vadd.f32 %v1571, %v1911
      %1913 = vmatmul.f32.gmra.mxu0 %v1384
      %v1914 = vpop.f32.mrf.mxu0
      %v1915 = vadd.f32 %v1576, %v1914
      %1916 = vdwg.mxu0
      %1917 = vmatpush.msra.mxu0 %v1321
      %1918 = vmatpush.msra.mxu0 %v1319
      %1919 = vmatpush.msra.mxu0 %v1317
      %1920 = vmatpush.msra.mxu0 %v1315
      %1921 = vmatpush.msra.mxu0 %v1313
      %1922 = vmatpush.msra.mxu0 %v1311
      %1923 = vmatpush.msra.mxu0 %v1309
      %1924 = vmatpush.msra.mxu0 %v1307
      %1925 = vmatpush.msra.mxu0 %v1305
      %1926 = vmatpush.msra.mxu0 %v1303
      %1927 = vmatpush.msra.mxu0 %v1301
      %1928 = vmatpush.msra.mxu0 %v1299
      %1929 = vmatpush.msra.mxu0 %v1297
      %1930 = vmatpush.msra.mxu0 %v1295
      %1931 = vmatpush.msra.mxu0 %v1293
      %1932 = vmatpush.msra.mxu0 %v1291
      %1933 = vmatmul.f32.gmra.mxu0 %v1323
      %v1934 = vpop.f32.mrf.mxu0
      %v1935 = vadd.f32 %v1822, %v1934
      %1936 = vmatmul.f32.gmra.mxu0 %v1325
      %v1937 = vpop.f32.mrf.mxu0
      %v1938 = vadd.f32 %v1825, %v1937
      %1939 = vmatmul.f32.gmra.mxu0 %v1327
      %v1940 = vpop.f32.mrf.mxu0
      %v1941 = vadd.f32 %v1828, %v1940
      %1942 = vmatmul.f32.gmra.mxu0 %v1329
      %v1943 = vpop.f32.mrf.mxu0
      %v1944 = vadd.f32 %v1831, %v1943
      %1945 = vmatmul.f32.gmra.mxu0 %v1331
      %v1946 = vpop.f32.mrf.mxu0
      %v1947 = vadd.f32 %v1834, %v1946
      %1948 = vmatmul.f32.gmra.mxu0 %v1333
      %v1949 = vpop.f32.mrf.mxu0
      %v1950 = vadd.f32 %v1837, %v1949
      %1951 = vmatmul.f32.gmra.mxu0 %v1335
      %v1952 = vpop.f32.mrf.mxu0
      %v1953 = vadd.f32 %v1840, %v1952
      %1954 = vmatmul.f32.gmra.mxu0 %v1337
      %v1955 = vpop.f32.mrf.mxu0
      %v1956 = vadd.f32 %v1843, %v1955
      %1957 = vmatmul.f32.gmra.mxu0 %v1339
      %v1958 = vpop.f32.mrf.mxu0
      %v1959 = vadd.f32 %v1846, %v1958
      %1960 = vmatmul.f32.gmra.mxu0 %v1341
      %v1961 = vpop.f32.mrf.mxu0
      %v1962 = vadd.f32 %v1849, %v1961
      %1963 = vmatmul.f32.gmra.mxu0 %v1343
      %v1964 = vpop.f32.mrf.mxu0
      %v1965 = vadd.f32 %v1852, %v1964
      %1966 = vmatmul.f32.gmra.mxu0 %v1345
      %v1967 = vpop.f32.mrf.mxu0
      %v1968 = vadd.f32 %v1855, %v1967
      %1969 = vmatmul.f32.gmra.mxu0 %v1347
      %v1970 = vpop.f32.mrf.mxu0
      %v1971 = vadd.f32 %v1858, %v1970
      %1972 = vmatmul.f32.gmra.mxu0 %v1349
      %v1973 = vpop.f32.mrf.mxu0
      %v1974 = vadd.f32 %v1861, %v1973
      %1975 = vmatmul.f32.gmra.mxu0 %v1351
      %v1976 = vpop.f32.mrf.mxu0
      %v1977 = vadd.f32 %v1864, %v1976
      %1978 = vmatmul.f32.gmra.mxu0 %v1353
      %v1979 = vpop.f32.mrf.mxu0
      %v1980 = vadd.f32 %v1867, %v1979
      %1981 = vmatmul.f32.gmra.mxu0 %v1355
      %v1982 = vpop.f32.mrf.mxu0
      %v1983 = vadd.f32 %v1870, %v1982
      %1984 = vmatmul.f32.gmra.mxu0 %v1357
      %v1985 = vpop.f32.mrf.mxu0
      %v1986 = vadd.f32 %v1873, %v1985
      %1987 = vmatmul.f32.gmra.mxu0 %v1359
      %v1988 = vpop.f32.mrf.mxu0
      %v1989 = vadd.f32 %v1876, %v1988
      %1990 = vmatmul.f32.gmra.mxu0 %v1361
      %v1991 = vpop.f32.mrf.mxu0
      %v1992 = vadd.f32 %v1879, %v1991
      %1993 = vmatmul.f32.gmra.mxu0 %v1363
      %v1994 = vpop.f32.mrf.mxu0
      %v1995 = vadd.f32 %v1882, %v1994
      %1996 = vmatmul.f32.gmra.mxu0 %v1365
      %v1997 = vpop.f32.mrf.mxu0
      %v1998 = vadd.f32 %v1885, %v1997
      %1999 = vmatmul.f32.gmra.mxu0 %v1367
      %v2000 = vpop.f32.mrf.mxu0
      %v2001 = vadd.f32 %v1888, %v2000
      %2002 = vmatmul.f32.gmra.mxu0 %v1369
      %v2003 = vpop.f32.mrf.mxu0
      %v2004 = vadd.f32 %v1891, %v2003
      %2005 = vmatmul.f32.gmra.mxu0 %v1371
      %v2006 = vpop.f32.mrf.mxu0
      %v2007 = vadd.f32 %v1894, %v2006
      %2008 = vmatmul.f32.gmra.mxu0 %v1373
      %v2009 = vpop.f32.mrf.mxu0
      %v2010 = vadd.f32 %v1897, %v2009
      %2011 = vmatmul.f32.gmra.mxu0 %v1375
      %v2012 = vpop.f32.mrf.mxu0
      %v2013 = vadd.f32 %v1900, %v2012
      %2014 = vmatmul.f32.gmra.mxu0 %v1377
      %v2015 = vpop.f32.mrf.mxu0
      %v2016 = vadd.f32 %v1903, %v2015
      %2017 = vmatmul.f32.gmra.mxu0 %v1379
      %v2018 = vpop.f32.mrf.mxu0
      %v2019 = vadd.f32 %v1906, %v2018
      %2020 = vmatmul.f32.gmra.mxu0 %v1381
      %v2021 = vpop.f32.mrf.mxu0
      %v2022 = vadd.f32 %v1909, %v2021
      %2023 = vmatmul.f32.gmra.mxu0 %v1383
      %v2024 = vpop.f32.mrf.mxu0
      %v2025 = vadd.f32 %v1912, %v2024
      %2026 = vmatmul.f32.gmra.mxu0 %v1385
      %v2027 = vpop.f32.mrf.mxu0
      %v2028 = vadd.f32 %v1915, %v2027
      %2029 = vdwg.mxu0
      %v2030 = vmax.f32 %v1709, 0.0
      %v2031 = vmax.f32 %v1935, 0.0
      %v2032 = vmax.f32 %v1712, 0.0
      %v2033 = vmax.f32 %v1938, 0.0
      %v2034 = vmax.f32 %v1715, 0.0
      %v2035 = vmax.f32 %v1941, 0.0
      %v2036 = vmax.f32 %v1718, 0.0
      %v2037 = vmax.f32 %v1944, 0.0
      %v2038 = vmax.f32 %v1721, 0.0
      %v2039 = vmax.f32 %v1947, 0.0
      %v2040 = vmax.f32 %v1724, 0.0
      %v2041 = vmax.f32 %v1950, 0.0
      %v2042 = vmax.f32 %v1727, 0.0
      %v2043 = vmax.f32 %v1953, 0.0
      %v2044 = vmax.f32 %v1730, 0.0
      %v2045 = vmax.f32 %v1956, 0.0
      %v2046 = vmax.f32 %v1733, 0.0
      %v2047 = vmax.f32 %v1959, 0.0
      %v2048 = vmax.f32 %v1736, 0.0
      %v2049 = vmax.f32 %v1962, 0.0
      %v2050 = vmax.f32 %v1739, 0.0
      %v2051 = vmax.f32 %v1965, 0.0
      %v2052 = vmax.f32 %v1742, 0.0
      %v2053 = vmax.f32 %v1968, 0.0
      %v2054 = vmax.f32 %v1745, 0.0
      %v2055 = vmax.f32 %v1971, 0.0
      %v2056 = vmax.f32 %v1748, 0.0
      %v2057 = vmax.f32 %v1974, 0.0
      %v2058 = vmax.f32 %v1751, 0.0
      %v2059 = vmax.f32 %v1977, 0.0
      %v2060 = vmax.f32 %v1754, 0.0
      %v2061 = vmax.f32 %v1980, 0.0
      %v2062 = vmax.f32 %v1757, 0.0
      %v2063 = vmax.f32 %v1983, 0.0
      %v2064 = vmax.f32 %v1760, 0.0
      %v2065 = vmax.f32 %v1986, 0.0
      %v2066 = vmax.f32 %v1763, 0.0
      %v2067 = vmax.f32 %v1989, 0.0
      %v2068 = vmax.f32 %v1766, 0.0
      %v2069 = vmax.f32 %v1992, 0.0
      %v2070 = vmax.f32 %v1769, 0.0
      %v2071 = vmax.f32 %v1995, 0.0
      %v2072 = vmax.f32 %v1772, 0.0
      %v2073 = vmax.f32 %v1998, 0.0
      %v2074 = vmax.f32 %v1775, 0.0
      %v2075 = vmax.f32 %v2001, 0.0
      %v2076 = vmax.f32 %v1778, 0.0
      %v2077 = vmax.f32 %v2004, 0.0
      %v2078 = vmax.f32 %v1781, 0.0
      %v2079 = vmax.f32 %v2007, 0.0
      %v2080 = vmax.f32 %v1784, 0.0
      %v2081 = vmax.f32 %v2010, 0.0
      %v2082 = vmax.f32 %v1787, 0.0
      %v2083 = vmax.f32 %v2013, 0.0
      %v2084 = vmax.f32 %v1790, 0.0
      %v2085 = vmax.f32 %v2016, 0.0
      %v2086 = vmax.f32 %v1793, 0.0
      %v2087 = vmax.f32 %v2019, 0.0
      %v2088 = vmax.f32 %v1796, 0.0
      %v2089 = vmax.f32 %v2022, 0.0
      %v2090 = vmax.f32 %v1799, 0.0
      %v2091 = vmax.f32 %v2025, 0.0
      %v2092 = vmax.f32 %v1802, 0.0
      %v2093 = vmax.f32 %v2028, 0.0
      %v2094 = vmin.f32 %v2030, 6.0
      %v2095 = vmin.f32 %v2031, 6.0
      %v2096 = vmin.f32 %v2032, 6.0
      %v2097 = vmin.f32 %v2033, 6.0
      %v2098 = vmin.f32 %v2034, 6.0
      %v2099 = vmin.f32 %v2035, 6.0
      %v2100 = vmin.f32 %v2036, 6.0
      %v2101 = vmin.f32 %v2037, 6.0
      %v2102 = vmin.f32 %v2038, 6.0
      %v2103 = vmin.f32 %v2039, 6.0
      %v2104 = vmin.f32 %v2040, 6.0
      %v2105 = vmin.f32 %v2041, 6.0
      %v2106 = vmin.f32 %v2042, 6.0
      %v2107 = vmin.f32 %v2043, 6.0
      %v2108 = vmin.f32 %v2044, 6.0
      %v2109 = vmin.f32 %v2045, 6.0
      %v2110 = vmin.f32 %v2046, 6.0
      %v2111 = vmin.f32 %v2047, 6.0
      %v2112 = vmin.f32 %v2048, 6.0
      %v2113 = vmin.f32 %v2049, 6.0
      %v2114 = vmin.f32 %v2050, 6.0
      %v2115 = vmin.f32 %v2051, 6.0
      %v2116 = vmin.f32 %v2052, 6.0
      %v2117 = vmin.f32 %v2053, 6.0
      %v2118 = vmin.f32 %v2054, 6.0
      %v2119 = vmin.f32 %v2055, 6.0
      %v2120 = vmin.f32 %v2056, 6.0
      %v2121 = vmin.f32 %v2057, 6.0
      %v2122 = vmin.f32 %v2058, 6.0
      %v2123 = vmin.f32 %v2059, 6.0
      %v2124 = vmin.f32 %v2060, 6.0
      %v2125 = vmin.f32 %v2061, 6.0
      %v2126 = vmin.f32 %v2062, 6.0
      %v2127 = vmin.f32 %v2063, 6.0
      %v2128 = vmin.f32 %v2064, 6.0
      %v2129 = vmin.f32 %v2065, 6.0
      %v2130 = vmin.f32 %v2066, 6.0
      %v2131 = vmin.f32 %v2067, 6.0
      %v2132 = vmin.f32 %v2068, 6.0
      %v2133 = vmin.f32 %v2069, 6.0
      %v2134 = vmin.f32 %v2070, 6.0
      %v2135 = vmin.f32 %v2071, 6.0
      %v2136 = vmin.f32 %v2072, 6.0
      %v2137 = vmin.f32 %v2073, 6.0
      %v2138 = vmin.f32 %v2074, 6.0
      %v2139 = vmin.f32 %v2075, 6.0
      %v2140 = vmin.f32 %v2076, 6.0
      %v2141 = vmin.f32 %v2077, 6.0
      %v2142 = vmin.f32 %v2078, 6.0
      %v2143 = vmin.f32 %v2079, 6.0
      %v2144 = vmin.f32 %v2080, 6.0
      %v2145 = vmin.f32 %v2081, 6.0
      %v2146 = vmin.f32 %v2082, 6.0
      %v2147 = vmin.f32 %v2083, 6.0
      %v2148 = vmin.f32 %v2084, 6.0
      %v2149 = vmin.f32 %v2085, 6.0
      %v2150 = vmin.f32 %v2086, 6.0
      %v2151 = vmin.f32 %v2087, 6.0
      %v2152 = vmin.f32 %v2088, 6.0
      %v2153 = vmin.f32 %v2089, 6.0
      %v2154 = vmin.f32 %v2090, 6.0
      %v2155 = vmin.f32 %v2091, 6.0
      %v2156 = vmin.f32 %v2092, 6.0
      %v2157 = vmin.f32 %v2093, 6.0
      %v2158 = vld [vmem:[%s7] sm:$0xf]
      %v2159 = vld [vmem:[%s8] sm:$0x3]
      %2161 = vset.pattern.permute.xlu0 0
      %2162 = vperm.xlu0 %2161, %v2159
      %v2163 = vpop.permute.xlu0 %2162
      %2166 = vst [vmem:[#allocation1] ss:$4 sm:$0xff] %v2158
      %v2167 = vld.sshfl [vmem:[#allocation1] sm:$0xff pattern:$0x73625140]
      %v2168 = vld.sshfl [vmem:[#allocation1 + $0x8] sm:$0xff pattern:$0x73625140]
      %2171 = vmatpush.msra.mxu0 %v2124
      %2172 = vmatpush.msra.mxu0 %v2122
      %2173 = vmatpush.msra.mxu0 %v2120
      %2174 = vmatpush.msra.mxu0 %v2118
      %2175 = vmatpush.msra.mxu0 %v2116
      %2176 = vmatpush.msra.mxu0 %v2114
      %2177 = vmatpush.msra.mxu0 %v2112
      %2178 = vmatpush.msra.mxu0 %v2110
      %2179 = vmatpush.msra.mxu0 %v2108
      %2180 = vmatpush.msra.mxu0 %v2106
      %2181 = vmatpush.msra.mxu0 %v2104
      %2182 = vmatpush.msra.mxu0 %v2102
      %2183 = vmatpush.msra.mxu0 %v2100
      %2184 = vmatpush.msra.mxu0 %v2098
      %2185 = vmatpush.msra.mxu0 %v2096
      %2186 = vmatpush.msra.mxu0 %v2094
      %2187 = vmatmul.f32.gmra.mxu0 %v2167
      %v2188 = vpop.f32.mrf.mxu0
      %v2189 = vadd.f32 %v2163, %v2188
      %2190 = vdwg.mxu0
      %2191 = vmatpush.msra.mxu0 %v2156
      %2192 = vmatpush.msra.mxu0 %v2154
      %2193 = vmatpush.msra.mxu0 %v2152
      %2194 = vmatpush.msra.mxu0 %v2150
      %2195 = vmatpush.msra.mxu0 %v2148
      %2196 = vmatpush.msra.mxu0 %v2146
      %2197 = vmatpush.msra.mxu0 %v2144
      %2198 = vmatpush.msra.mxu0 %v2142
      %2199 = vmatpush.msra.mxu0 %v2140
      %2200 = vmatpush.msra.mxu0 %v2138
      %2201 = vmatpush.msra.mxu0 %v2136
      %2202 = vmatpush.msra.mxu0 %v2134
      %2203 = vmatpush.msra.mxu0 %v2132
      %2204 = vmatpush.msra.mxu0 %v2130
      %2205 = vmatpush.msra.mxu0 %v2128
      %2206 = vmatpush.msra.mxu0 %v2126
      %2207 = vmatmul.f32.gmra.mxu0 %v2168
      %v2208 = vpop.f32.mrf.mxu0
      %v2209 = vadd.f32 %v2189, %v2208
      %2210 = vdwg.mxu0
      %2211 = vmatpush.msra.mxu0 %v2125
      %2212 = vmatpush.msra.mxu0 %v2123
      %2213 = vmatpush.msra.mxu0 %v2121
      %2214 = vmatpush.msra.mxu0 %v2119
      %2215 = vmatpush.msra.mxu0 %v2117
      %2216 = vmatpush.msra.mxu0 %v2115
      %2217 = vmatpush.msra.mxu0 %v2113
      %2218 = vmatpush.msra.mxu0 %v2111
      %2219 = vmatpush.msra.mxu0 %v2109
      %2220 = vmatpush.msra.mxu0 %v2107
      %2221 = vmatpush.msra.mxu0 %v2105
      %2222 = vmatpush.msra.mxu0 %v2103
      %2223 = vmatpush.msra.mxu0 %v2101
      %2224 = vmatpush.msra.mxu0 %v2099
      %2225 = vmatpush.msra.mxu0 %v2097
      %2226 = vmatpush.msra.mxu0 %v2095
      %2227 = vmatmul.f32.gmra.mxu0 %v2167
      %v2228 = vpop.f32.mrf.mxu0
      %v2229 = vadd.f32 %v2163, %v2228
      %2230 = vdwg.mxu0
      %2231 = vmatpush.msra.mxu0 %v2157
      %2232 = vmatpush.msra.mxu0 %v2155
      %2233 = vmatpush.msra.mxu0 %v2153
      %2234 = vmatpush.msra.mxu0 %v2151
      %2235 = vmatpush.msra.mxu0 %v2149
      %2236 = vmatpush.msra.mxu0 %v2147
      %2237 = vmatpush.msra.mxu0 %v2145
      %2238 = vmatpush.msra.mxu0 %v2143
      %2239 = vmatpush.msra.mxu0 %v2141
      %2240 = vmatpush.msra.mxu0 %v2139
      %2241 = vmatpush.msra.mxu0 %v2137
      %2242 = vmatpush.msra.mxu0 %v2135
      %2243 = vmatpush.msra.mxu0 %v2133
      %2244 = vmatpush.msra.mxu0 %v2131
      %2245 = vmatpush.msra.mxu0 %v2129
      %2246 = vmatpush.msra.mxu0 %v2127
      %2247 = vmatmul.f32.gmra.mxu0 %v2168
      %v2248 = vpop.f32.mrf.mxu0
      %v2249 = vadd.f32 %v2229, %v2248
      %2250 = vdwg.mxu0
      %v2251 = vld [vmem:[%s9] sm:$0xff]
      %v2252 = vld [vmem:[%s9 + $0x8] sm:$0xff]
      %v2253 = vld [vmem:[%s9 + $0x10] sm:$0xff]
      %v2254 = vld [vmem:[%s9 + $0x18] sm:$0xff]
      %v2255 = vld [vmem:[%s9 + $0x20] sm:$0xff]
      %v2256 = vld [vmem:[%s9 + $0x28] sm:$0xff]
      %v2257 = vld [vmem:[%s9 + $0x30] sm:$0xff]
      %v2258 = vld [vmem:[%s9 + $0x38] sm:$0xff]
      %v2259 = vld [vmem:[%s9 + $0x40] sm:$0xff]
      %v2260 = vld [vmem:[%s9 + $0x48] sm:$0xff]
      %v2261 = vld [vmem:[%s9 + $0x50] sm:$0xff]
      %v2262 = vld [vmem:[%s9 + $0x58] sm:$0xff]
      %v2263 = vld [vmem:[%s9 + $0x60] sm:$0xff]
      %v2264 = vld [vmem:[%s9 + $0x68] sm:$0xff]
      %v2265 = vld [vmem:[%s9 + $0x70] sm:$0xff]
      %v2266 = vld [vmem:[%s9 + $0x78] sm:$0xff]
      %v2267 = vld [vmem:[%s9 + $0x80] sm:$0xff]
      %v2268 = vld [vmem:[%s9 + $0x88] sm:$0xff]
      %v2269 = vld [vmem:[%s9 + $0x90] sm:$0xff]
      %v2270 = vld [vmem:[%s9 + $0x98] sm:$0xff]
      %v2271 = vld [vmem:[%s9 + $0xa0] sm:$0xff]
      %v2272 = vld [vmem:[%s9 + $0xa8] sm:$0xff]
      %v2273 = vld [vmem:[%s9 + $0xb0] sm:$0xff]
      %v2274 = vld [vmem:[%s9 + $0xb8] sm:$0xff]
      %v2275 = vld [vmem:[%s9 + $0xc0] sm:$0xff]
      %v2276 = vld [vmem:[%s9 + $0xc8] sm:$0xff]
      %v2277 = vld [vmem:[%s9 + $0xd0] sm:$0xff]
      %v2278 = vld [vmem:[%s9 + $0xd8] sm:$0xff]
      %v2279 = vld [vmem:[%s9 + $0xe0] sm:$0xff]
      %v2280 = vld [vmem:[%s9 + $0xe8] sm:$0xff]
      %v2281 = vld [vmem:[%s9 + $0xf0] sm:$0xff]
      %v2282 = vld [vmem:[%s9 + $0xf8] sm:$0xff]
      %v2283 = vld [vmem:[%s9 + $0x100] sm:$0xff]
      %v2284 = vld [vmem:[%s9 + $0x108] sm:$0xff]
      %v2285 = vld [vmem:[%s9 + $0x110] sm:$0xff]
      %v2286 = vld [vmem:[%s9 + $0x118] sm:$0xff]
      %v2287 = vld [vmem:[%s9 + $0x120] sm:$0xff]
      %v2288 = vld [vmem:[%s9 + $0x128] sm:$0xff]
      %v2289 = vld [vmem:[%s9 + $0x130] sm:$0xff]
      %v2290 = vld [vmem:[%s9 + $0x138] sm:$0xff]
      %v2291 = vld [vmem:[%s9 + $0x140] sm:$0xff]
      %v2292 = vld [vmem:[%s9 + $0x148] sm:$0xff]
      %v2293 = vld [vmem:[%s9 + $0x150] sm:$0xff]
      %v2294 = vld [vmem:[%s9 + $0x158] sm:$0xff]
      %v2295 = vld [vmem:[%s9 + $0x160] sm:$0xff]
      %v2296 = vld [vmem:[%s9 + $0x168] sm:$0xff]
      %v2297 = vld [vmem:[%s9 + $0x170] sm:$0xff]
      %v2298 = vld [vmem:[%s9 + $0x178] sm:$0xff]
      %v2299 = vld [vmem:[%s9 + $0x180] sm:$0xff]
      %v2300 = vld [vmem:[%s9 + $0x188] sm:$0xff]
      %v2301 = vld [vmem:[%s9 + $0x190] sm:$0xff]
      %v2302 = vld [vmem:[%s9 + $0x198] sm:$0xff]
      %v2303 = vld [vmem:[%s9 + $0x1a0] sm:$0xff]
      %v2304 = vld [vmem:[%s9 + $0x1a8] sm:$0xff]
      %v2305 = vld [vmem:[%s9 + $0x1b0] sm:$0xff]
      %v2306 = vld [vmem:[%s9 + $0x1b8] sm:$0xff]
      %v2307 = vld [vmem:[%s9 + $0x1c0] sm:$0xff]
      %v2308 = vld [vmem:[%s9 + $0x1c8] sm:$0xff]
      %v2309 = vld [vmem:[%s9 + $0x1d0] sm:$0xff]
      %v2310 = vld [vmem:[%s9 + $0x1d8] sm:$0xff]
      %v2311 = vld [vmem:[%s9 + $0x1e0] sm:$0xff]
      %v2312 = vld [vmem:[%s9 + $0x1e8] sm:$0xff]
      %v2313 = vld [vmem:[%s9 + $0x1f0] sm:$0xff]
      %v2314 = vld [vmem:[%s9 + $0x1f8] sm:$0xff]
      %v2315 = vld [vmem:[%s9 + $0x200] sm:$0xff]
      %v2316 = vld [vmem:[%s9 + $0x208] sm:$0xff]
      %v2317 = vld [vmem:[%s9 + $0x210] sm:$0xff]
      %v2318 = vld [vmem:[%s9 + $0x218] sm:$0xff]
      %v2319 = vld [vmem:[%s9 + $0x220] sm:$0xff]
      %v2320 = vld [vmem:[%s9 + $0x228] sm:$0xff]
      %v2321 = vld [vmem:[%s9 + $0x230] sm:$0xff]
      %v2322 = vld [vmem:[%s9 + $0x238] sm:$0xff]
      %v2323 = vld [vmem:[%s9 + $0x240] sm:$0xff]
      %v2324 = vld [vmem:[%s9 + $0x248] sm:$0xff]
      %v2325 = vld [vmem:[%s9 + $0x250] sm:$0xff]
      %v2326 = vld [vmem:[%s9 + $0x258] sm:$0xff]
      %v2327 = vld [vmem:[%s9 + $0x260] sm:$0xff]
      %v2328 = vld [vmem:[%s9 + $0x268] sm:$0xff]
      %v2329 = vld [vmem:[%s9 + $0x270] sm:$0xff]
      %v2330 = vld [vmem:[%s9 + $0x278] sm:$0xff]
      %v2331 = vld [vmem:[%s9 + $0x280] sm:$0xff]
      %v2332 = vld [vmem:[%s9 + $0x288] sm:$0xff]
      %v2333 = vld [vmem:[%s9 + $0x290] sm:$0xff]
      %v2334 = vld [vmem:[%s9 + $0x298] sm:$0xff]
      %v2335 = vld [vmem:[%s9 + $0x2a0] sm:$0xff]
      %v2336 = vld [vmem:[%s9 + $0x2a8] sm:$0xff]
      %v2337 = vld [vmem:[%s9 + $0x2b0] sm:$0xff]
      %v2338 = vld [vmem:[%s9 + $0x2b8] sm:$0xff]
      %v2339 = vld [vmem:[%s9 + $0x2c0] sm:$0xff]
      %v2340 = vld [vmem:[%s9 + $0x2c8] sm:$0xff]
      %v2341 = vld [vmem:[%s9 + $0x2d0] sm:$0xff]
      %v2342 = vld [vmem:[%s9 + $0x2d8] sm:$0xff]
      %v2343 = vld [vmem:[%s9 + $0x2e0] sm:$0xff]
      %v2344 = vld [vmem:[%s9 + $0x2e8] sm:$0xff]
      %v2345 = vld [vmem:[%s9 + $0x2f0] sm:$0xff]
      %v2346 = vld [vmem:[%s9 + $0x2f8] sm:$0xff]
      %v2347 = vld [vmem:[%s9 + $0x300] sm:$0xff]
      %v2348 = vld [vmem:[%s9 + $0x308] sm:$0xff]
      %v2349 = vld [vmem:[%s9 + $0x310] sm:$0xff]
      %v2350 = vld [vmem:[%s9 + $0x318] sm:$0xff]
      %v2351 = vld [vmem:[%s9 + $0x320] sm:$0xff]
      %v2352 = vld [vmem:[%s9 + $0x328] sm:$0xff]
      %v2353 = vld [vmem:[%s9 + $0x330] sm:$0xff]
      %v2354 = vld [vmem:[%s9 + $0x338] sm:$0xff]
      %v2355 = vld [vmem:[%s9 + $0x340] sm:$0xff]
      %v2356 = vld [vmem:[%s9 + $0x348] sm:$0xff]
      %v2357 = vld [vmem:[%s9 + $0x350] sm:$0xff]
      %v2358 = vld [vmem:[%s9 + $0x358] sm:$0xff]
      %v2359 = vld [vmem:[%s9 + $0x360] sm:$0xff]
      %v2360 = vld [vmem:[%s9 + $0x368] sm:$0xff]
      %v2361 = vld [vmem:[%s9 + $0x370] sm:$0xff]
      %v2362 = vld [vmem:[%s9 + $0x378] sm:$0xff]
      %v2363 = vld [vmem:[%s9 + $0x380] sm:$0xff]
      %v2364 = vld [vmem:[%s9 + $0x388] sm:$0xff]
      %v2365 = vld [vmem:[%s9 + $0x390] sm:$0xff]
      %v2366 = vld [vmem:[%s9 + $0x398] sm:$0xff]
      %v2367 = vld [vmem:[%s9 + $0x3a0] sm:$0xff]
      %v2368 = vld [vmem:[%s9 + $0x3a8] sm:$0xff]
      %v2369 = vld [vmem:[%s9 + $0x3b0] sm:$0xff]
      %v2370 = vld [vmem:[%s9 + $0x3b8] sm:$0xff]
      %v2371 = vld [vmem:[%s9 + $0x3c0] sm:$0xff]
      %v2372 = vld [vmem:[%s9 + $0x3c8] sm:$0xff]
      %v2373 = vld [vmem:[%s9 + $0x3d0] sm:$0xff]
      %v2374 = vld [vmem:[%s9 + $0x3d8] sm:$0xff]
      %v2375 = vld [vmem:[%s9 + $0x3e0] sm:$0xff]
      %v2376 = vld [vmem:[%s9 + $0x3e8] sm:$0xff]
      %v2377 = vld [vmem:[%s9 + $0x3f0] sm:$0xff]
      %v2378 = vld [vmem:[%s9 + $0x3f8] sm:$0xff]
      %v2379 = vld [vmem:[%s9 + $0x400] sm:$0xff]
      %v2380 = vld [vmem:[%s9 + $0x408] sm:$0xff]
      %v2381 = vld [vmem:[%s9 + $0x410] sm:$0xff]
      %v2382 = vld [vmem:[%s9 + $0x418] sm:$0xff]
      %v2383 = vld [vmem:[%s9 + $0x420] sm:$0xff]
      %v2384 = vld [vmem:[%s9 + $0x428] sm:$0xff]
      %v2385 = vld [vmem:[%s9 + $0x430] sm:$0xff]
      %v2386 = vld [vmem:[%s9 + $0x438] sm:$0xff]
      %v2387 = vld [vmem:[%s9 + $0x440] sm:$0xff]
      %v2388 = vld [vmem:[%s9 + $0x448] sm:$0xff]
      %v2389 = vld [vmem:[%s9 + $0x450] sm:$0xff]
      %v2390 = vld [vmem:[%s9 + $0x458] sm:$0xff]
      %v2391 = vld [vmem:[%s9 + $0x460] sm:$0xff]
      %v2392 = vld [vmem:[%s9 + $0x468] sm:$0xff]
      %v2393 = vld [vmem:[%s9 + $0x470] sm:$0xff]
      %v2394 = vld [vmem:[%s9 + $0x478] sm:$0xff]
      %v2395 = vld [vmem:[%s9 + $0x480] sm:$0xff]
      %v2396 = vld [vmem:[%s9 + $0x488] sm:$0xff]
      %v2397 = vld [vmem:[%s9 + $0x490] sm:$0xff]
      %v2398 = vld [vmem:[%s9 + $0x498] sm:$0xff]
      %v2399 = vld [vmem:[%s9 + $0x4a0] sm:$0xff]
      %v2400 = vld [vmem:[%s9 + $0x4a8] sm:$0xff]
      %v2401 = vld [vmem:[%s9 + $0x4b0] sm:$0xff]
      %v2402 = vld [vmem:[%s9 + $0x4b8] sm:$0xff]
      %v2403 = vld [vmem:[%s9 + $0x4c0] sm:$0xff]
      %v2404 = vld [vmem:[%s9 + $0x4c8] sm:$0xff]
      %v2405 = vld [vmem:[%s9 + $0x4d0] sm:$0xff]
      %v2406 = vld [vmem:[%s9 + $0x4d8] sm:$0xff]
      %v2407 = vld [vmem:[%s9 + $0x4e0] sm:$0xff]
      %v2408 = vld [vmem:[%s9 + $0x4e8] sm:$0xff]
      %v2409 = vld [vmem:[%s9 + $0x4f0] sm:$0xff]
      %v2410 = vld [vmem:[%s9 + $0x4f8] sm:$0xff]
      %v2411 = vld [vmem:[%s9 + $0x500] sm:$0xff]
      %v2412 = vld [vmem:[%s9 + $0x508] sm:$0xff]
      %v2413 = vld [vmem:[%s9 + $0x510] sm:$0xff]
      %v2414 = vld [vmem:[%s9 + $0x518] sm:$0xff]
      %v2415 = vld [vmem:[%s9 + $0x520] sm:$0xff]
      %v2416 = vld [vmem:[%s9 + $0x528] sm:$0xff]
      %v2417 = vld [vmem:[%s9 + $0x530] sm:$0xff]
      %v2418 = vld [vmem:[%s9 + $0x538] sm:$0xff]
      %v2419 = vld [vmem:[%s9 + $0x540] sm:$0xff]
      %v2420 = vld [vmem:[%s9 + $0x548] sm:$0xff]
      %v2421 = vld [vmem:[%s9 + $0x550] sm:$0xff]
      %v2422 = vld [vmem:[%s9 + $0x558] sm:$0xff]
      %v2423 = vld [vmem:[%s9 + $0x560] sm:$0xff]
      %v2424 = vld [vmem:[%s9 + $0x568] sm:$0xff]
      %v2425 = vld [vmem:[%s9 + $0x570] sm:$0xff]
      %v2426 = vld [vmem:[%s9 + $0x578] sm:$0xff]
      %v2427 = vld [vmem:[%s9 + $0x580] sm:$0xff]
      %v2428 = vld [vmem:[%s9 + $0x588] sm:$0xff]
      %v2429 = vld [vmem:[%s9 + $0x590] sm:$0xff]
      %v2430 = vld [vmem:[%s9 + $0x598] sm:$0xff]
      %v2431 = vld [vmem:[%s9 + $0x5a0] sm:$0xff]
      %v2432 = vld [vmem:[%s9 + $0x5a8] sm:$0xff]
      %v2433 = vld [vmem:[%s9 + $0x5b0] sm:$0xff]
      %v2434 = vld [vmem:[%s9 + $0x5b8] sm:$0xff]
      %v2435 = vld [vmem:[%s9 + $0x5c0] sm:$0xff]
      %v2436 = vld [vmem:[%s9 + $0x5c8] sm:$0xff]
      %v2437 = vld [vmem:[%s9 + $0x5d0] sm:$0xff]
      %v2438 = vld [vmem:[%s9 + $0x5d8] sm:$0xff]
      %v2439 = vld [vmem:[%s9 + $0x5e0] sm:$0xff]
      %v2440 = vld [vmem:[%s9 + $0x5e8] sm:$0xff]
      %v2441 = vld [vmem:[%s9 + $0x5f0] sm:$0xff]
      %v2442 = vld [vmem:[%s9 + $0x5f8] sm:$0xff]
      %v2443 = vld [vmem:[%s9 + $0x600] sm:$0xff]
      %v2444 = vld [vmem:[%s9 + $0x608] sm:$0xff]
      %v2445 = vld [vmem:[%s9 + $0x610] sm:$0xff]
      %v2446 = vld [vmem:[%s9 + $0x618] sm:$0xff]
      %v2447 = vld [vmem:[%s9 + $0x620] sm:$0xff]
      %v2448 = vld [vmem:[%s9 + $0x628] sm:$0xff]
      %v2449 = vld [vmem:[%s9 + $0x630] sm:$0xff]
      %v2450 = vld [vmem:[%s9 + $0x638] sm:$0xff]
      %v2451 = vld [vmem:[%s9 + $0x640] sm:$0xff]
      %v2452 = vld [vmem:[%s9 + $0x648] sm:$0xff]
      %v2453 = vld [vmem:[%s9 + $0x650] sm:$0xff]
      %v2454 = vld [vmem:[%s9 + $0x658] sm:$0xff]
      %v2455 = vld [vmem:[%s9 + $0x660] sm:$0xff]
      %v2456 = vld [vmem:[%s9 + $0x668] sm:$0xff]
      %v2457 = vld [vmem:[%s9 + $0x670] sm:$0xff]
      %v2458 = vld [vmem:[%s9 + $0x678] sm:$0xff]
      %v2459 = vld [vmem:[%s9 + $0x680] sm:$0xff]
      %v2460 = vld [vmem:[%s9 + $0x688] sm:$0xff]
      %v2461 = vld [vmem:[%s9 + $0x690] sm:$0xff]
      %v2462 = vld [vmem:[%s9 + $0x698] sm:$0xff]
      %v2463 = vld [vmem:[%s9 + $0x6a0] sm:$0xff]
      %v2464 = vld [vmem:[%s9 + $0x6a8] sm:$0xff]
      %v2465 = vld [vmem:[%s9 + $0x6b0] sm:$0xff]
      %v2466 = vld [vmem:[%s9 + $0x6b8] sm:$0xff]
      %v2467 = vld [vmem:[%s9 + $0x6c0] sm:$0xff]
      %v2468 = vld [vmem:[%s9 + $0x6c8] sm:$0xff]
      %v2469 = vld [vmem:[%s9 + $0x6d0] sm:$0xff]
      %v2470 = vld [vmem:[%s9 + $0x6d8] sm:$0xff]
      %v2471 = vld [vmem:[%s9 + $0x6e0] sm:$0xff]
      %v2472 = vld [vmem:[%s9 + $0x6e8] sm:$0xff]
      %v2473 = vld [vmem:[%s9 + $0x6f0] sm:$0xff]
      %v2474 = vld [vmem:[%s9 + $0x6f8] sm:$0xff]
      %v2475 = vld [vmem:[%s9 + $0x700] sm:$0xff]
      %v2476 = vld [vmem:[%s9 + $0x708] sm:$0xff]
      %v2477 = vld [vmem:[%s9 + $0x710] sm:$0xff]
      %v2478 = vld [vmem:[%s9 + $0x718] sm:$0xff]
      %v2479 = vld [vmem:[%s9 + $0x720] sm:$0xff]
      %v2480 = vld [vmem:[%s9 + $0x728] sm:$0xff]
      %v2481 = vld [vmem:[%s9 + $0x730] sm:$0xff]
      %v2482 = vld [vmem:[%s9 + $0x738] sm:$0xff]
      %v2483 = vld [vmem:[%s9 + $0x740] sm:$0xff]
      %v2484 = vld [vmem:[%s9 + $0x748] sm:$0xff]
      %v2485 = vld [vmem:[%s9 + $0x750] sm:$0xff]
      %v2486 = vld [vmem:[%s9 + $0x758] sm:$0xff]
      %v2487 = vld [vmem:[%s9 + $0x760] sm:$0xff]
      %v2488 = vld [vmem:[%s9 + $0x768] sm:$0xff]
      %v2489 = vld [vmem:[%s9 + $0x770] sm:$0xff]
      %v2490 = vld [vmem:[%s9 + $0x778] sm:$0xff]
      %v2491 = vld [vmem:[%s9 + $0x780] sm:$0xff]
      %v2492 = vld [vmem:[%s9 + $0x788] sm:$0xff]
      %v2493 = vld [vmem:[%s9 + $0x790] sm:$0xff]
      %v2494 = vld [vmem:[%s9 + $0x798] sm:$0xff]
      %v2495 = vld [vmem:[%s9 + $0x7a0] sm:$0xff]
      %v2496 = vld [vmem:[%s9 + $0x7a8] sm:$0xff]
      %v2497 = vld [vmem:[%s9 + $0x7b0] sm:$0xff]
      %v2498 = vld [vmem:[%s9 + $0x7b8] sm:$0xff]
      %v2499 = vld [vmem:[%s9 + $0x7c0] sm:$0xff]
      %v2500 = vld [vmem:[%s9 + $0x7c8] sm:$0xff]
      %v2501 = vld [vmem:[%s9 + $0x7d0] sm:$0xff]
      %v2502 = vld [vmem:[%s9 + $0x7d8] sm:$0xff]
      %v2503 = vld [vmem:[%s9 + $0x7e0] sm:$0xff]
      %v2504 = vld [vmem:[%s9 + $0x7e8] sm:$0xff]
      %v2505 = vld [vmem:[%s9 + $0x7f0] sm:$0xff]
      %v2506 = vld [vmem:[%s9 + $0x7f8] sm:$0xff]
      %v2507 = vld [vmem:[%s9 + $0x800] sm:$0xff]
      %v2508 = vld [vmem:[%s9 + $0x808] sm:$0xff]
      %v2509 = vld [vmem:[%s9 + $0x810] sm:$0xff]
      %v2510 = vld [vmem:[%s9 + $0x818] sm:$0xff]
      %v2511 = vld [vmem:[%s9 + $0x820] sm:$0xff]
      %v2512 = vld [vmem:[%s9 + $0x828] sm:$0xff]
      %v2513 = vld [vmem:[%s9 + $0x830] sm:$0xff]
      %v2514 = vld [vmem:[%s9 + $0x838] sm:$0xff]
      %v2515 = vld [vmem:[%s9 + $0x840] sm:$0xff]
      %v2516 = vld [vmem:[%s9 + $0x848] sm:$0xff]
      %v2517 = vld [vmem:[%s9 + $0x850] sm:$0xff]
      %v2518 = vld [vmem:[%s9 + $0x858] sm:$0xff]
      %v2519 = vld [vmem:[%s9 + $0x860] sm:$0xff]
      %v2520 = vld [vmem:[%s9 + $0x868] sm:$0xff]
      %v2521 = vld [vmem:[%s9 + $0x870] sm:$0xff]
      %v2522 = vld [vmem:[%s9 + $0x878] sm:$0xff]
      %v2523 = vld [vmem:[%s9 + $0x880] sm:$0xff]
      %v2524 = vld [vmem:[%s9 + $0x888] sm:$0xff]
      %v2525 = vld [vmem:[%s9 + $0x890] sm:$0xff]
      %v2526 = vld [vmem:[%s9 + $0x898] sm:$0xff]
      %v2527 = vld [vmem:[%s9 + $0x8a0] sm:$0xff]
      %v2528 = vld [vmem:[%s9 + $0x8a8] sm:$0xff]
      %v2529 = vld [vmem:[%s9 + $0x8b0] sm:$0xff]
      %v2530 = vld [vmem:[%s9 + $0x8b8] sm:$0xff]
      %v2531 = vld [vmem:[%s9 + $0x8c0] sm:$0xff]
      %v2532 = vld [vmem:[%s9 + $0x8c8] sm:$0xff]
      %v2533 = vld [vmem:[%s9 + $0x8d0] sm:$0xff]
      %v2534 = vld [vmem:[%s9 + $0x8d8] sm:$0xff]
      %v2535 = vld [vmem:[%s9 + $0x8e0] sm:$0xff]
      %v2536 = vld [vmem:[%s9 + $0x8e8] sm:$0xff]
      %v2537 = vld [vmem:[%s9 + $0x8f0] sm:$0xff]
      %v2538 = vld [vmem:[%s9 + $0x8f8] sm:$0xff]
      %v2539 = vld [vmem:[%s9 + $0x900] sm:$0xff]
      %v2540 = vld [vmem:[%s9 + $0x908] sm:$0xff]
      %v2541 = vld [vmem:[%s9 + $0x910] sm:$0xff]
      %v2542 = vld [vmem:[%s9 + $0x918] sm:$0xff]
      %v2543 = vld [vmem:[%s9 + $0x920] sm:$0xff]
      %v2544 = vld [vmem:[%s9 + $0x928] sm:$0xff]
      %v2545 = vld [vmem:[%s9 + $0x930] sm:$0xff]
      %v2546 = vld [vmem:[%s9 + $0x938] sm:$0xff]
      %v2547 = vld [vmem:[%s9 + $0x940] sm:$0xff]
      %v2548 = vld [vmem:[%s9 + $0x948] sm:$0xff]
      %v2549 = vld [vmem:[%s9 + $0x950] sm:$0xff]
      %v2550 = vld [vmem:[%s9 + $0x958] sm:$0xff]
      %v2551 = vld [vmem:[%s9 + $0x960] sm:$0xff]
      %v2552 = vld [vmem:[%s9 + $0x968] sm:$0xff]
      %v2553 = vld [vmem:[%s9 + $0x970] sm:$0xff]
      %v2554 = vld [vmem:[%s9 + $0x978] sm:$0xff]
      %v2555 = vld [vmem:[%s9 + $0x980] sm:$0xff]
      %v2556 = vld [vmem:[%s9 + $0x988] sm:$0xff]
      %v2557 = vld [vmem:[%s9 + $0x990] sm:$0xff]
      %v2558 = vld [vmem:[%s9 + $0x998] sm:$0xff]
      %v2559 = vld [vmem:[%s9 + $0x9a0] sm:$0xff]
      %v2560 = vld [vmem:[%s9 + $0x9a8] sm:$0xff]
      %v2561 = vld [vmem:[%s9 + $0x9b0] sm:$0xff]
      %v2562 = vld [vmem:[%s9 + $0x9b8] sm:$0xff]
      %v2563 = vld [vmem:[%s9 + $0x9c0] sm:$0xff]
      %v2564 = vld [vmem:[%s9 + $0x9c8] sm:$0xff]
      %v2565 = vld [vmem:[%s9 + $0x9d0] sm:$0xff]
      %v2566 = vld [vmem:[%s9 + $0x9d8] sm:$0xff]
      %v2567 = vld [vmem:[%s9 + $0x9e0] sm:$0xff]
      %v2568 = vld [vmem:[%s9 + $0x9e8] sm:$0xff]
      %v2569 = vld [vmem:[%s9 + $0x9f0] sm:$0xff]
      %v2570 = vld [vmem:[%s9 + $0x9f8] sm:$0xff]
      %v2571 = vld [vmem:[%s9 + $0xa00] sm:$0xff]
      %v2572 = vld [vmem:[%s9 + $0xa08] sm:$0xff]
      %v2573 = vld [vmem:[%s9 + $0xa10] sm:$0xff]
      %v2574 = vld [vmem:[%s9 + $0xa18] sm:$0xff]
      %v2575 = vld [vmem:[%s9 + $0xa20] sm:$0xff]
      %v2576 = vld [vmem:[%s9 + $0xa28] sm:$0xff]
      %v2577 = vld [vmem:[%s9 + $0xa30] sm:$0xff]
      %v2578 = vld [vmem:[%s9 + $0xa38] sm:$0xff]
      %v2579 = vld [vmem:[%s9 + $0xa40] sm:$0xff]
      %v2580 = vld [vmem:[%s9 + $0xa48] sm:$0xff]
      %v2581 = vld [vmem:[%s9 + $0xa50] sm:$0xff]
      %v2582 = vld [vmem:[%s9 + $0xa58] sm:$0xff]
      %v2583 = vld [vmem:[%s9 + $0xa60] sm:$0xff]
      %v2584 = vld [vmem:[%s9 + $0xa68] sm:$0xff]
      %v2585 = vld [vmem:[%s9 + $0xa70] sm:$0xff]
      %v2586 = vld [vmem:[%s9 + $0xa78] sm:$0xff]
      %v2587 = vld [vmem:[%s9 + $0xa80] sm:$0xff]
      %v2588 = vld [vmem:[%s9 + $0xa88] sm:$0xff]
      %v2589 = vld [vmem:[%s9 + $0xa90] sm:$0xff]
      %v2590 = vld [vmem:[%s9 + $0xa98] sm:$0xff]
      %v2591 = vld [vmem:[%s9 + $0xaa0] sm:$0xff]
      %v2592 = vld [vmem:[%s9 + $0xaa8] sm:$0xff]
      %v2593 = vld [vmem:[%s9 + $0xab0] sm:$0xff]
      %v2594 = vld [vmem:[%s9 + $0xab8] sm:$0xff]
      %v2595 = vld [vmem:[%s9 + $0xac0] sm:$0xff]
      %v2596 = vld [vmem:[%s9 + $0xac8] sm:$0xff]
      %v2597 = vld [vmem:[%s9 + $0xad0] sm:$0xff]
      %v2598 = vld [vmem:[%s9 + $0xad8] sm:$0xff]
      %v2599 = vld [vmem:[%s9 + $0xae0] sm:$0xff]
      %v2600 = vld [vmem:[%s9 + $0xae8] sm:$0xff]
      %v2601 = vld [vmem:[%s9 + $0xaf0] sm:$0xff]
      %v2602 = vld [vmem:[%s9 + $0xaf8] sm:$0xff]
      %v2603 = vld [vmem:[%s9 + $0xb00] sm:$0xff]
      %v2604 = vld [vmem:[%s9 + $0xb08] sm:$0xff]
      %v2605 = vld [vmem:[%s9 + $0xb10] sm:$0xff]
      %v2606 = vld [vmem:[%s9 + $0xb18] sm:$0xff]
      %v2607 = vld [vmem:[%s9 + $0xb20] sm:$0xff]
      %v2608 = vld [vmem:[%s9 + $0xb28] sm:$0xff]
      %v2609 = vld [vmem:[%s9 + $0xb30] sm:$0xff]
      %v2610 = vld [vmem:[%s9 + $0xb38] sm:$0xff]
      %v2611 = vld [vmem:[%s9 + $0xb40] sm:$0xff]
      %v2612 = vld [vmem:[%s9 + $0xb48] sm:$0xff]
      %v2613 = vld [vmem:[%s9 + $0xb50] sm:$0xff]
      %v2614 = vld [vmem:[%s9 + $0xb58] sm:$0xff]
      %v2615 = vld [vmem:[%s9 + $0xb60] sm:$0xff]
      %v2616 = vld [vmem:[%s9 + $0xb68] sm:$0xff]
      %v2617 = vld [vmem:[%s9 + $0xb70] sm:$0xff]
      %v2618 = vld [vmem:[%s9 + $0xb78] sm:$0xff]
      %v2619 = vld [vmem:[%s9 + $0xb80] sm:$0xff]
      %v2620 = vld [vmem:[%s9 + $0xb88] sm:$0xff]
      %v2621 = vld [vmem:[%s9 + $0xb90] sm:$0xff]
      %v2622 = vld [vmem:[%s9 + $0xb98] sm:$0xff]
      %v2623 = vld [vmem:[%s9 + $0xba0] sm:$0xff]
      %v2624 = vld [vmem:[%s9 + $0xba8] sm:$0xff]
      %v2625 = vld [vmem:[%s9 + $0xbb0] sm:$0xff]
      %v2626 = vld [vmem:[%s9 + $0xbb8] sm:$0xff]
      %v2627 = vld [vmem:[%s9 + $0xbc0] sm:$0xff]
      %v2628 = vld [vmem:[%s9 + $0xbc8] sm:$0xff]
      %v2629 = vld [vmem:[%s9 + $0xbd0] sm:$0xff]
      %v2630 = vld [vmem:[%s9 + $0xbd8] sm:$0xff]
      %v2631 = vld [vmem:[%s9 + $0xbe0] sm:$0xff]
      %v2632 = vld [vmem:[%s9 + $0xbe8] sm:$0xff]
      %v2633 = vld [vmem:[%s9 + $0xbf0] sm:$0xff]
      %v2634 = vld [vmem:[%s9 + $0xbf8] sm:$0xff]
      %v2635 = vld [vmem:[%s9 + $0xc00] sm:$0xff]
      %v2636 = vld [vmem:[%s9 + $0xc08] sm:$0xff]
      %v2637 = vld [vmem:[%s9 + $0xc10] sm:$0xff]
      %v2638 = vld [vmem:[%s9 + $0xc18] sm:$0xff]
      %v2639 = vld [vmem:[%s9 + $0xc20] sm:$0xff]
      %v2640 = vld [vmem:[%s9 + $0xc28] sm:$0xff]
      %v2641 = vld [vmem:[%s9 + $0xc30] sm:$0xff]
      %v2642 = vld [vmem:[%s9 + $0xc38] sm:$0xff]
      %v2643 = vld [vmem:[%s9 + $0xc40] sm:$0xff]
      %v2644 = vld [vmem:[%s9 + $0xc48] sm:$0xff]
      %v2645 = vld [vmem:[%s9 + $0xc50] sm:$0xff]
      %v2646 = vld [vmem:[%s9 + $0xc58] sm:$0xff]
      %v2647 = vld [vmem:[%s9 + $0xc60] sm:$0xff]
      %v2648 = vld [vmem:[%s9 + $0xc68] sm:$0xff]
      %v2649 = vld [vmem:[%s9 + $0xc70] sm:$0xff]
      %v2650 = vld [vmem:[%s9 + $0xc78] sm:$0xff]
      %v2651 = vld [vmem:[%s9 + $0xc80] sm:$0xff]
      %v2652 = vld [vmem:[%s9 + $0xc88] sm:$0xff]
      %v2653 = vld [vmem:[%s9 + $0xc90] sm:$0xff]
      %v2654 = vld [vmem:[%s9 + $0xc98] sm:$0xff]
      %v2655 = vld [vmem:[%s9 + $0xca0] sm:$0xff]
      %v2656 = vld [vmem:[%s9 + $0xca8] sm:$0xff]
      %v2657 = vld [vmem:[%s9 + $0xcb0] sm:$0xff]
      %v2658 = vld [vmem:[%s9 + $0xcb8] sm:$0xff]
      %v2659 = vld [vmem:[%s9 + $0xcc0] sm:$0xff]
      %v2660 = vld [vmem:[%s9 + $0xcc8] sm:$0xff]
      %v2661 = vld [vmem:[%s9 + $0xcd0] sm:$0xff]
      %v2662 = vld [vmem:[%s9 + $0xcd8] sm:$0xff]
      %v2663 = vld [vmem:[%s9 + $0xce0] sm:$0xff]
      %v2664 = vld [vmem:[%s9 + $0xce8] sm:$0xff]
      %v2665 = vld [vmem:[%s9 + $0xcf0] sm:$0xff]
      %v2666 = vld [vmem:[%s9 + $0xcf8] sm:$0xff]
      %v2667 = vld [vmem:[%s9 + $0xd00] sm:$0xff]
      %v2668 = vld [vmem:[%s9 + $0xd08] sm:$0xff]
      %v2669 = vld [vmem:[%s9 + $0xd10] sm:$0xff]
      %v2670 = vld [vmem:[%s9 + $0xd18] sm:$0xff]
      %v2671 = vld [vmem:[%s9 + $0xd20] sm:$0xff]
      %v2672 = vld [vmem:[%s9 + $0xd28] sm:$0xff]
      %v2673 = vld [vmem:[%s9 + $0xd30] sm:$0xff]
      %v2674 = vld [vmem:[%s9 + $0xd38] sm:$0xff]
      %v2675 = vld [vmem:[%s9 + $0xd40] sm:$0xff]
      %v2676 = vld [vmem:[%s9 + $0xd48] sm:$0xff]
      %v2677 = vld [vmem:[%s9 + $0xd50] sm:$0xff]
      %v2678 = vld [vmem:[%s9 + $0xd58] sm:$0xff]
      %v2679 = vld [vmem:[%s9 + $0xd60] sm:$0xff]
      %v2680 = vld [vmem:[%s9 + $0xd68] sm:$0xff]
      %v2681 = vld [vmem:[%s9 + $0xd70] sm:$0xff]
      %v2682 = vld [vmem:[%s9 + $0xd78] sm:$0xff]
      %v2683 = vld [vmem:[%s9 + $0xd80] sm:$0xff]
      %v2684 = vld [vmem:[%s9 + $0xd88] sm:$0xff]
      %v2685 = vld [vmem:[%s9 + $0xd90] sm:$0xff]
      %v2686 = vld [vmem:[%s9 + $0xd98] sm:$0xff]
      %v2687 = vld [vmem:[%s9 + $0xda0] sm:$0xff]
      %v2688 = vld [vmem:[%s9 + $0xda8] sm:$0xff]
      %v2689 = vld [vmem:[%s9 + $0xdb0] sm:$0xff]
      %v2690 = vld [vmem:[%s9 + $0xdb8] sm:$0xff]
      %v2691 = vld [vmem:[%s9 + $0xdc0] sm:$0xff]
      %v2692 = vld [vmem:[%s9 + $0xdc8] sm:$0xff]
      %v2693 = vld [vmem:[%s9 + $0xdd0] sm:$0xff]
      %v2694 = vld [vmem:[%s9 + $0xdd8] sm:$0xff]
      %v2695 = vld [vmem:[%s9 + $0xde0] sm:$0xff]
      %v2696 = vld [vmem:[%s9 + $0xde8] sm:$0xff]
      %v2697 = vld [vmem:[%s9 + $0xdf0] sm:$0xff]
      %v2698 = vld [vmem:[%s9 + $0xdf8] sm:$0xff]
      %v2699 = vld [vmem:[%s9 + $0xe00] sm:$0xff]
      %v2700 = vld [vmem:[%s9 + $0xe08] sm:$0xff]
      %v2701 = vld [vmem:[%s9 + $0xe10] sm:$0xff]
      %v2702 = vld [vmem:[%s9 + $0xe18] sm:$0xff]
      %v2703 = vld [vmem:[%s9 + $0xe20] sm:$0xff]
      %v2704 = vld [vmem:[%s9 + $0xe28] sm:$0xff]
      %v2705 = vld [vmem:[%s9 + $0xe30] sm:$0xff]
      %v2706 = vld [vmem:[%s9 + $0xe38] sm:$0xff]
      %v2707 = vld [vmem:[%s9 + $0xe40] sm:$0xff]
      %v2708 = vld [vmem:[%s9 + $0xe48] sm:$0xff]
      %v2709 = vld [vmem:[%s9 + $0xe50] sm:$0xff]
      %v2710 = vld [vmem:[%s9 + $0xe58] sm:$0xff]
      %v2711 = vld [vmem:[%s9 + $0xe60] sm:$0xff]
      %v2712 = vld [vmem:[%s9 + $0xe68] sm:$0xff]
      %v2713 = vld [vmem:[%s9 + $0xe70] sm:$0xff]
      %v2714 = vld [vmem:[%s9 + $0xe78] sm:$0xff]
      %v2715 = vld [vmem:[%s9 + $0xe80] sm:$0xff]
      %v2716 = vld [vmem:[%s9 + $0xe88] sm:$0xff]
      %v2717 = vld [vmem:[%s9 + $0xe90] sm:$0xff]
      %v2718 = vld [vmem:[%s9 + $0xe98] sm:$0xff]
      %v2719 = vld [vmem:[%s9 + $0xea0] sm:$0xff]
      %v2720 = vld [vmem:[%s9 + $0xea8] sm:$0xff]
      %v2721 = vld [vmem:[%s9 + $0xeb0] sm:$0xff]
      %v2722 = vld [vmem:[%s9 + $0xeb8] sm:$0xff]
      %v2723 = vld [vmem:[%s9 + $0xec0] sm:$0xff]
      %v2724 = vld [vmem:[%s9 + $0xec8] sm:$0xff]
      %v2725 = vld [vmem:[%s9 + $0xed0] sm:$0xff]
      %v2726 = vld [vmem:[%s9 + $0xed8] sm:$0xff]
      %v2727 = vld [vmem:[%s9 + $0xee0] sm:$0xff]
      %v2728 = vld [vmem:[%s9 + $0xee8] sm:$0xff]
      %v2729 = vld [vmem:[%s9 + $0xef0] sm:$0xff]
      %v2730 = vld [vmem:[%s9 + $0xef8] sm:$0xff]
      %v2731 = vld [vmem:[%s9 + $0xf00] sm:$0xff]
      %v2732 = vld [vmem:[%s9 + $0xf08] sm:$0xff]
      %v2733 = vld [vmem:[%s9 + $0xf10] sm:$0xff]
      %v2734 = vld [vmem:[%s9 + $0xf18] sm:$0xff]
      %v2735 = vld [vmem:[%s9 + $0xf20] sm:$0xff]
      %v2736 = vld [vmem:[%s9 + $0xf28] sm:$0xff]
      %v2737 = vld [vmem:[%s9 + $0xf30] sm:$0xff]
      %v2738 = vld [vmem:[%s9 + $0xf38] sm:$0xff]
      %v2739 = vld [vmem:[%s9 + $0xf40] sm:$0xff]
      %v2740 = vld [vmem:[%s9 + $0xf48] sm:$0xff]
      %v2741 = vld [vmem:[%s9 + $0xf50] sm:$0xff]
      %v2742 = vld [vmem:[%s9 + $0xf58] sm:$0xff]
      %v2743 = vld [vmem:[%s9 + $0xf60] sm:$0xff]
      %v2744 = vld [vmem:[%s9 + $0xf68] sm:$0xff]
      %v2745 = vld [vmem:[%s9 + $0xf70] sm:$0xff]
      %v2746 = vld [vmem:[%s9 + $0xf78] sm:$0xff]
      %v2747 = vld [vmem:[%s9 + $0xf80] sm:$0xff]
      %v2748 = vld [vmem:[%s9 + $0xf88] sm:$0xff]
      %v2749 = vld [vmem:[%s9 + $0xf90] sm:$0xff]
      %v2750 = vld [vmem:[%s9 + $0xf98] sm:$0xff]
      %v2751 = vld [vmem:[%s9 + $0xfa0] sm:$0xff]
      %v2752 = vld [vmem:[%s9 + $0xfa8] sm:$0xff]
      %v2753 = vld [vmem:[%s9 + $0xfb0] sm:$0xff]
      %v2754 = vld [vmem:[%s9 + $0xfb8] sm:$0xff]
      %v2755 = vld [vmem:[%s9 + $0xfc0] sm:$0xff]
      %v2756 = vld [vmem:[%s9 + $0xfc8] sm:$0xff]
      %v2757 = vld [vmem:[%s9 + $0xfd0] sm:$0xff]
      %v2758 = vld [vmem:[%s9 + $0xfd8] sm:$0xff]
      %v2759 = vld [vmem:[%s9 + $0xfe0] sm:$0xff]
      %v2760 = vld [vmem:[%s9 + $0xfe8] sm:$0xff]
      %v2761 = vld [vmem:[%s9 + $0xff0] sm:$0xff]
      %v2762 = vld [vmem:[%s9 + $0xff8] sm:$0xff]
      %v2763 = vld [vmem:[%s9 + $0x1000] sm:$0xff]
      %v2764 = vld [vmem:[%s9 + $0x1008] sm:$0xff]
      %v2765 = vld [vmem:[%s9 + $0x1010] sm:$0xff]
      %v2766 = vld [vmem:[%s9 + $0x1018] sm:$0xff]
      %v2767 = vld [vmem:[%s9 + $0x1020] sm:$0xff]
      %v2768 = vld [vmem:[%s9 + $0x1028] sm:$0xff]
      %v2769 = vld [vmem:[%s9 + $0x1030] sm:$0xff]
      %v2770 = vld [vmem:[%s9 + $0x1038] sm:$0xff]
      %v2771 = vld [vmem:[%s9 + $0x1040] sm:$0xff]
      %v2772 = vld [vmem:[%s9 + $0x1048] sm:$0xff]
      %v2773 = vld [vmem:[%s9 + $0x1050] sm:$0xff]
      %v2774 = vld [vmem:[%s9 + $0x1058] sm:$0xff]
      %v2775 = vld [vmem:[%s9 + $0x1060] sm:$0xff]
      %v2776 = vld [vmem:[%s9 + $0x1068] sm:$0xff]
      %v2777 = vld [vmem:[%s9 + $0x1070] sm:$0xff]
      %v2778 = vld [vmem:[%s9 + $0x1078] sm:$0xff]
      %v2779 = vld [vmem:[%s9 + $0x1080] sm:$0xff]
      %v2780 = vld [vmem:[%s9 + $0x1088] sm:$0xff]
      %v2781 = vld [vmem:[%s9 + $0x1090] sm:$0xff]
      %v2782 = vld [vmem:[%s9 + $0x1098] sm:$0xff]
      %v2783 = vld [vmem:[%s9 + $0x10a0] sm:$0xff]
      %v2784 = vld [vmem:[%s9 + $0x10a8] sm:$0xff]
      %v2785 = vld [vmem:[%s9 + $0x10b0] sm:$0xff]
      %v2786 = vld [vmem:[%s9 + $0x10b8] sm:$0xff]
      %v2787 = vld [vmem:[%s9 + $0x10c0] sm:$0xff]
      %v2788 = vld [vmem:[%s9 + $0x10c8] sm:$0xff]
      %v2789 = vld [vmem:[%s9 + $0x10d0] sm:$0xff]
      %v2790 = vld [vmem:[%s9 + $0x10d8] sm:$0xff]
      %v2791 = vld [vmem:[%s9 + $0x10e0] sm:$0xff]
      %v2792 = vld [vmem:[%s9 + $0x10e8] sm:$0xff]
      %v2793 = vld [vmem:[%s9 + $0x10f0] sm:$0xff]
      %v2794 = vld [vmem:[%s9 + $0x10f8] sm:$0xff]
      %v2795 = vld [vmem:[%s9 + $0x1100] sm:$0xff]
      %v2796 = vld [vmem:[%s9 + $0x1108] sm:$0xff]
      %v2797 = vld [vmem:[%s9 + $0x1110] sm:$0xff]
      %v2798 = vld [vmem:[%s9 + $0x1118] sm:$0xff]
      %v2799 = vld [vmem:[%s9 + $0x1120] sm:$0xff]
      %v2800 = vld [vmem:[%s9 + $0x1128] sm:$0xff]
      %v2801 = vld [vmem:[%s9 + $0x1130] sm:$0xff]
      %v2802 = vld [vmem:[%s9 + $0x1138] sm:$0xff]
      %v2803 = vld [vmem:[%s9 + $0x1140] sm:$0xff]
      %v2804 = vld [vmem:[%s9 + $0x1148] sm:$0xff]
      %v2805 = vld [vmem:[%s9 + $0x1150] sm:$0xff]
      %v2806 = vld [vmem:[%s9 + $0x1158] sm:$0xff]
      %v2807 = vld [vmem:[%s9 + $0x1160] sm:$0xff]
      %v2808 = vld [vmem:[%s9 + $0x1168] sm:$0xff]
      %v2809 = vld [vmem:[%s9 + $0x1170] sm:$0xff]
      %v2810 = vld [vmem:[%s9 + $0x1178] sm:$0xff]
      %v2811 = vld [vmem:[%s9 + $0x1180] sm:$0xff]
      %v2812 = vld [vmem:[%s9 + $0x1188] sm:$0xff]
      %v2813 = vld [vmem:[%s9 + $0x1190] sm:$0xff]
      %v2814 = vld [vmem:[%s9 + $0x1198] sm:$0xff]
      %v2815 = vld [vmem:[%s9 + $0x11a0] sm:$0xff]
      %v2816 = vld [vmem:[%s9 + $0x11a8] sm:$0xff]
      %v2817 = vld [vmem:[%s9 + $0x11b0] sm:$0xff]
      %v2818 = vld [vmem:[%s9 + $0x11b8] sm:$0xff]
      %v2819 = vld [vmem:[%s9 + $0x11c0] sm:$0xff]
      %v2820 = vld [vmem:[%s9 + $0x11c8] sm:$0xff]
      %v2821 = vld [vmem:[%s9 + $0x11d0] sm:$0xff]
      %v2822 = vld [vmem:[%s9 + $0x11d8] sm:$0xff]
      %v2823 = vld [vmem:[%s9 + $0x11e0] sm:$0xff]
      %v2824 = vld [vmem:[%s9 + $0x11e8] sm:$0xff]
      %v2825 = vld [vmem:[%s9 + $0x11f0] sm:$0xff]
      %v2826 = vld [vmem:[%s9 + $0x11f8] sm:$0xff]
      %v2827 = vld [vmem:[%s9 + $0x1200] sm:$0xff]
      %v2828 = vld [vmem:[%s9 + $0x1208] sm:$0xff]
      %v2829 = vld [vmem:[%s9 + $0x1210] sm:$0xff]
      %v2830 = vld [vmem:[%s9 + $0x1218] sm:$0xff]
      %v2831 = vld [vmem:[%s9 + $0x1220] sm:$0xff]
      %v2832 = vld [vmem:[%s9 + $0x1228] sm:$0xff]
      %v2833 = vld [vmem:[%s9 + $0x1230] sm:$0xff]
      %v2834 = vld [vmem:[%s9 + $0x1238] sm:$0xff]
      %v2835 = vld [vmem:[%s9 + $0x1240] sm:$0xff]
      %v2836 = vld [vmem:[%s9 + $0x1248] sm:$0xff]
      %v2837 = vld [vmem:[%s9 + $0x1250] sm:$0xff]
      %v2838 = vld [vmem:[%s9 + $0x1258] sm:$0xff]
      %v2839 = vld [vmem:[%s9 + $0x1260] sm:$0xff]
      %v2840 = vld [vmem:[%s9 + $0x1268] sm:$0xff]
      %v2841 = vld [vmem:[%s9 + $0x1270] sm:$0xff]
      %v2842 = vld [vmem:[%s9 + $0x1278] sm:$0xff]
      %v2843 = vld [vmem:[%s9 + $0x1280] sm:$0xff]
      %v2844 = vld [vmem:[%s9 + $0x1288] sm:$0xff]
      %v2845 = vld [vmem:[%s9 + $0x1290] sm:$0xff]
      %v2846 = vld [vmem:[%s9 + $0x1298] sm:$0xff]
      %v2847 = vld [vmem:[%s9 + $0x12a0] sm:$0xff]
      %v2848 = vld [vmem:[%s9 + $0x12a8] sm:$0xff]
      %v2849 = vld [vmem:[%s9 + $0x12b0] sm:$0xff]
      %v2850 = vld [vmem:[%s9 + $0x12b8] sm:$0xff]
      %v2851 = vld [vmem:[%s9 + $0x12c0] sm:$0xff]
      %v2852 = vld [vmem:[%s9 + $0x12c8] sm:$0xff]
      %v2853 = vld [vmem:[%s9 + $0x12d0] sm:$0xff]
      %v2854 = vld [vmem:[%s9 + $0x12d8] sm:$0xff]
      %v2855 = vld [vmem:[%s9 + $0x12e0] sm:$0xff]
      %v2856 = vld [vmem:[%s9 + $0x12e8] sm:$0xff]
      %v2857 = vld [vmem:[%s9 + $0x12f0] sm:$0xff]
      %v2858 = vld [vmem:[%s9 + $0x12f8] sm:$0xff]
      %v2859 = vld [vmem:[%s9 + $0x1300] sm:$0xff]
      %v2860 = vld [vmem:[%s9 + $0x1308] sm:$0xff]
      %v2861 = vld [vmem:[%s9 + $0x1310] sm:$0xff]
      %v2862 = vld [vmem:[%s9 + $0x1318] sm:$0xff]
      %v2863 = vld [vmem:[%s9 + $0x1320] sm:$0xff]
      %v2864 = vld [vmem:[%s9 + $0x1328] sm:$0xff]
      %v2865 = vld [vmem:[%s9 + $0x1330] sm:$0xff]
      %v2866 = vld [vmem:[%s9 + $0x1338] sm:$0xff]
      %v2867 = vld [vmem:[%s9 + $0x1340] sm:$0xff]
      %v2868 = vld [vmem:[%s9 + $0x1348] sm:$0xff]
      %v2869 = vld [vmem:[%s9 + $0x1350] sm:$0xff]
      %v2870 = vld [vmem:[%s9 + $0x1358] sm:$0xff]
      %v2871 = vld [vmem:[%s9 + $0x1360] sm:$0xff]
      %v2872 = vld [vmem:[%s9 + $0x1368] sm:$0xff]
      %v2873 = vld [vmem:[%s9 + $0x1370] sm:$0xff]
      %v2874 = vld [vmem:[%s9 + $0x1378] sm:$0xff]
      %v2875 = vld [vmem:[%s9 + $0x1380] sm:$0xff]
      %v2876 = vld [vmem:[%s9 + $0x1388] sm:$0xff]
      %v2877 = vld [vmem:[%s9 + $0x1390] sm:$0xff]
      %v2878 = vld [vmem:[%s9 + $0x1398] sm:$0xff]
      %v2879 = vld [vmem:[%s9 + $0x13a0] sm:$0xff]
      %v2880 = vld [vmem:[%s9 + $0x13a8] sm:$0xff]
      %v2881 = vld [vmem:[%s9 + $0x13b0] sm:$0xff]
      %v2882 = vld [vmem:[%s9 + $0x13b8] sm:$0xff]
      %v2883 = vld [vmem:[%s9 + $0x13c0] sm:$0xff]
      %v2884 = vld [vmem:[%s9 + $0x13c8] sm:$0xff]
      %v2885 = vld [vmem:[%s9 + $0x13d0] sm:$0xff]
      %v2886 = vld [vmem:[%s9 + $0x13d8] sm:$0xff]
      %v2887 = vld [vmem:[%s9 + $0x13e0] sm:$0xff]
      %v2888 = vld [vmem:[%s9 + $0x13e8] sm:$0xff]
      %v2889 = vld [vmem:[%s9 + $0x13f0] sm:$0xff]
      %v2890 = vld [vmem:[%s9 + $0x13f8] sm:$0xff]
      %v2891 = vld [vmem:[%s9 + $0x1400] sm:$0xff]
      %v2892 = vld [vmem:[%s9 + $0x1408] sm:$0xff]
      %v2893 = vld [vmem:[%s9 + $0x1410] sm:$0xff]
      %v2894 = vld [vmem:[%s9 + $0x1418] sm:$0xff]
      %v2895 = vld [vmem:[%s9 + $0x1420] sm:$0xff]
      %v2896 = vld [vmem:[%s9 + $0x1428] sm:$0xff]
      %v2897 = vld [vmem:[%s9 + $0x1430] sm:$0xff]
      %v2898 = vld [vmem:[%s9 + $0x1438] sm:$0xff]
      %v2899 = vld [vmem:[%s9 + $0x1440] sm:$0xff]
      %v2900 = vld [vmem:[%s9 + $0x1448] sm:$0xff]
      %v2901 = vld [vmem:[%s9 + $0x1450] sm:$0xff]
      %v2902 = vld [vmem:[%s9 + $0x1458] sm:$0xff]
      %v2903 = vld [vmem:[%s9 + $0x1460] sm:$0xff]
      %v2904 = vld [vmem:[%s9 + $0x1468] sm:$0xff]
      %v2905 = vld [vmem:[%s9 + $0x1470] sm:$0xff]
      %v2906 = vld [vmem:[%s9 + $0x1478] sm:$0xff]
      %v2907 = vld [vmem:[%s9 + $0x1480] sm:$0xff]
      %v2908 = vld [vmem:[%s9 + $0x1488] sm:$0xff]
      %v2909 = vld [vmem:[%s9 + $0x1490] sm:$0xff]
      %v2910 = vld [vmem:[%s9 + $0x1498] sm:$0xff]
      %v2911 = vld [vmem:[%s9 + $0x14a0] sm:$0xff]
      %v2912 = vld [vmem:[%s9 + $0x14a8] sm:$0xff]
      %v2913 = vld [vmem:[%s9 + $0x14b0] sm:$0xff]
      %v2914 = vld [vmem:[%s9 + $0x14b8] sm:$0xff]
      %v2915 = vld [vmem:[%s9 + $0x14c0] sm:$0xff]
      %v2916 = vld [vmem:[%s9 + $0x14c8] sm:$0xff]
      %v2917 = vld [vmem:[%s9 + $0x14d0] sm:$0xff]
      %v2918 = vld [vmem:[%s9 + $0x14d8] sm:$0xff]
      %v2919 = vld [vmem:[%s9 + $0x14e0] sm:$0xff]
      %v2920 = vld [vmem:[%s9 + $0x14e8] sm:$0xff]
      %v2921 = vld [vmem:[%s9 + $0x14f0] sm:$0xff]
      %v2922 = vld [vmem:[%s9 + $0x14f8] sm:$0xff]
      %v2923 = vld [vmem:[%s9 + $0x1500] sm:$0xff]
      %v2924 = vld [vmem:[%s9 + $0x1508] sm:$0xff]
      %v2925 = vld [vmem:[%s9 + $0x1510] sm:$0xff]
      %v2926 = vld [vmem:[%s9 + $0x1518] sm:$0xff]
      %v2927 = vld [vmem:[%s9 + $0x1520] sm:$0xff]
      %v2928 = vld [vmem:[%s9 + $0x1528] sm:$0xff]
      %v2929 = vld [vmem:[%s9 + $0x1530] sm:$0xff]
      %v2930 = vld [vmem:[%s9 + $0x1538] sm:$0xff]
      %v2931 = vld [vmem:[%s9 + $0x1540] sm:$0xff]
      %v2932 = vld [vmem:[%s9 + $0x1548] sm:$0xff]
      %v2933 = vld [vmem:[%s9 + $0x1550] sm:$0xff]
      %v2934 = vld [vmem:[%s9 + $0x1558] sm:$0xff]
      %v2935 = vld [vmem:[%s9 + $0x1560] sm:$0xff]
      %v2936 = vld [vmem:[%s9 + $0x1568] sm:$0xff]
      %v2937 = vld [vmem:[%s9 + $0x1570] sm:$0xff]
      %v2938 = vld [vmem:[%s9 + $0x1578] sm:$0xff]
      %v2939 = vld [vmem:[%s9 + $0x1580] sm:$0xff]
      %v2940 = vld [vmem:[%s9 + $0x1588] sm:$0xff]
      %v2941 = vld [vmem:[%s9 + $0x1590] sm:$0xff]
      %v2942 = vld [vmem:[%s9 + $0x1598] sm:$0xff]
      %v2943 = vld [vmem:[%s9 + $0x15a0] sm:$0xff]
      %v2944 = vld [vmem:[%s9 + $0x15a8] sm:$0xff]
      %v2945 = vld [vmem:[%s9 + $0x15b0] sm:$0xff]
      %v2946 = vld [vmem:[%s9 + $0x15b8] sm:$0xff]
      %v2947 = vld [vmem:[%s9 + $0x15c0] sm:$0xff]
      %v2948 = vld [vmem:[%s9 + $0x15c8] sm:$0xff]
      %v2949 = vld [vmem:[%s9 + $0x15d0] sm:$0xff]
      %v2950 = vld [vmem:[%s9 + $0x15d8] sm:$0xff]
      %v2951 = vld [vmem:[%s9 + $0x15e0] sm:$0xff]
      %v2952 = vld [vmem:[%s9 + $0x15e8] sm:$0xff]
      %v2953 = vld [vmem:[%s9 + $0x15f0] sm:$0xff]
      %v2954 = vld [vmem:[%s9 + $0x15f8] sm:$0xff]
      %v2955 = vld [vmem:[%s9 + $0x1600] sm:$0xff]
      %v2956 = vld [vmem:[%s9 + $0x1608] sm:$0xff]
      %v2957 = vld [vmem:[%s9 + $0x1610] sm:$0xff]
      %v2958 = vld [vmem:[%s9 + $0x1618] sm:$0xff]
      %v2959 = vld [vmem:[%s9 + $0x1620] sm:$0xff]
      %v2960 = vld [vmem:[%s9 + $0x1628] sm:$0xff]
      %v2961 = vld [vmem:[%s9 + $0x1630] sm:$0xff]
      %v2962 = vld [vmem:[%s9 + $0x1638] sm:$0xff]
      %v2963 = vld [vmem:[%s9 + $0x1640] sm:$0xff]
      %v2964 = vld [vmem:[%s9 + $0x1648] sm:$0xff]
      %v2965 = vld [vmem:[%s9 + $0x1650] sm:$0xff]
      %v2966 = vld [vmem:[%s9 + $0x1658] sm:$0xff]
      %v2967 = vld [vmem:[%s9 + $0x1660] sm:$0xff]
      %v2968 = vld [vmem:[%s9 + $0x1668] sm:$0xff]
      %v2969 = vld [vmem:[%s9 + $0x1670] sm:$0xff]
      %v2970 = vld [vmem:[%s9 + $0x1678] sm:$0xff]
      %v2971 = vld [vmem:[%s9 + $0x1680] sm:$0xff]
      %v2972 = vld [vmem:[%s9 + $0x1688] sm:$0xff]
      %v2973 = vld [vmem:[%s9 + $0x1690] sm:$0xff]
      %v2974 = vld [vmem:[%s9 + $0x1698] sm:$0xff]
      %v2975 = vld [vmem:[%s9 + $0x16a0] sm:$0xff]
      %v2976 = vld [vmem:[%s9 + $0x16a8] sm:$0xff]
      %v2977 = vld [vmem:[%s9 + $0x16b0] sm:$0xff]
      %v2978 = vld [vmem:[%s9 + $0x16b8] sm:$0xff]
      %v2979 = vld [vmem:[%s9 + $0x16c0] sm:$0xff]
      %v2980 = vld [vmem:[%s9 + $0x16c8] sm:$0xff]
      %v2981 = vld [vmem:[%s9 + $0x16d0] sm:$0xff]
      %v2982 = vld [vmem:[%s9 + $0x16d8] sm:$0xff]
      %v2983 = vld [vmem:[%s9 + $0x16e0] sm:$0xff]
      %v2984 = vld [vmem:[%s9 + $0x16e8] sm:$0xff]
      %v2985 = vld [vmem:[%s9 + $0x16f0] sm:$0xff]
      %v2986 = vld [vmem:[%s9 + $0x16f8] sm:$0xff]
      %v2987 = vld [vmem:[%s9 + $0x1700] sm:$0xff]
      %v2988 = vld [vmem:[%s9 + $0x1708] sm:$0xff]
      %v2989 = vld [vmem:[%s9 + $0x1710] sm:$0xff]
      %v2990 = vld [vmem:[%s9 + $0x1718] sm:$0xff]
      %v2991 = vld [vmem:[%s9 + $0x1720] sm:$0xff]
      %v2992 = vld [vmem:[%s9 + $0x1728] sm:$0xff]
      %v2993 = vld [vmem:[%s9 + $0x1730] sm:$0xff]
      %v2994 = vld [vmem:[%s9 + $0x1738] sm:$0xff]
      %v2995 = vld [vmem:[%s9 + $0x1740] sm:$0xff]
      %v2996 = vld [vmem:[%s9 + $0x1748] sm:$0xff]
      %v2997 = vld [vmem:[%s9 + $0x1750] sm:$0xff]
      %v2998 = vld [vmem:[%s9 + $0x1758] sm:$0xff]
      %v2999 = vld [vmem:[%s9 + $0x1760] sm:$0xff]
      %v3000 = vld [vmem:[%s9 + $0x1768] sm:$0xff]
      %v3001 = vld [vmem:[%s9 + $0x1770] sm:$0xff]
      %v3002 = vld [vmem:[%s9 + $0x1778] sm:$0xff]
      %v3003 = vld [vmem:[%s9 + $0x1780] sm:$0xff]
      %v3004 = vld [vmem:[%s9 + $0x1788] sm:$0xff]
      %v3005 = vld [vmem:[%s9 + $0x1790] sm:$0xff]
      %v3006 = vld [vmem:[%s9 + $0x1798] sm:$0xff]
      %v3007 = vld [vmem:[%s9 + $0x17a0] sm:$0xff]
      %v3008 = vld [vmem:[%s9 + $0x17a8] sm:$0xff]
      %v3009 = vld [vmem:[%s9 + $0x17b0] sm:$0xff]
      %v3010 = vld [vmem:[%s9 + $0x17b8] sm:$0xff]
      %v3011 = vld [vmem:[%s9 + $0x17c0] sm:$0xff]
      %v3012 = vld [vmem:[%s9 + $0x17c8] sm:$0xff]
      %v3013 = vld [vmem:[%s9 + $0x17d0] sm:$0xff]
      %v3014 = vld [vmem:[%s9 + $0x17d8] sm:$0xff]
      %v3015 = vld [vmem:[%s9 + $0x17e0] sm:$0xff]
      %v3016 = vld [vmem:[%s9 + $0x17e8] sm:$0xff]
      %v3017 = vld [vmem:[%s9 + $0x17f0] sm:$0xff]
      %v3018 = vld [vmem:[%s9 + $0x17f8] sm:$0xff]
      %v3019 = vld [vmem:[%s9 + $0x1800] sm:$0xff]
      %v3020 = vld [vmem:[%s9 + $0x1808] sm:$0xff]
      %v3021 = vld [vmem:[%s9 + $0x1810] sm:$0xff]
      %v3022 = vld [vmem:[%s9 + $0x1818] sm:$0xff]
      %v3023 = vld [vmem:[%s9 + $0x1820] sm:$0xff]
      %v3024 = vld [vmem:[%s9 + $0x1828] sm:$0xff]
      %v3025 = vld [vmem:[%s9 + $0x1830] sm:$0xff]
      %v3026 = vld [vmem:[%s9 + $0x1838] sm:$0xff]
      %v3027 = vld [vmem:[%s9 + $0x1840] sm:$0xff]
      %v3028 = vld [vmem:[%s9 + $0x1848] sm:$0xff]
      %v3029 = vld [vmem:[%s9 + $0x1850] sm:$0xff]
      %v3030 = vld [vmem:[%s9 + $0x1858] sm:$0xff]
      %v3031 = vld [vmem:[%s9 + $0x1860] sm:$0xff]
      %v3032 = vld [vmem:[%s9 + $0x1868] sm:$0xff]
      %v3033 = vld [vmem:[%s9 + $0x1870] sm:$0xff]
      %v3034 = vld [vmem:[%s9 + $0x1878] sm:$0xff]
      %v3035 = vld [vmem:[%s9 + $0x1880] sm:$0xff]
      %v3036 = vld [vmem:[%s9 + $0x1888] sm:$0xff]
      %v3037 = vld [vmem:[%s9 + $0x1890] sm:$0xff]
      %v3038 = vld [vmem:[%s9 + $0x1898] sm:$0xff]
      %v3039 = vld [vmem:[%s9 + $0x18a0] sm:$0xff]
      %v3040 = vld [vmem:[%s9 + $0x18a8] sm:$0xff]
      %v3041 = vld [vmem:[%s9 + $0x18b0] sm:$0xff]
      %v3042 = vld [vmem:[%s9 + $0x18b8] sm:$0xff]
      %v3043 = vld [vmem:[%s9 + $0x18c0] sm:$0xff]
      %v3044 = vld [vmem:[%s9 + $0x18c8] sm:$0xff]
      %v3045 = vld [vmem:[%s9 + $0x18d0] sm:$0xff]
      %v3046 = vld [vmem:[%s9 + $0x18d8] sm:$0xff]
      %v3047 = vld [vmem:[%s9 + $0x18e0] sm:$0xff]
      %v3048 = vld [vmem:[%s9 + $0x18e8] sm:$0xff]
      %v3049 = vld [vmem:[%s9 + $0x18f0] sm:$0xff]
      %v3050 = vld [vmem:[%s9 + $0x18f8] sm:$0xff]
      %v3051 = vld [vmem:[%s9 + $0x1900] sm:$0xff]
      %v3052 = vld [vmem:[%s9 + $0x1908] sm:$0xff]
      %v3053 = vld [vmem:[%s9 + $0x1910] sm:$0xff]
      %v3054 = vld [vmem:[%s9 + $0x1918] sm:$0xff]
      %v3055 = vld [vmem:[%s9 + $0x1920] sm:$0xff]
      %v3056 = vld [vmem:[%s9 + $0x1928] sm:$0xff]
      %v3057 = vld [vmem:[%s9 + $0x1930] sm:$0xff]
      %v3058 = vld [vmem:[%s9 + $0x1938] sm:$0xff]
      %v3059 = vld [vmem:[%s9 + $0x1940] sm:$0xff]
      %v3060 = vld [vmem:[%s9 + $0x1948] sm:$0xff]
      %v3061 = vld [vmem:[%s9 + $0x1950] sm:$0xff]
      %v3062 = vld [vmem:[%s9 + $0x1958] sm:$0xff]
      %v3063 = vld [vmem:[%s9 + $0x1960] sm:$0xff]
      %v3064 = vld [vmem:[%s9 + $0x1968] sm:$0xff]
      %v3065 = vld [vmem:[%s9 + $0x1970] sm:$0xff]
      %v3066 = vld [vmem:[%s9 + $0x1978] sm:$0xff]
      %v3067 = vld [vmem:[%s9 + $0x1980] sm:$0xff]
      %v3068 = vld [vmem:[%s9 + $0x1988] sm:$0xff]
      %v3069 = vld [vmem:[%s9 + $0x1990] sm:$0xff]
      %v3070 = vld [vmem:[%s9 + $0x1998] sm:$0xff]
      %v3071 = vld [vmem:[%s9 + $0x19a0] sm:$0xff]
      %v3072 = vld [vmem:[%s9 + $0x19a8] sm:$0xff]
      %v3073 = vld [vmem:[%s9 + $0x19b0] sm:$0xff]
      %v3074 = vld [vmem:[%s9 + $0x19b8] sm:$0xff]
      %v3075 = vld [vmem:[%s9 + $0x19c0] sm:$0xff]
      %v3076 = vld [vmem:[%s9 + $0x19c8] sm:$0xff]
      %v3077 = vld [vmem:[%s9 + $0x19d0] sm:$0xff]
      %v3078 = vld [vmem:[%s9 + $0x19d8] sm:$0xff]
      %v3079 = vld [vmem:[%s9 + $0x19e0] sm:$0xff]
      %v3080 = vld [vmem:[%s9 + $0x19e8] sm:$0xff]
      %v3081 = vld [vmem:[%s9 + $0x19f0] sm:$0xff]
      %v3082 = vld [vmem:[%s9 + $0x19f8] sm:$0xff]
      %v3083 = vld [vmem:[%s9 + $0x1a00] sm:$0xff]
      %v3084 = vld [vmem:[%s9 + $0x1a08] sm:$0xff]
      %v3085 = vld [vmem:[%s9 + $0x1a10] sm:$0xff]
      %v3086 = vld [vmem:[%s9 + $0x1a18] sm:$0xff]
      %v3087 = vld [vmem:[%s9 + $0x1a20] sm:$0xff]
      %v3088 = vld [vmem:[%s9 + $0x1a28] sm:$0xff]
      %v3089 = vld [vmem:[%s9 + $0x1a30] sm:$0xff]
      %v3090 = vld [vmem:[%s9 + $0x1a38] sm:$0xff]
      %v3091 = vld [vmem:[%s9 + $0x1a40] sm:$0xff]
      %v3092 = vld [vmem:[%s9 + $0x1a48] sm:$0xff]
      %v3093 = vld [vmem:[%s9 + $0x1a50] sm:$0xff]
      %v3094 = vld [vmem:[%s9 + $0x1a58] sm:$0xff]
      %v3095 = vld [vmem:[%s9 + $0x1a60] sm:$0xff]
      %v3096 = vld [vmem:[%s9 + $0x1a68] sm:$0xff]
      %v3097 = vld [vmem:[%s9 + $0x1a70] sm:$0xff]
      %v3098 = vld [vmem:[%s9 + $0x1a78] sm:$0xff]
      %v3099 = vld [vmem:[%s9 + $0x1a80] sm:$0xff]
      %v3100 = vld [vmem:[%s9 + $0x1a88] sm:$0xff]
      %v3101 = vld [vmem:[%s9 + $0x1a90] sm:$0xff]
      %v3102 = vld [vmem:[%s9 + $0x1a98] sm:$0xff]
      %v3103 = vld [vmem:[%s9 + $0x1aa0] sm:$0xff]
      %v3104 = vld [vmem:[%s9 + $0x1aa8] sm:$0xff]
      %v3105 = vld [vmem:[%s9 + $0x1ab0] sm:$0xff]
      %v3106 = vld [vmem:[%s9 + $0x1ab8] sm:$0xff]
      %v3107 = vld [vmem:[%s9 + $0x1ac0] sm:$0xff]
      %v3108 = vld [vmem:[%s9 + $0x1ac8] sm:$0xff]
      %v3109 = vld [vmem:[%s9 + $0x1ad0] sm:$0xff]
      %v3110 = vld [vmem:[%s9 + $0x1ad8] sm:$0xff]
      %v3111 = vld [vmem:[%s9 + $0x1ae0] sm:$0xff]
      %v3112 = vld [vmem:[%s9 + $0x1ae8] sm:$0xff]
      %v3113 = vld [vmem:[%s9 + $0x1af0] sm:$0xff]
      %v3114 = vld [vmem:[%s9 + $0x1af8] sm:$0xff]
      %v3115 = vld [vmem:[%s9 + $0x1b00] sm:$0xff]
      %v3116 = vld [vmem:[%s9 + $0x1b08] sm:$0xff]
      %v3117 = vld [vmem:[%s9 + $0x1b10] sm:$0xff]
      %v3118 = vld [vmem:[%s9 + $0x1b18] sm:$0xff]
      %v3119 = vld [vmem:[%s9 + $0x1b20] sm:$0xff]
      %v3120 = vld [vmem:[%s9 + $0x1b28] sm:$0xff]
      %v3121 = vld [vmem:[%s9 + $0x1b30] sm:$0xff]
      %v3122 = vld [vmem:[%s9 + $0x1b38] sm:$0xff]
      %v3123 = vld [vmem:[%s9 + $0x1b40] sm:$0xff]
      %v3124 = vld [vmem:[%s9 + $0x1b48] sm:$0xff]
      %v3125 = vld [vmem:[%s9 + $0x1b50] sm:$0xff]
      %v3126 = vld [vmem:[%s9 + $0x1b58] sm:$0xff]
      %v3127 = vld [vmem:[%s9 + $0x1b60] sm:$0xff]
      %v3128 = vld [vmem:[%s9 + $0x1b68] sm:$0xff]
      %v3129 = vld [vmem:[%s9 + $0x1b70] sm:$0xff]
      %v3130 = vld [vmem:[%s9 + $0x1b78] sm:$0xff]
      %v3131 = vld [vmem:[%s9 + $0x1b80] sm:$0xff]
      %v3132 = vld [vmem:[%s9 + $0x1b88] sm:$0xff]
      %v3133 = vld [vmem:[%s9 + $0x1b90] sm:$0xff]
      %v3134 = vld [vmem:[%s9 + $0x1b98] sm:$0xff]
      %v3135 = vld [vmem:[%s9 + $0x1ba0] sm:$0xff]
      %v3136 = vld [vmem:[%s9 + $0x1ba8] sm:$0xff]
      %v3137 = vld [vmem:[%s9 + $0x1bb0] sm:$0xff]
      %v3138 = vld [vmem:[%s9 + $0x1bb8] sm:$0xff]
      %v3139 = vld [vmem:[%s9 + $0x1bc0] sm:$0xff]
      %v3140 = vld [vmem:[%s9 + $0x1bc8] sm:$0xff]
      %v3141 = vld [vmem:[%s9 + $0x1bd0] sm:$0xff]
      %v3142 = vld [vmem:[%s9 + $0x1bd8] sm:$0xff]
      %v3143 = vld [vmem:[%s9 + $0x1be0] sm:$0xff]
      %v3144 = vld [vmem:[%s9 + $0x1be8] sm:$0xff]
      %v3145 = vld [vmem:[%s9 + $0x1bf0] sm:$0xff]
      %v3146 = vld [vmem:[%s9 + $0x1bf8] sm:$0xff]
      %v3147 = vld [vmem:[%s9 + $0x1c00] sm:$0xff]
      %v3148 = vld [vmem:[%s9 + $0x1c08] sm:$0xff]
      %v3149 = vld [vmem:[%s9 + $0x1c10] sm:$0xff]
      %v3150 = vld [vmem:[%s9 + $0x1c18] sm:$0xff]
      %v3151 = vld [vmem:[%s9 + $0x1c20] sm:$0xff]
      %v3152 = vld [vmem:[%s9 + $0x1c28] sm:$0xff]
      %v3153 = vld [vmem:[%s9 + $0x1c30] sm:$0xff]
      %v3154 = vld [vmem:[%s9 + $0x1c38] sm:$0xff]
      %v3155 = vld [vmem:[%s9 + $0x1c40] sm:$0xff]
      %v3156 = vld [vmem:[%s9 + $0x1c48] sm:$0xff]
      %v3157 = vld [vmem:[%s9 + $0x1c50] sm:$0xff]
      %v3158 = vld [vmem:[%s9 + $0x1c58] sm:$0xff]
      %v3159 = vld [vmem:[%s9 + $0x1c60] sm:$0xff]
      %v3160 = vld [vmem:[%s9 + $0x1c68] sm:$0xff]
      %v3161 = vld [vmem:[%s9 + $0x1c70] sm:$0xff]
      %v3162 = vld [vmem:[%s9 + $0x1c78] sm:$0xff]
      %v3163 = vld [vmem:[%s9 + $0x1c80] sm:$0xff]
      %v3164 = vld [vmem:[%s9 + $0x1c88] sm:$0xff]
      %v3165 = vld [vmem:[%s9 + $0x1c90] sm:$0xff]
      %v3166 = vld [vmem:[%s9 + $0x1c98] sm:$0xff]
      %v3167 = vld [vmem:[%s9 + $0x1ca0] sm:$0xff]
      %v3168 = vld [vmem:[%s9 + $0x1ca8] sm:$0xff]
      %v3169 = vld [vmem:[%s9 + $0x1cb0] sm:$0xff]
      %v3170 = vld [vmem:[%s9 + $0x1cb8] sm:$0xff]
      %v3171 = vld [vmem:[%s9 + $0x1cc0] sm:$0xff]
      %v3172 = vld [vmem:[%s9 + $0x1cc8] sm:$0xff]
      %v3173 = vld [vmem:[%s9 + $0x1cd0] sm:$0xff]
      %v3174 = vld [vmem:[%s9 + $0x1cd8] sm:$0xff]
      %v3175 = vld [vmem:[%s9 + $0x1ce0] sm:$0xff]
      %v3176 = vld [vmem:[%s9 + $0x1ce8] sm:$0xff]
      %v3177 = vld [vmem:[%s9 + $0x1cf0] sm:$0xff]
      %v3178 = vld [vmem:[%s9 + $0x1cf8] sm:$0xff]
      %v3179 = vld [vmem:[%s9 + $0x1d00] sm:$0xff]
      %v3180 = vld [vmem:[%s9 + $0x1d08] sm:$0xff]
      %v3181 = vld [vmem:[%s9 + $0x1d10] sm:$0xff]
      %v3182 = vld [vmem:[%s9 + $0x1d18] sm:$0xff]
      %v3183 = vld [vmem:[%s9 + $0x1d20] sm:$0xff]
      %v3184 = vld [vmem:[%s9 + $0x1d28] sm:$0xff]
      %v3185 = vld [vmem:[%s9 + $0x1d30] sm:$0xff]
      %v3186 = vld [vmem:[%s9 + $0x1d38] sm:$0xff]
      %v3187 = vld [vmem:[%s9 + $0x1d40] sm:$0xff]
      %v3188 = vld [vmem:[%s9 + $0x1d48] sm:$0xff]
      %v3189 = vld [vmem:[%s9 + $0x1d50] sm:$0xff]
      %v3190 = vld [vmem:[%s9 + $0x1d58] sm:$0xff]
      %v3191 = vld [vmem:[%s9 + $0x1d60] sm:$0xff]
      %v3192 = vld [vmem:[%s9 + $0x1d68] sm:$0xff]
      %v3193 = vld [vmem:[%s9 + $0x1d70] sm:$0xff]
      %v3194 = vld [vmem:[%s9 + $0x1d78] sm:$0xff]
      %v3195 = vld [vmem:[%s9 + $0x1d80] sm:$0xff]
      %v3196 = vld [vmem:[%s9 + $0x1d88] sm:$0xff]
      %v3197 = vld [vmem:[%s9 + $0x1d90] sm:$0xff]
      %v3198 = vld [vmem:[%s9 + $0x1d98] sm:$0xff]
      %v3199 = vld [vmem:[%s9 + $0x1da0] sm:$0xff]
      %v3200 = vld [vmem:[%s9 + $0x1da8] sm:$0xff]
      %v3201 = vld [vmem:[%s9 + $0x1db0] sm:$0xff]
      %v3202 = vld [vmem:[%s9 + $0x1db8] sm:$0xff]
      %v3203 = vld [vmem:[%s9 + $0x1dc0] sm:$0xff]
      %v3204 = vld [vmem:[%s9 + $0x1dc8] sm:$0xff]
      %v3205 = vld [vmem:[%s9 + $0x1dd0] sm:$0xff]
      %v3206 = vld [vmem:[%s9 + $0x1dd8] sm:$0xff]
      %v3207 = vld [vmem:[%s9 + $0x1de0] sm:$0xff]
      %v3208 = vld [vmem:[%s9 + $0x1de8] sm:$0xff]
      %v3209 = vld [vmem:[%s9 + $0x1df0] sm:$0xff]
      %v3210 = vld [vmem:[%s9 + $0x1df8] sm:$0xff]
      %v3211 = vld [vmem:[%s9 + $0x1e00] sm:$0xff]
      %v3212 = vld [vmem:[%s9 + $0x1e08] sm:$0xff]
      %v3213 = vld [vmem:[%s9 + $0x1e10] sm:$0xff]
      %v3214 = vld [vmem:[%s9 + $0x1e18] sm:$0xff]
      %v3215 = vld [vmem:[%s9 + $0x1e20] sm:$0xff]
      %v3216 = vld [vmem:[%s9 + $0x1e28] sm:$0xff]
      %v3217 = vld [vmem:[%s9 + $0x1e30] sm:$0xff]
      %v3218 = vld [vmem:[%s9 + $0x1e38] sm:$0xff]
      %v3219 = vld [vmem:[%s9 + $0x1e40] sm:$0xff]
      %v3220 = vld [vmem:[%s9 + $0x1e48] sm:$0xff]
      %v3221 = vld [vmem:[%s9 + $0x1e50] sm:$0xff]
      %v3222 = vld [vmem:[%s9 + $0x1e58] sm:$0xff]
      %v3223 = vld [vmem:[%s9 + $0x1e60] sm:$0xff]
      %v3224 = vld [vmem:[%s9 + $0x1e68] sm:$0xff]
      %v3225 = vld [vmem:[%s9 + $0x1e70] sm:$0xff]
      %v3226 = vld [vmem:[%s9 + $0x1e78] sm:$0xff]
      %v3227 = vld [vmem:[%s9 + $0x1e80] sm:$0xff]
      %v3228 = vld [vmem:[%s9 + $0x1e88] sm:$0xff]
      %v3229 = vld [vmem:[%s9 + $0x1e90] sm:$0xff]
      %v3230 = vld [vmem:[%s9 + $0x1e98] sm:$0xff]
      %v3231 = vld [vmem:[%s9 + $0x1ea0] sm:$0xff]
      %v3232 = vld [vmem:[%s9 + $0x1ea8] sm:$0xff]
      %v3233 = vld [vmem:[%s9 + $0x1eb0] sm:$0xff]
      %v3234 = vld [vmem:[%s9 + $0x1eb8] sm:$0xff]
      %v3235 = vld [vmem:[%s9 + $0x1ec0] sm:$0xff]
      %v3236 = vld [vmem:[%s9 + $0x1ec8] sm:$0xff]
      %v3237 = vld [vmem:[%s9 + $0x1ed0] sm:$0xff]
      %v3238 = vld [vmem:[%s9 + $0x1ed8] sm:$0xff]
      %v3239 = vld [vmem:[%s9 + $0x1ee0] sm:$0xff]
      %v3240 = vld [vmem:[%s9 + $0x1ee8] sm:$0xff]
      %v3241 = vld [vmem:[%s9 + $0x1ef0] sm:$0xff]
      %v3242 = vld [vmem:[%s9 + $0x1ef8] sm:$0xff]
      %v3243 = vld [vmem:[%s9 + $0x1f00] sm:$0xff]
      %v3244 = vld [vmem:[%s9 + $0x1f08] sm:$0xff]
      %v3245 = vld [vmem:[%s9 + $0x1f10] sm:$0xff]
      %v3246 = vld [vmem:[%s9 + $0x1f18] sm:$0xff]
      %v3247 = vld [vmem:[%s9 + $0x1f20] sm:$0xff]
      %v3248 = vld [vmem:[%s9 + $0x1f28] sm:$0xff]
      %v3249 = vld [vmem:[%s9 + $0x1f30] sm:$0xff]
      %v3250 = vld [vmem:[%s9 + $0x1f38] sm:$0xff]
      %v3251 = vld [vmem:[%s9 + $0x1f40] sm:$0xff]
      %v3252 = vld [vmem:[%s9 + $0x1f48] sm:$0xff]
      %v3253 = vld [vmem:[%s9 + $0x1f50] sm:$0xff]
      %v3254 = vld [vmem:[%s9 + $0x1f58] sm:$0xff]
      %v3255 = vld [vmem:[%s9 + $0x1f60] sm:$0xff]
      %v3256 = vld [vmem:[%s9 + $0x1f68] sm:$0xff]
      %v3257 = vld [vmem:[%s9 + $0x1f70] sm:$0xff]
      %v3258 = vld [vmem:[%s9 + $0x1f78] sm:$0xff]
      %v3259 = vld [vmem:[%s9 + $0x1f80] sm:$0xff]
      %v3260 = vld [vmem:[%s9 + $0x1f88] sm:$0xff]
      %v3261 = vld [vmem:[%s9 + $0x1f90] sm:$0xff]
      %v3262 = vld [vmem:[%s9 + $0x1f98] sm:$0xff]
      %v3263 = vld [vmem:[%s9 + $0x1fa0] sm:$0xff]
      %v3264 = vld [vmem:[%s9 + $0x1fa8] sm:$0xff]
      %v3265 = vld [vmem:[%s9 + $0x1fb0] sm:$0xff]
      %v3266 = vld [vmem:[%s9 + $0x1fb8] sm:$0xff]
      %v3267 = vld [vmem:[%s9 + $0x1fc0] sm:$0xff]
      %v3268 = vld [vmem:[%s9 + $0x1fc8] sm:$0xff]
      %v3269 = vld [vmem:[%s9 + $0x1fd0] sm:$0xff]
      %v3270 = vld [vmem:[%s9 + $0x1fd8] sm:$0xff]
      %v3271 = vld [vmem:[%s9 + $0x1fe0] sm:$0xff]
      %v3272 = vld [vmem:[%s9 + $0x1fe8] sm:$0xff]
      %v3273 = vld [vmem:[%s9 + $0x1ff0] sm:$0xff]
      %v3274 = vld [vmem:[%s9 + $0x1ff8] sm:$0xff]
      %3275 = vmatpush.msra.mxu0 %v2731
      %3276 = vmatpush.msra.mxu0 %v2699
      %3277 = vmatpush.msra.mxu0 %v2667
      %3278 = vmatpush.msra.mxu0 %v2635
      %3279 = vmatpush.msra.mxu0 %v2603
      %3280 = vmatpush.msra.mxu0 %v2571
      %3281 = vmatpush.msra.mxu0 %v2539
      %3282 = vmatpush.msra.mxu0 %v2507
      %3283 = vmatpush.msra.mxu0 %v2475
      %3284 = vmatpush.msra.mxu0 %v2443
      %3285 = vmatpush.msra.mxu0 %v2411
      %3286 = vmatpush.msra.mxu0 %v2379
      %3287 = vmatpush.msra.mxu0 %v2347
      %3288 = vmatpush.msra.mxu0 %v2315
      %3289 = vmatpush.msra.mxu0 %v2283
      %3290 = vmatpush.msra.mxu0 %v2251
      %3291 = vmatmul.f32.gmra.mxu0 %v2209
      %v3292 = vpop.f32.mrf.mxu0
      %v3293 = vadd.f32 0.0, %v3292
      %3294 = vdwg.mxu0
      %3295 = vmatpush.msra.mxu0 %v3243
      %3296 = vmatpush.msra.mxu0 %v3211
      %3297 = vmatpush.msra.mxu0 %v3179
      %3298 = vmatpush.msra.mxu0 %v3147
      %3299 = vmatpush.msra.mxu0 %v3115
      %3300 = vmatpush.msra.mxu0 %v3083
      %3301 = vmatpush.msra.mxu0 %v3051
      %3302 = vmatpush.msra.mxu0 %v3019
      %3303 = vmatpush.msra.mxu0 %v2987
      %3304 = vmatpush.msra.mxu0 %v2955
      %3305 = vmatpush.msra.mxu0 %v2923
      %3306 = vmatpush.msra.mxu0 %v2891
      %3307 = vmatpush.msra.mxu0 %v2859
      %3308 = vmatpush.msra.mxu0 %v2827
      %3309 = vmatpush.msra.mxu0 %v2795
      %3310 = vmatpush.msra.mxu0 %v2763
      %3311 = vmatmul.f32.gmra.mxu0 %v2249
      %v3312 = vpop.f32.mrf.mxu0
      %v3313 = vadd.f32 %v3293, %v3312
      %3314 = vdwg.mxu0
      %3315 = vmatpush.msra.mxu0 %v2732
      %3316 = vmatpush.msra.mxu0 %v2700
      %3317 = vmatpush.msra.mxu0 %v2668
      %3318 = vmatpush.msra.mxu0 %v2636
      %3319 = vmatpush.msra.mxu0 %v2604
      %3320 = vmatpush.msra.mxu0 %v2572
      %3321 = vmatpush.msra.mxu0 %v2540
      %3322 = vmatpush.msra.mxu0 %v2508
      %3323 = vmatpush.msra.mxu0 %v2476
      %3324 = vmatpush.msra.mxu0 %v2444
      %3325 = vmatpush.msra.mxu0 %v2412
      %3326 = vmatpush.msra.mxu0 %v2380
      %3327 = vmatpush.msra.mxu0 %v2348
      %3328 = vmatpush.msra.mxu0 %v2316
      %3329 = vmatpush.msra.mxu0 %v2284
      %3330 = vmatpush.msra.mxu0 %v2252
      %3331 = vmatmul.f32.gmra.mxu0 %v2209
      %v3332 = vpop.f32.mrf.mxu0
      %v3333 = vadd.f32 0.0, %v3332
      %3334 = vdwg.mxu0
      %3335 = vmatpush.msra.mxu0 %v3244
      %3336 = vmatpush.msra.mxu0 %v3212
      %3337 = vmatpush.msra.mxu0 %v3180
      %3338 = vmatpush.msra.mxu0 %v3148
      %3339 = vmatpush.msra.mxu0 %v3116
      %3340 = vmatpush.msra.mxu0 %v3084
      %3341 = vmatpush.msra.mxu0 %v3052
      %3342 = vmatpush.msra.mxu0 %v3020
      %3343 = vmatpush.msra.mxu0 %v2988
      %3344 = vmatpush.msra.mxu0 %v2956
      %3345 = vmatpush.msra.mxu0 %v2924
      %3346 = vmatpush.msra.mxu0 %v2892
      %3347 = vmatpush.msra.mxu0 %v2860
      %3348 = vmatpush.msra.mxu0 %v2828
      %3349 = vmatpush.msra.mxu0 %v2796
      %3350 = vmatpush.msra.mxu0 %v2764
      %3351 = vmatmul.f32.gmra.mxu0 %v2249
      %v3352 = vpop.f32.mrf.mxu0
      %v3353 = vadd.f32 %v3333, %v3352
      %3354 = vdwg.mxu0
      %3355 = vmatpush.msra.mxu0 %v2733
      %3356 = vmatpush.msra.mxu0 %v2701
      %3357 = vmatpush.msra.mxu0 %v2669
      %3358 = vmatpush.msra.mxu0 %v2637
      %3359 = vmatpush.msra.mxu0 %v2605
      %3360 = vmatpush.msra.mxu0 %v2573
      %3361 = vmatpush.msra.mxu0 %v2541
      %3362 = vmatpush.msra.mxu0 %v2509
      %3363 = vmatpush.msra.mxu0 %v2477
      %3364 = vmatpush.msra.mxu0 %v2445
      %3365 = vmatpush.msra.mxu0 %v2413
      %3366 = vmatpush.msra.mxu0 %v2381
      %3367 = vmatpush.msra.mxu0 %v2349
      %3368 = vmatpush.msra.mxu0 %v2317
      %3369 = vmatpush.msra.mxu0 %v2285
      %3370 = vmatpush.msra.mxu0 %v2253
      %3371 = vmatmul.f32.gmra.mxu0 %v2209
      %v3372 = vpop.f32.mrf.mxu0
      %v3373 = vadd.f32 0.0, %v3372
      %3374 = vdwg.mxu0
      %3375 = vmatpush.msra.mxu0 %v3245
      %3376 = vmatpush.msra.mxu0 %v3213
      %3377 = vmatpush.msra.mxu0 %v3181
      %3378 = vmatpush.msra.mxu0 %v3149
      %3379 = vmatpush.msra.mxu0 %v3117
      %3380 = vmatpush.msra.mxu0 %v3085
      %3381 = vmatpush.msra.mxu0 %v3053
      %3382 = vmatpush.msra.mxu0 %v3021
      %3383 = vmatpush.msra.mxu0 %v2989
      %3384 = vmatpush.msra.mxu0 %v2957
      %3385 = vmatpush.msra.mxu0 %v2925
      %3386 = vmatpush.msra.mxu0 %v2893
      %3387 = vmatpush.msra.mxu0 %v2861
      %3388 = vmatpush.msra.mxu0 %v2829
      %3389 = vmatpush.msra.mxu0 %v2797
      %3390 = vmatpush.msra.mxu0 %v2765
      %3391 = vmatmul.f32.gmra.mxu0 %v2249
      %v3392 = vpop.f32.mrf.mxu0
      %v3393 = vadd.f32 %v3373, %v3392
      %3394 = vdwg.mxu0
      %3395 = vmatpush.msra.mxu0 %v2734
      %3396 = vmatpush.msra.mxu0 %v2702
      %3397 = vmatpush.msra.mxu0 %v2670
      %3398 = vmatpush.msra.mxu0 %v2638
      %3399 = vmatpush.msra.mxu0 %v2606
      %3400 = vmatpush.msra.mxu0 %v2574
      %3401 = vmatpush.msra.mxu0 %v2542
      %3402 = vmatpush.msra.mxu0 %v2510
      %3403 = vmatpush.msra.mxu0 %v2478
      %3404 = vmatpush.msra.mxu0 %v2446
      %3405 = vmatpush.msra.mxu0 %v2414
      %3406 = vmatpush.msra.mxu0 %v2382
      %3407 = vmatpush.msra.mxu0 %v2350
      %3408 = vmatpush.msra.mxu0 %v2318
      %3409 = vmatpush.msra.mxu0 %v2286
      %3410 = vmatpush.msra.mxu0 %v2254
      %3411 = vmatmul.f32.gmra.mxu0 %v2209
      %v3412 = vpop.f32.mrf.mxu0
      %v3413 = vadd.f32 0.0, %v3412
      %3414 = vdwg.mxu0
      %3415 = vmatpush.msra.mxu0 %v3246
      %3416 = vmatpush.msra.mxu0 %v3214
      %3417 = vmatpush.msra.mxu0 %v3182
      %3418 = vmatpush.msra.mxu0 %v3150
      %3419 = vmatpush.msra.mxu0 %v3118
      %3420 = vmatpush.msra.mxu0 %v3086
      %3421 = vmatpush.msra.mxu0 %v3054
      %3422 = vmatpush.msra.mxu0 %v3022
      %3423 = vmatpush.msra.mxu0 %v2990
      %3424 = vmatpush.msra.mxu0 %v2958
      %3425 = vmatpush.msra.mxu0 %v2926
      %3426 = vmatpush.msra.mxu0 %v2894
      %3427 = vmatpush.msra.mxu0 %v2862
      %3428 = vmatpush.msra.mxu0 %v2830
      %3429 = vmatpush.msra.mxu0 %v2798
      %3430 = vmatpush.msra.mxu0 %v2766
      %3431 = vmatmul.f32.gmra.mxu0 %v2249
      %v3432 = vpop.f32.mrf.mxu0
      %v3433 = vadd.f32 %v3413, %v3432
      %3434 = vdwg.mxu0
      %3435 = vmatpush.msra.mxu0 %v2735
      %3436 = vmatpush.msra.mxu0 %v2703
      %3437 = vmatpush.msra.mxu0 %v2671
      %3438 = vmatpush.msra.mxu0 %v2639
      %3439 = vmatpush.msra.mxu0 %v2607
      %3440 = vmatpush.msra.mxu0 %v2575
      %3441 = vmatpush.msra.mxu0 %v2543
      %3442 = vmatpush.msra.mxu0 %v2511
      %3443 = vmatpush.msra.mxu0 %v2479
      %3444 = vmatpush.msra.mxu0 %v2447
      %3445 = vmatpush.msra.mxu0 %v2415
      %3446 = vmatpush.msra.mxu0 %v2383
      %3447 = vmatpush.msra.mxu0 %v2351
      %3448 = vmatpush.msra.mxu0 %v2319
      %3449 = vmatpush.msra.mxu0 %v2287
      %3450 = vmatpush.msra.mxu0 %v2255
      %3451 = vmatmul.f32.gmra.mxu0 %v2209
      %v3452 = vpop.f32.mrf.mxu0
      %v3453 = vadd.f32 0.0, %v3452
      %3454 = vdwg.mxu0
      %3455 = vmatpush.msra.mxu0 %v3247
      %3456 = vmatpush.msra.mxu0 %v3215
      %3457 = vmatpush.msra.mxu0 %v3183
      %3458 = vmatpush.msra.mxu0 %v3151
      %3459 = vmatpush.msra.mxu0 %v3119
      %3460 = vmatpush.msra.mxu0 %v3087
      %3461 = vmatpush.msra.mxu0 %v3055
      %3462 = vmatpush.msra.mxu0 %v3023
      %3463 = vmatpush.msra.mxu0 %v2991
      %3464 = vmatpush.msra.mxu0 %v2959
      %3465 = vmatpush.msra.mxu0 %v2927
      %3466 = vmatpush.msra.mxu0 %v2895
      %3467 = vmatpush.msra.mxu0 %v2863
      %3468 = vmatpush.msra.mxu0 %v2831
      %3469 = vmatpush.msra.mxu0 %v2799
      %3470 = vmatpush.msra.mxu0 %v2767
      %3471 = vmatmul.f32.gmra.mxu0 %v2249
      %v3472 = vpop.f32.mrf.mxu0
      %v3473 = vadd.f32 %v3453, %v3472
      %3474 = vdwg.mxu0
      %3475 = vmatpush.msra.mxu0 %v2736
      %3476 = vmatpush.msra.mxu0 %v2704
      %3477 = vmatpush.msra.mxu0 %v2672
      %3478 = vmatpush.msra.mxu0 %v2640
      %3479 = vmatpush.msra.mxu0 %v2608
      %3480 = vmatpush.msra.mxu0 %v2576
      %3481 = vmatpush.msra.mxu0 %v2544
      %3482 = vmatpush.msra.mxu0 %v2512
      %3483 = vmatpush.msra.mxu0 %v2480
      %3484 = vmatpush.msra.mxu0 %v2448
      %3485 = vmatpush.msra.mxu0 %v2416
      %3486 = vmatpush.msra.mxu0 %v2384
      %3487 = vmatpush.msra.mxu0 %v2352
      %3488 = vmatpush.msra.mxu0 %v2320
      %3489 = vmatpush.msra.mxu0 %v2288
      %3490 = vmatpush.msra.mxu0 %v2256
      %3491 = vmatmul.f32.gmra.mxu0 %v2209
      %v3492 = vpop.f32.mrf.mxu0
      %v3493 = vadd.f32 0.0, %v3492
      %3494 = vdwg.mxu0
      %3495 = vmatpush.msra.mxu0 %v3248
      %3496 = vmatpush.msra.mxu0 %v3216
      %3497 = vmatpush.msra.mxu0 %v3184
      %3498 = vmatpush.msra.mxu0 %v3152
      %3499 = vmatpush.msra.mxu0 %v3120
      %3500 = vmatpush.msra.mxu0 %v3088
      %3501 = vmatpush.msra.mxu0 %v3056
      %3502 = vmatpush.msra.mxu0 %v3024
      %3503 = vmatpush.msra.mxu0 %v2992
      %3504 = vmatpush.msra.mxu0 %v2960
      %3505 = vmatpush.msra.mxu0 %v2928
      %3506 = vmatpush.msra.mxu0 %v2896
      %3507 = vmatpush.msra.mxu0 %v2864
      %3508 = vmatpush.msra.mxu0 %v2832
      %3509 = vmatpush.msra.mxu0 %v2800
      %3510 = vmatpush.msra.mxu0 %v2768
      %3511 = vmatmul.f32.gmra.mxu0 %v2249
      %v3512 = vpop.f32.mrf.mxu0
      %v3513 = vadd.f32 %v3493, %v3512
      %3514 = vdwg.mxu0
      %3515 = vmatpush.msra.mxu0 %v2737
      %3516 = vmatpush.msra.mxu0 %v2705
      %3517 = vmatpush.msra.mxu0 %v2673
      %3518 = vmatpush.msra.mxu0 %v2641
      %3519 = vmatpush.msra.mxu0 %v2609
      %3520 = vmatpush.msra.mxu0 %v2577
      %3521 = vmatpush.msra.mxu0 %v2545
      %3522 = vmatpush.msra.mxu0 %v2513
      %3523 = vmatpush.msra.mxu0 %v2481
      %3524 = vmatpush.msra.mxu0 %v2449
      %3525 = vmatpush.msra.mxu0 %v2417
      %3526 = vmatpush.msra.mxu0 %v2385
      %3527 = vmatpush.msra.mxu0 %v2353
      %3528 = vmatpush.msra.mxu0 %v2321
      %3529 = vmatpush.msra.mxu0 %v2289
      %3530 = vmatpush.msra.mxu0 %v2257
      %3531 = vmatmul.f32.gmra.mxu0 %v2209
      %v3532 = vpop.f32.mrf.mxu0
      %v3533 = vadd.f32 0.0, %v3532
      %3534 = vdwg.mxu0
      %3535 = vmatpush.msra.mxu0 %v3249
      %3536 = vmatpush.msra.mxu0 %v3217
      %3537 = vmatpush.msra.mxu0 %v3185
      %3538 = vmatpush.msra.mxu0 %v3153
      %3539 = vmatpush.msra.mxu0 %v3121
      %3540 = vmatpush.msra.mxu0 %v3089
      %3541 = vmatpush.msra.mxu0 %v3057
      %3542 = vmatpush.msra.mxu0 %v3025
      %3543 = vmatpush.msra.mxu0 %v2993
      %3544 = vmatpush.msra.mxu0 %v2961
      %3545 = vmatpush.msra.mxu0 %v2929
      %3546 = vmatpush.msra.mxu0 %v2897
      %3547 = vmatpush.msra.mxu0 %v2865
      %3548 = vmatpush.msra.mxu0 %v2833
      %3549 = vmatpush.msra.mxu0 %v2801
      %3550 = vmatpush.msra.mxu0 %v2769
      %3551 = vmatmul.f32.gmra.mxu0 %v2249
      %v3552 = vpop.f32.mrf.mxu0
      %v3553 = vadd.f32 %v3533, %v3552
      %3554 = vdwg.mxu0
      %3555 = vmatpush.msra.mxu0 %v2738
      %3556 = vmatpush.msra.mxu0 %v2706
      %3557 = vmatpush.msra.mxu0 %v2674
      %3558 = vmatpush.msra.mxu0 %v2642
      %3559 = vmatpush.msra.mxu0 %v2610
      %3560 = vmatpush.msra.mxu0 %v2578
      %3561 = vmatpush.msra.mxu0 %v2546
      %3562 = vmatpush.msra.mxu0 %v2514
      %3563 = vmatpush.msra.mxu0 %v2482
      %3564 = vmatpush.msra.mxu0 %v2450
      %3565 = vmatpush.msra.mxu0 %v2418
      %3566 = vmatpush.msra.mxu0 %v2386
      %3567 = vmatpush.msra.mxu0 %v2354
      %3568 = vmatpush.msra.mxu0 %v2322
      %3569 = vmatpush.msra.mxu0 %v2290
      %3570 = vmatpush.msra.mxu0 %v2258
      %3571 = vmatmul.f32.gmra.mxu0 %v2209
      %v3572 = vpop.f32.mrf.mxu0
      %v3573 = vadd.f32 0.0, %v3572
      %3574 = vdwg.mxu0
      %3575 = vmatpush.msra.mxu0 %v3250
      %3576 = vmatpush.msra.mxu0 %v3218
      %3577 = vmatpush.msra.mxu0 %v3186
      %3578 = vmatpush.msra.mxu0 %v3154
      %3579 = vmatpush.msra.mxu0 %v3122
      %3580 = vmatpush.msra.mxu0 %v3090
      %3581 = vmatpush.msra.mxu0 %v3058
      %3582 = vmatpush.msra.mxu0 %v3026
      %3583 = vmatpush.msra.mxu0 %v2994
      %3584 = vmatpush.msra.mxu0 %v2962
      %3585 = vmatpush.msra.mxu0 %v2930
      %3586 = vmatpush.msra.mxu0 %v2898
      %3587 = vmatpush.msra.mxu0 %v2866
      %3588 = vmatpush.msra.mxu0 %v2834
      %3589 = vmatpush.msra.mxu0 %v2802
      %3590 = vmatpush.msra.mxu0 %v2770
      %3591 = vmatmul.f32.gmra.mxu0 %v2249
      %v3592 = vpop.f32.mrf.mxu0
      %v3593 = vadd.f32 %v3573, %v3592
      %3594 = vdwg.mxu0
      %3595 = vmatpush.msra.mxu0 %v2739
      %3596 = vmatpush.msra.mxu0 %v2707
      %3597 = vmatpush.msra.mxu0 %v2675
      %3598 = vmatpush.msra.mxu0 %v2643
      %3599 = vmatpush.msra.mxu0 %v2611
      %3600 = vmatpush.msra.mxu0 %v2579
      %3601 = vmatpush.msra.mxu0 %v2547
      %3602 = vmatpush.msra.mxu0 %v2515
      %3603 = vmatpush.msra.mxu0 %v2483
      %3604 = vmatpush.msra.mxu0 %v2451
      %3605 = vmatpush.msra.mxu0 %v2419
      %3606 = vmatpush.msra.mxu0 %v2387
      %3607 = vmatpush.msra.mxu0 %v2355
      %3608 = vmatpush.msra.mxu0 %v2323
      %3609 = vmatpush.msra.mxu0 %v2291
      %3610 = vmatpush.msra.mxu0 %v2259
      %3611 = vmatmul.f32.gmra.mxu0 %v2209
      %v3612 = vpop.f32.mrf.mxu0
      %v3613 = vadd.f32 0.0, %v3612
      %3614 = vdwg.mxu0
      %3615 = vmatpush.msra.mxu0 %v3251
      %3616 = vmatpush.msra.mxu0 %v3219
      %3617 = vmatpush.msra.mxu0 %v3187
      %3618 = vmatpush.msra.mxu0 %v3155
      %3619 = vmatpush.msra.mxu0 %v3123
      %3620 = vmatpush.msra.mxu0 %v3091
      %3621 = vmatpush.msra.mxu0 %v3059
      %3622 = vmatpush.msra.mxu0 %v3027
      %3623 = vmatpush.msra.mxu0 %v2995
      %3624 = vmatpush.msra.mxu0 %v2963
      %3625 = vmatpush.msra.mxu0 %v2931
      %3626 = vmatpush.msra.mxu0 %v2899
      %3627 = vmatpush.msra.mxu0 %v2867
      %3628 = vmatpush.msra.mxu0 %v2835
      %3629 = vmatpush.msra.mxu0 %v2803
      %3630 = vmatpush.msra.mxu0 %v2771
      %3631 = vmatmul.f32.gmra.mxu0 %v2249
      %v3632 = vpop.f32.mrf.mxu0
      %v3633 = vadd.f32 %v3613, %v3632
      %3634 = vdwg.mxu0
      %3635 = vmatpush.msra.mxu0 %v2740
      %3636 = vmatpush.msra.mxu0 %v2708
      %3637 = vmatpush.msra.mxu0 %v2676
      %3638 = vmatpush.msra.mxu0 %v2644
      %3639 = vmatpush.msra.mxu0 %v2612
      %3640 = vmatpush.msra.mxu0 %v2580
      %3641 = vmatpush.msra.mxu0 %v2548
      %3642 = vmatpush.msra.mxu0 %v2516
      %3643 = vmatpush.msra.mxu0 %v2484
      %3644 = vmatpush.msra.mxu0 %v2452
      %3645 = vmatpush.msra.mxu0 %v2420
      %3646 = vmatpush.msra.mxu0 %v2388
      %3647 = vmatpush.msra.mxu0 %v2356
      %3648 = vmatpush.msra.mxu0 %v2324
      %3649 = vmatpush.msra.mxu0 %v2292
      %3650 = vmatpush.msra.mxu0 %v2260
      %3651 = vmatmul.f32.gmra.mxu0 %v2209
      %v3652 = vpop.f32.mrf.mxu0
      %v3653 = vadd.f32 0.0, %v3652
      %3654 = vdwg.mxu0
      %3655 = vmatpush.msra.mxu0 %v3252
      %3656 = vmatpush.msra.mxu0 %v3220
      %3657 = vmatpush.msra.mxu0 %v3188
      %3658 = vmatpush.msra.mxu0 %v3156
      %3659 = vmatpush.msra.mxu0 %v3124
      %3660 = vmatpush.msra.mxu0 %v3092
      %3661 = vmatpush.msra.mxu0 %v3060
      %3662 = vmatpush.msra.mxu0 %v3028
      %3663 = vmatpush.msra.mxu0 %v2996
      %3664 = vmatpush.msra.mxu0 %v2964
      %3665 = vmatpush.msra.mxu0 %v2932
      %3666 = vmatpush.msra.mxu0 %v2900
      %3667 = vmatpush.msra.mxu0 %v2868
      %3668 = vmatpush.msra.mxu0 %v2836
      %3669 = vmatpush.msra.mxu0 %v2804
      %3670 = vmatpush.msra.mxu0 %v2772
      %3671 = vmatmul.f32.gmra.mxu0 %v2249
      %v3672 = vpop.f32.mrf.mxu0
      %v3673 = vadd.f32 %v3653, %v3672
      %3674 = vdwg.mxu0
      %3675 = vmatpush.msra.mxu0 %v2741
      %3676 = vmatpush.msra.mxu0 %v2709
      %3677 = vmatpush.msra.mxu0 %v2677
      %3678 = vmatpush.msra.mxu0 %v2645
      %3679 = vmatpush.msra.mxu0 %v2613
      %3680 = vmatpush.msra.mxu0 %v2581
      %3681 = vmatpush.msra.mxu0 %v2549
      %3682 = vmatpush.msra.mxu0 %v2517
      %3683 = vmatpush.msra.mxu0 %v2485
      %3684 = vmatpush.msra.mxu0 %v2453
      %3685 = vmatpush.msra.mxu0 %v2421
      %3686 = vmatpush.msra.mxu0 %v2389
      %3687 = vmatpush.msra.mxu0 %v2357
      %3688 = vmatpush.msra.mxu0 %v2325
      %3689 = vmatpush.msra.mxu0 %v2293
      %3690 = vmatpush.msra.mxu0 %v2261
      %3691 = vmatmul.f32.gmra.mxu0 %v2209
      %v3692 = vpop.f32.mrf.mxu0
      %v3693 = vadd.f32 0.0, %v3692
      %3694 = vdwg.mxu0
      %3695 = vmatpush.msra.mxu0 %v3253
      %3696 = vmatpush.msra.mxu0 %v3221
      %3697 = vmatpush.msra.mxu0 %v3189
      %3698 = vmatpush.msra.mxu0 %v3157
      %3699 = vmatpush.msra.mxu0 %v3125
      %3700 = vmatpush.msra.mxu0 %v3093
      %3701 = vmatpush.msra.mxu0 %v3061
      %3702 = vmatpush.msra.mxu0 %v3029
      %3703 = vmatpush.msra.mxu0 %v2997
      %3704 = vmatpush.msra.mxu0 %v2965
      %3705 = vmatpush.msra.mxu0 %v2933
      %3706 = vmatpush.msra.mxu0 %v2901
      %3707 = vmatpush.msra.mxu0 %v2869
      %3708 = vmatpush.msra.mxu0 %v2837
      %3709 = vmatpush.msra.mxu0 %v2805
      %3710 = vmatpush.msra.mxu0 %v2773
      %3711 = vmatmul.f32.gmra.mxu0 %v2249
      %v3712 = vpop.f32.mrf.mxu0
      %v3713 = vadd.f32 %v3693, %v3712
      %3714 = vdwg.mxu0
      %3715 = vmatpush.msra.mxu0 %v2742
      %3716 = vmatpush.msra.mxu0 %v2710
      %3717 = vmatpush.msra.mxu0 %v2678
      %3718 = vmatpush.msra.mxu0 %v2646
      %3719 = vmatpush.msra.mxu0 %v2614
      %3720 = vmatpush.msra.mxu0 %v2582
      %3721 = vmatpush.msra.mxu0 %v2550
      %3722 = vmatpush.msra.mxu0 %v2518
      %3723 = vmatpush.msra.mxu0 %v2486
      %3724 = vmatpush.msra.mxu0 %v2454
      %3725 = vmatpush.msra.mxu0 %v2422
      %3726 = vmatpush.msra.mxu0 %v2390
      %3727 = vmatpush.msra.mxu0 %v2358
      %3728 = vmatpush.msra.mxu0 %v2326
      %3729 = vmatpush.msra.mxu0 %v2294
      %3730 = vmatpush.msra.mxu0 %v2262
      %3731 = vmatmul.f32.gmra.mxu0 %v2209
      %v3732 = vpop.f32.mrf.mxu0
      %v3733 = vadd.f32 0.0, %v3732
      %3734 = vdwg.mxu0
      %3735 = vmatpush.msra.mxu0 %v3254
      %3736 = vmatpush.msra.mxu0 %v3222
      %3737 = vmatpush.msra.mxu0 %v3190
      %3738 = vmatpush.msra.mxu0 %v3158
      %3739 = vmatpush.msra.mxu0 %v3126
      %3740 = vmatpush.msra.mxu0 %v3094
      %3741 = vmatpush.msra.mxu0 %v3062
      %3742 = vmatpush.msra.mxu0 %v3030
      %3743 = vmatpush.msra.mxu0 %v2998
      %3744 = vmatpush.msra.mxu0 %v2966
      %3745 = vmatpush.msra.mxu0 %v2934
      %3746 = vmatpush.msra.mxu0 %v2902
      %3747 = vmatpush.msra.mxu0 %v2870
      %3748 = vmatpush.msra.mxu0 %v2838
      %3749 = vmatpush.msra.mxu0 %v2806
      %3750 = vmatpush.msra.mxu0 %v2774
      %3751 = vmatmul.f32.gmra.mxu0 %v2249
      %v3752 = vpop.f32.mrf.mxu0
      %v3753 = vadd.f32 %v3733, %v3752
      %3754 = vdwg.mxu0
      %3755 = vmatpush.msra.mxu0 %v2743
      %3756 = vmatpush.msra.mxu0 %v2711
      %3757 = vmatpush.msra.mxu0 %v2679
      %3758 = vmatpush.msra.mxu0 %v2647
      %3759 = vmatpush.msra.mxu0 %v2615
      %3760 = vmatpush.msra.mxu0 %v2583
      %3761 = vmatpush.msra.mxu0 %v2551
      %3762 = vmatpush.msra.mxu0 %v2519
      %3763 = vmatpush.msra.mxu0 %v2487
      %3764 = vmatpush.msra.mxu0 %v2455
      %3765 = vmatpush.msra.mxu0 %v2423
      %3766 = vmatpush.msra.mxu0 %v2391
      %3767 = vmatpush.msra.mxu0 %v2359
      %3768 = vmatpush.msra.mxu0 %v2327
      %3769 = vmatpush.msra.mxu0 %v2295
      %3770 = vmatpush.msra.mxu0 %v2263
      %3771 = vmatmul.f32.gmra.mxu0 %v2209
      %v3772 = vpop.f32.mrf.mxu0
      %v3773 = vadd.f32 0.0, %v3772
      %3774 = vdwg.mxu0
      %3775 = vmatpush.msra.mxu0 %v3255
      %3776 = vmatpush.msra.mxu0 %v3223
      %3777 = vmatpush.msra.mxu0 %v3191
      %3778 = vmatpush.msra.mxu0 %v3159
      %3779 = vmatpush.msra.mxu0 %v3127
      %3780 = vmatpush.msra.mxu0 %v3095
      %3781 = vmatpush.msra.mxu0 %v3063
      %3782 = vmatpush.msra.mxu0 %v3031
      %3783 = vmatpush.msra.mxu0 %v2999
      %3784 = vmatpush.msra.mxu0 %v2967
      %3785 = vmatpush.msra.mxu0 %v2935
      %3786 = vmatpush.msra.mxu0 %v2903
      %3787 = vmatpush.msra.mxu0 %v2871
      %3788 = vmatpush.msra.mxu0 %v2839
      %3789 = vmatpush.msra.mxu0 %v2807
      %3790 = vmatpush.msra.mxu0 %v2775
      %3791 = vmatmul.f32.gmra.mxu0 %v2249
      %v3792 = vpop.f32.mrf.mxu0
      %v3793 = vadd.f32 %v3773, %v3792
      %3794 = vdwg.mxu0
      %3795 = vmatpush.msra.mxu0 %v2744
      %3796 = vmatpush.msra.mxu0 %v2712
      %3797 = vmatpush.msra.mxu0 %v2680
      %3798 = vmatpush.msra.mxu0 %v2648
      %3799 = vmatpush.msra.mxu0 %v2616
      %3800 = vmatpush.msra.mxu0 %v2584
      %3801 = vmatpush.msra.mxu0 %v2552
      %3802 = vmatpush.msra.mxu0 %v2520
      %3803 = vmatpush.msra.mxu0 %v2488
      %3804 = vmatpush.msra.mxu0 %v2456
      %3805 = vmatpush.msra.mxu0 %v2424
      %3806 = vmatpush.msra.mxu0 %v2392
      %3807 = vmatpush.msra.mxu0 %v2360
      %3808 = vmatpush.msra.mxu0 %v2328
      %3809 = vmatpush.msra.mxu0 %v2296
      %3810 = vmatpush.msra.mxu0 %v2264
      %3811 = vmatmul.f32.gmra.mxu0 %v2209
      %v3812 = vpop.f32.mrf.mxu0
      %v3813 = vadd.f32 0.0, %v3812
      %3814 = vdwg.mxu0
      %3815 = vmatpush.msra.mxu0 %v3256
      %3816 = vmatpush.msra.mxu0 %v3224
      %3817 = vmatpush.msra.mxu0 %v3192
      %3818 = vmatpush.msra.mxu0 %v3160
      %3819 = vmatpush.msra.mxu0 %v3128
      %3820 = vmatpush.msra.mxu0 %v3096
      %3821 = vmatpush.msra.mxu0 %v3064
      %3822 = vmatpush.msra.mxu0 %v3032
      %3823 = vmatpush.msra.mxu0 %v3000
      %3824 = vmatpush.msra.mxu0 %v2968
      %3825 = vmatpush.msra.mxu0 %v2936
      %3826 = vmatpush.msra.mxu0 %v2904
      %3827 = vmatpush.msra.mxu0 %v2872
      %3828 = vmatpush.msra.mxu0 %v2840
      %3829 = vmatpush.msra.mxu0 %v2808
      %3830 = vmatpush.msra.mxu0 %v2776
      %3831 = vmatmul.f32.gmra.mxu0 %v2249
      %v3832 = vpop.f32.mrf.mxu0
      %v3833 = vadd.f32 %v3813, %v3832
      %3834 = vdwg.mxu0
      %3835 = vmatpush.msra.mxu0 %v2745
      %3836 = vmatpush.msra.mxu0 %v2713
      %3837 = vmatpush.msra.mxu0 %v2681
      %3838 = vmatpush.msra.mxu0 %v2649
      %3839 = vmatpush.msra.mxu0 %v2617
      %3840 = vmatpush.msra.mxu0 %v2585
      %3841 = vmatpush.msra.mxu0 %v2553
      %3842 = vmatpush.msra.mxu0 %v2521
      %3843 = vmatpush.msra.mxu0 %v2489
      %3844 = vmatpush.msra.mxu0 %v2457
      %3845 = vmatpush.msra.mxu0 %v2425
      %3846 = vmatpush.msra.mxu0 %v2393
      %3847 = vmatpush.msra.mxu0 %v2361
      %3848 = vmatpush.msra.mxu0 %v2329
      %3849 = vmatpush.msra.mxu0 %v2297
      %3850 = vmatpush.msra.mxu0 %v2265
      %3851 = vmatmul.f32.gmra.mxu0 %v2209
      %v3852 = vpop.f32.mrf.mxu0
      %v3853 = vadd.f32 0.0, %v3852
      %3854 = vdwg.mxu0
      %3855 = vmatpush.msra.mxu0 %v3257
      %3856 = vmatpush.msra.mxu0 %v3225
      %3857 = vmatpush.msra.mxu0 %v3193
      %3858 = vmatpush.msra.mxu0 %v3161
      %3859 = vmatpush.msra.mxu0 %v3129
      %3860 = vmatpush.msra.mxu0 %v3097
      %3861 = vmatpush.msra.mxu0 %v3065
      %3862 = vmatpush.msra.mxu0 %v3033
      %3863 = vmatpush.msra.mxu0 %v3001
      %3864 = vmatpush.msra.mxu0 %v2969
      %3865 = vmatpush.msra.mxu0 %v2937
      %3866 = vmatpush.msra.mxu0 %v2905
      %3867 = vmatpush.msra.mxu0 %v2873
      %3868 = vmatpush.msra.mxu0 %v2841
      %3869 = vmatpush.msra.mxu0 %v2809
      %3870 = vmatpush.msra.mxu0 %v2777
      %3871 = vmatmul.f32.gmra.mxu0 %v2249
      %v3872 = vpop.f32.mrf.mxu0
      %v3873 = vadd.f32 %v3853, %v3872
      %3874 = vdwg.mxu0
      %3875 = vmatpush.msra.mxu0 %v2746
      %3876 = vmatpush.msra.mxu0 %v2714
      %3877 = vmatpush.msra.mxu0 %v2682
      %3878 = vmatpush.msra.mxu0 %v2650
      %3879 = vmatpush.msra.mxu0 %v2618
      %3880 = vmatpush.msra.mxu0 %v2586
      %3881 = vmatpush.msra.mxu0 %v2554
      %3882 = vmatpush.msra.mxu0 %v2522
      %3883 = vmatpush.msra.mxu0 %v2490
      %3884 = vmatpush.msra.mxu0 %v2458
      %3885 = vmatpush.msra.mxu0 %v2426
      %3886 = vmatpush.msra.mxu0 %v2394
      %3887 = vmatpush.msra.mxu0 %v2362
      %3888 = vmatpush.msra.mxu0 %v2330
      %3889 = vmatpush.msra.mxu0 %v2298
      %3890 = vmatpush.msra.mxu0 %v2266
      %3891 = vmatmul.f32.gmra.mxu0 %v2209
      %v3892 = vpop.f32.mrf.mxu0
      %v3893 = vadd.f32 0.0, %v3892
      %3894 = vdwg.mxu0
      %3895 = vmatpush.msra.mxu0 %v3258
      %3896 = vmatpush.msra.mxu0 %v3226
      %3897 = vmatpush.msra.mxu0 %v3194
      %3898 = vmatpush.msra.mxu0 %v3162
      %3899 = vmatpush.msra.mxu0 %v3130
      %3900 = vmatpush.msra.mxu0 %v3098
      %3901 = vmatpush.msra.mxu0 %v3066
      %3902 = vmatpush.msra.mxu0 %v3034
      %3903 = vmatpush.msra.mxu0 %v3002
      %3904 = vmatpush.msra.mxu0 %v2970
      %3905 = vmatpush.msra.mxu0 %v2938
      %3906 = vmatpush.msra.mxu0 %v2906
      %3907 = vmatpush.msra.mxu0 %v2874
      %3908 = vmatpush.msra.mxu0 %v2842
      %3909 = vmatpush.msra.mxu0 %v2810
      %3910 = vmatpush.msra.mxu0 %v2778
      %3911 = vmatmul.f32.gmra.mxu0 %v2249
      %v3912 = vpop.f32.mrf.mxu0
      %v3913 = vadd.f32 %v3893, %v3912
      %3914 = vdwg.mxu0
      %3915 = vmatpush.msra.mxu0 %v2747
      %3916 = vmatpush.msra.mxu0 %v2715
      %3917 = vmatpush.msra.mxu0 %v2683
      %3918 = vmatpush.msra.mxu0 %v2651
      %3919 = vmatpush.msra.mxu0 %v2619
      %3920 = vmatpush.msra.mxu0 %v2587
      %3921 = vmatpush.msra.mxu0 %v2555
      %3922 = vmatpush.msra.mxu0 %v2523
      %3923 = vmatpush.msra.mxu0 %v2491
      %3924 = vmatpush.msra.mxu0 %v2459
      %3925 = vmatpush.msra.mxu0 %v2427
      %3926 = vmatpush.msra.mxu0 %v2395
      %3927 = vmatpush.msra.mxu0 %v2363
      %3928 = vmatpush.msra.mxu0 %v2331
      %3929 = vmatpush.msra.mxu0 %v2299
      %3930 = vmatpush.msra.mxu0 %v2267
      %3931 = vmatmul.f32.gmra.mxu0 %v2209
      %v3932 = vpop.f32.mrf.mxu0
      %v3933 = vadd.f32 0.0, %v3932
      %3934 = vdwg.mxu0
      %3935 = vmatpush.msra.mxu0 %v3259
      %3936 = vmatpush.msra.mxu0 %v3227
      %3937 = vmatpush.msra.mxu0 %v3195
      %3938 = vmatpush.msra.mxu0 %v3163
      %3939 = vmatpush.msra.mxu0 %v3131
      %3940 = vmatpush.msra.mxu0 %v3099
      %3941 = vmatpush.msra.mxu0 %v3067
      %3942 = vmatpush.msra.mxu0 %v3035
      %3943 = vmatpush.msra.mxu0 %v3003
      %3944 = vmatpush.msra.mxu0 %v2971
      %3945 = vmatpush.msra.mxu0 %v2939
      %3946 = vmatpush.msra.mxu0 %v2907
      %3947 = vmatpush.msra.mxu0 %v2875
      %3948 = vmatpush.msra.mxu0 %v2843
      %3949 = vmatpush.msra.mxu0 %v2811
      %3950 = vmatpush.msra.mxu0 %v2779
      %3951 = vmatmul.f32.gmra.mxu0 %v2249
      %v3952 = vpop.f32.mrf.mxu0
      %v3953 = vadd.f32 %v3933, %v3952
      %3954 = vdwg.mxu0
      %3955 = vmatpush.msra.mxu0 %v2748
      %3956 = vmatpush.msra.mxu0 %v2716
      %3957 = vmatpush.msra.mxu0 %v2684
      %3958 = vmatpush.msra.mxu0 %v2652
      %3959 = vmatpush.msra.mxu0 %v2620
      %3960 = vmatpush.msra.mxu0 %v2588
      %3961 = vmatpush.msra.mxu0 %v2556
      %3962 = vmatpush.msra.mxu0 %v2524
      %3963 = vmatpush.msra.mxu0 %v2492
      %3964 = vmatpush.msra.mxu0 %v2460
      %3965 = vmatpush.msra.mxu0 %v2428
      %3966 = vmatpush.msra.mxu0 %v2396
      %3967 = vmatpush.msra.mxu0 %v2364
      %3968 = vmatpush.msra.mxu0 %v2332
      %3969 = vmatpush.msra.mxu0 %v2300
      %3970 = vmatpush.msra.mxu0 %v2268
      %3971 = vmatmul.f32.gmra.mxu0 %v2209
      %v3972 = vpop.f32.mrf.mxu0
      %v3973 = vadd.f32 0.0, %v3972
      %3974 = vdwg.mxu0
      %3975 = vmatpush.msra.mxu0 %v3260
      %3976 = vmatpush.msra.mxu0 %v3228
      %3977 = vmatpush.msra.mxu0 %v3196
      %3978 = vmatpush.msra.mxu0 %v3164
      %3979 = vmatpush.msra.mxu0 %v3132
      %3980 = vmatpush.msra.mxu0 %v3100
      %3981 = vmatpush.msra.mxu0 %v3068
      %3982 = vmatpush.msra.mxu0 %v3036
      %3983 = vmatpush.msra.mxu0 %v3004
      %3984 = vmatpush.msra.mxu0 %v2972
      %3985 = vmatpush.msra.mxu0 %v2940
      %3986 = vmatpush.msra.mxu0 %v2908
      %3987 = vmatpush.msra.mxu0 %v2876
      %3988 = vmatpush.msra.mxu0 %v2844
      %3989 = vmatpush.msra.mxu0 %v2812
      %3990 = vmatpush.msra.mxu0 %v2780
      %3991 = vmatmul.f32.gmra.mxu0 %v2249
      %v3992 = vpop.f32.mrf.mxu0
      %v3993 = vadd.f32 %v3973, %v3992
      %3994 = vdwg.mxu0
      %3995 = vmatpush.msra.mxu0 %v2749
      %3996 = vmatpush.msra.mxu0 %v2717
      %3997 = vmatpush.msra.mxu0 %v2685
      %3998 = vmatpush.msra.mxu0 %v2653
      %3999 = vmatpush.msra.mxu0 %v2621
      %4000 = vmatpush.msra.mxu0 %v2589
      %4001 = vmatpush.msra.mxu0 %v2557
      %4002 = vmatpush.msra.mxu0 %v2525
      %4003 = vmatpush.msra.mxu0 %v2493
      %4004 = vmatpush.msra.mxu0 %v2461
      %4005 = vmatpush.msra.mxu0 %v2429
      %4006 = vmatpush.msra.mxu0 %v2397
      %4007 = vmatpush.msra.mxu0 %v2365
      %4008 = vmatpush.msra.mxu0 %v2333
      %4009 = vmatpush.msra.mxu0 %v2301
      %4010 = vmatpush.msra.mxu0 %v2269
      %4011 = vmatmul.f32.gmra.mxu0 %v2209
      %v4012 = vpop.f32.mrf.mxu0
      %v4013 = vadd.f32 0.0, %v4012
      %4014 = vdwg.mxu0
      %4015 = vmatpush.msra.mxu0 %v3261
      %4016 = vmatpush.msra.mxu0 %v3229
      %4017 = vmatpush.msra.mxu0 %v3197
      %4018 = vmatpush.msra.mxu0 %v3165
      %4019 = vmatpush.msra.mxu0 %v3133
      %4020 = vmatpush.msra.mxu0 %v3101
      %4021 = vmatpush.msra.mxu0 %v3069
      %4022 = vmatpush.msra.mxu0 %v3037
      %4023 = vmatpush.msra.mxu0 %v3005
      %4024 = vmatpush.msra.mxu0 %v2973
      %4025 = vmatpush.msra.mxu0 %v2941
      %4026 = vmatpush.msra.mxu0 %v2909
      %4027 = vmatpush.msra.mxu0 %v2877
      %4028 = vmatpush.msra.mxu0 %v2845
      %4029 = vmatpush.msra.mxu0 %v2813
      %4030 = vmatpush.msra.mxu0 %v2781
      %4031 = vmatmul.f32.gmra.mxu0 %v2249
      %v4032 = vpop.f32.mrf.mxu0
      %v4033 = vadd.f32 %v4013, %v4032
      %4034 = vdwg.mxu0
      %4035 = vmatpush.msra.mxu0 %v2750
      %4036 = vmatpush.msra.mxu0 %v2718
      %4037 = vmatpush.msra.mxu0 %v2686
      %4038 = vmatpush.msra.mxu0 %v2654
      %4039 = vmatpush.msra.mxu0 %v2622
      %4040 = vmatpush.msra.mxu0 %v2590
      %4041 = vmatpush.msra.mxu0 %v2558
      %4042 = vmatpush.msra.mxu0 %v2526
      %4043 = vmatpush.msra.mxu0 %v2494
      %4044 = vmatpush.msra.mxu0 %v2462
      %4045 = vmatpush.msra.mxu0 %v2430
      %4046 = vmatpush.msra.mxu0 %v2398
      %4047 = vmatpush.msra.mxu0 %v2366
      %4048 = vmatpush.msra.mxu0 %v2334
      %4049 = vmatpush.msra.mxu0 %v2302
      %4050 = vmatpush.msra.mxu0 %v2270
      %4051 = vmatmul.f32.gmra.mxu0 %v2209
      %v4052 = vpop.f32.mrf.mxu0
      %v4053 = vadd.f32 0.0, %v4052
      %4054 = vdwg.mxu0
      %4055 = vmatpush.msra.mxu0 %v3262
      %4056 = vmatpush.msra.mxu0 %v3230
      %4057 = vmatpush.msra.mxu0 %v3198
      %4058 = vmatpush.msra.mxu0 %v3166
      %4059 = vmatpush.msra.mxu0 %v3134
      %4060 = vmatpush.msra.mxu0 %v3102
      %4061 = vmatpush.msra.mxu0 %v3070
      %4062 = vmatpush.msra.mxu0 %v3038
      %4063 = vmatpush.msra.mxu0 %v3006
      %4064 = vmatpush.msra.mxu0 %v2974
      %4065 = vmatpush.msra.mxu0 %v2942
      %4066 = vmatpush.msra.mxu0 %v2910
      %4067 = vmatpush.msra.mxu0 %v2878
      %4068 = vmatpush.msra.mxu0 %v2846
      %4069 = vmatpush.msra.mxu0 %v2814
      %4070 = vmatpush.msra.mxu0 %v2782
      %4071 = vmatmul.f32.gmra.mxu0 %v2249
      %v4072 = vpop.f32.mrf.mxu0
      %v4073 = vadd.f32 %v4053, %v4072
      %4074 = vdwg.mxu0
      %4075 = vmatpush.msra.mxu0 %v2751
      %4076 = vmatpush.msra.mxu0 %v2719
      %4077 = vmatpush.msra.mxu0 %v2687
      %4078 = vmatpush.msra.mxu0 %v2655
      %4079 = vmatpush.msra.mxu0 %v2623
      %4080 = vmatpush.msra.mxu0 %v2591
      %4081 = vmatpush.msra.mxu0 %v2559
      %4082 = vmatpush.msra.mxu0 %v2527
      %4083 = vmatpush.msra.mxu0 %v2495
      %4084 = vmatpush.msra.mxu0 %v2463
      %4085 = vmatpush.msra.mxu0 %v2431
      %4086 = vmatpush.msra.mxu0 %v2399
      %4087 = vmatpush.msra.mxu0 %v2367
      %4088 = vmatpush.msra.mxu0 %v2335
      %4089 = vmatpush.msra.mxu0 %v2303
      %4090 = vmatpush.msra.mxu0 %v2271
      %4091 = vmatmul.f32.gmra.mxu0 %v2209
      %v4092 = vpop.f32.mrf.mxu0
      %v4093 = vadd.f32 0.0, %v4092
      %4094 = vdwg.mxu0
      %4095 = vmatpush.msra.mxu0 %v3263
      %4096 = vmatpush.msra.mxu0 %v3231
      %4097 = vmatpush.msra.mxu0 %v3199
      %4098 = vmatpush.msra.mxu0 %v3167
      %4099 = vmatpush.msra.mxu0 %v3135
      %4100 = vmatpush.msra.mxu0 %v3103
      %4101 = vmatpush.msra.mxu0 %v3071
      %4102 = vmatpush.msra.mxu0 %v3039
      %4103 = vmatpush.msra.mxu0 %v3007
      %4104 = vmatpush.msra.mxu0 %v2975
      %4105 = vmatpush.msra.mxu0 %v2943
      %4106 = vmatpush.msra.mxu0 %v2911
      %4107 = vmatpush.msra.mxu0 %v2879
      %4108 = vmatpush.msra.mxu0 %v2847
      %4109 = vmatpush.msra.mxu0 %v2815
      %4110 = vmatpush.msra.mxu0 %v2783
      %4111 = vmatmul.f32.gmra.mxu0 %v2249
      %v4112 = vpop.f32.mrf.mxu0
      %v4113 = vadd.f32 %v4093, %v4112
      %4114 = vdwg.mxu0
      %4115 = vmatpush.msra.mxu0 %v2752
      %4116 = vmatpush.msra.mxu0 %v2720
      %4117 = vmatpush.msra.mxu0 %v2688
      %4118 = vmatpush.msra.mxu0 %v2656
      %4119 = vmatpush.msra.mxu0 %v2624
      %4120 = vmatpush.msra.mxu0 %v2592
      %4121 = vmatpush.msra.mxu0 %v2560
      %4122 = vmatpush.msra.mxu0 %v2528
      %4123 = vmatpush.msra.mxu0 %v2496
      %4124 = vmatpush.msra.mxu0 %v2464
      %4125 = vmatpush.msra.mxu0 %v2432
      %4126 = vmatpush.msra.mxu0 %v2400
      %4127 = vmatpush.msra.mxu0 %v2368
      %4128 = vmatpush.msra.mxu0 %v2336
      %4129 = vmatpush.msra.mxu0 %v2304
      %4130 = vmatpush.msra.mxu0 %v2272
      %4131 = vmatmul.f32.gmra.mxu0 %v2209
      %v4132 = vpop.f32.mrf.mxu0
      %v4133 = vadd.f32 0.0, %v4132
      %4134 = vdwg.mxu0
      %4135 = vmatpush.msra.mxu0 %v3264
      %4136 = vmatpush.msra.mxu0 %v3232
      %4137 = vmatpush.msra.mxu0 %v3200
      %4138 = vmatpush.msra.mxu0 %v3168
      %4139 = vmatpush.msra.mxu0 %v3136
      %4140 = vmatpush.msra.mxu0 %v3104
      %4141 = vmatpush.msra.mxu0 %v3072
      %4142 = vmatpush.msra.mxu0 %v3040
      %4143 = vmatpush.msra.mxu0 %v3008
      %4144 = vmatpush.msra.mxu0 %v2976
      %4145 = vmatpush.msra.mxu0 %v2944
      %4146 = vmatpush.msra.mxu0 %v2912
      %4147 = vmatpush.msra.mxu0 %v2880
      %4148 = vmatpush.msra.mxu0 %v2848
      %4149 = vmatpush.msra.mxu0 %v2816
      %4150 = vmatpush.msra.mxu0 %v2784
      %4151 = vmatmul.f32.gmra.mxu0 %v2249
      %v4152 = vpop.f32.mrf.mxu0
      %v4153 = vadd.f32 %v4133, %v4152
      %4154 = vdwg.mxu0
      %4155 = vmatpush.msra.mxu0 %v2753
      %4156 = vmatpush.msra.mxu0 %v2721
      %4157 = vmatpush.msra.mxu0 %v2689
      %4158 = vmatpush.msra.mxu0 %v2657
      %4159 = vmatpush.msra.mxu0 %v2625
      %4160 = vmatpush.msra.mxu0 %v2593
      %4161 = vmatpush.msra.mxu0 %v2561
      %4162 = vmatpush.msra.mxu0 %v2529
      %4163 = vmatpush.msra.mxu0 %v2497
      %4164 = vmatpush.msra.mxu0 %v2465
      %4165 = vmatpush.msra.mxu0 %v2433
      %4166 = vmatpush.msra.mxu0 %v2401
      %4167 = vmatpush.msra.mxu0 %v2369
      %4168 = vmatpush.msra.mxu0 %v2337
      %4169 = vmatpush.msra.mxu0 %v2305
      %4170 = vmatpush.msra.mxu0 %v2273
      %4171 = vmatmul.f32.gmra.mxu0 %v2209
      %v4172 = vpop.f32.mrf.mxu0
      %v4173 = vadd.f32 0.0, %v4172
      %4174 = vdwg.mxu0
      %4175 = vmatpush.msra.mxu0 %v3265
      %4176 = vmatpush.msra.mxu0 %v3233
      %4177 = vmatpush.msra.mxu0 %v3201
      %4178 = vmatpush.msra.mxu0 %v3169
      %4179 = vmatpush.msra.mxu0 %v3137
      %4180 = vmatpush.msra.mxu0 %v3105
      %4181 = vmatpush.msra.mxu0 %v3073
      %4182 = vmatpush.msra.mxu0 %v3041
      %4183 = vmatpush.msra.mxu0 %v3009
      %4184 = vmatpush.msra.mxu0 %v2977
      %4185 = vmatpush.msra.mxu0 %v2945
      %4186 = vmatpush.msra.mxu0 %v2913
      %4187 = vmatpush.msra.mxu0 %v2881
      %4188 = vmatpush.msra.mxu0 %v2849
      %4189 = vmatpush.msra.mxu0 %v2817
      %4190 = vmatpush.msra.mxu0 %v2785
      %4191 = vmatmul.f32.gmra.mxu0 %v2249
      %v4192 = vpop.f32.mrf.mxu0
      %v4193 = vadd.f32 %v4173, %v4192
      %4194 = vdwg.mxu0
      %4195 = vmatpush.msra.mxu0 %v2754
      %4196 = vmatpush.msra.mxu0 %v2722
      %4197 = vmatpush.msra.mxu0 %v2690
      %4198 = vmatpush.msra.mxu0 %v2658
      %4199 = vmatpush.msra.mxu0 %v2626
      %4200 = vmatpush.msra.mxu0 %v2594
      %4201 = vmatpush.msra.mxu0 %v2562
      %4202 = vmatpush.msra.mxu0 %v2530
      %4203 = vmatpush.msra.mxu0 %v2498
      %4204 = vmatpush.msra.mxu0 %v2466
      %4205 = vmatpush.msra.mxu0 %v2434
      %4206 = vmatpush.msra.mxu0 %v2402
      %4207 = vmatpush.msra.mxu0 %v2370
      %4208 = vmatpush.msra.mxu0 %v2338
      %4209 = vmatpush.msra.mxu0 %v2306
      %4210 = vmatpush.msra.mxu0 %v2274
      %4211 = vmatmul.f32.gmra.mxu0 %v2209
      %v4212 = vpop.f32.mrf.mxu0
      %v4213 = vadd.f32 0.0, %v4212
      %4214 = vdwg.mxu0
      %4215 = vmatpush.msra.mxu0 %v3266
      %4216 = vmatpush.msra.mxu0 %v3234
      %4217 = vmatpush.msra.mxu0 %v3202
      %4218 = vmatpush.msra.mxu0 %v3170
      %4219 = vmatpush.msra.mxu0 %v3138
      %4220 = vmatpush.msra.mxu0 %v3106
      %4221 = vmatpush.msra.mxu0 %v3074
      %4222 = vmatpush.msra.mxu0 %v3042
      %4223 = vmatpush.msra.mxu0 %v3010
      %4224 = vmatpush.msra.mxu0 %v2978
      %4225 = vmatpush.msra.mxu0 %v2946
      %4226 = vmatpush.msra.mxu0 %v2914
      %4227 = vmatpush.msra.mxu0 %v2882
      %4228 = vmatpush.msra.mxu0 %v2850
      %4229 = vmatpush.msra.mxu0 %v2818
      %4230 = vmatpush.msra.mxu0 %v2786
      %4231 = vmatmul.f32.gmra.mxu0 %v2249
      %v4232 = vpop.f32.mrf.mxu0
      %v4233 = vadd.f32 %v4213, %v4232
      %4234 = vdwg.mxu0
      %4235 = vmatpush.msra.mxu0 %v2755
      %4236 = vmatpush.msra.mxu0 %v2723
      %4237 = vmatpush.msra.mxu0 %v2691
      %4238 = vmatpush.msra.mxu0 %v2659
      %4239 = vmatpush.msra.mxu0 %v2627
      %4240 = vmatpush.msra.mxu0 %v2595
      %4241 = vmatpush.msra.mxu0 %v2563
      %4242 = vmatpush.msra.mxu0 %v2531
      %4243 = vmatpush.msra.mxu0 %v2499
      %4244 = vmatpush.msra.mxu0 %v2467
      %4245 = vmatpush.msra.mxu0 %v2435
      %4246 = vmatpush.msra.mxu0 %v2403
      %4247 = vmatpush.msra.mxu0 %v2371
      %4248 = vmatpush.msra.mxu0 %v2339
      %4249 = vmatpush.msra.mxu0 %v2307
      %4250 = vmatpush.msra.mxu0 %v2275
      %4251 = vmatmul.f32.gmra.mxu0 %v2209
      %v4252 = vpop.f32.mrf.mxu0
      %v4253 = vadd.f32 0.0, %v4252
      %4254 = vdwg.mxu0
      %4255 = vmatpush.msra.mxu0 %v3267
      %4256 = vmatpush.msra.mxu0 %v3235
      %4257 = vmatpush.msra.mxu0 %v3203
      %4258 = vmatpush.msra.mxu0 %v3171
      %4259 = vmatpush.msra.mxu0 %v3139
      %4260 = vmatpush.msra.mxu0 %v3107
      %4261 = vmatpush.msra.mxu0 %v3075
      %4262 = vmatpush.msra.mxu0 %v3043
      %4263 = vmatpush.msra.mxu0 %v3011
      %4264 = vmatpush.msra.mxu0 %v2979
      %4265 = vmatpush.msra.mxu0 %v2947
      %4266 = vmatpush.msra.mxu0 %v2915
      %4267 = vmatpush.msra.mxu0 %v2883
      %4268 = vmatpush.msra.mxu0 %v2851
      %4269 = vmatpush.msra.mxu0 %v2819
      %4270 = vmatpush.msra.mxu0 %v2787
      %4271 = vmatmul.f32.gmra.mxu0 %v2249
      %v4272 = vpop.f32.mrf.mxu0
      %v4273 = vadd.f32 %v4253, %v4272
      %4274 = vdwg.mxu0
      %4275 = vmatpush.msra.mxu0 %v2756
      %4276 = vmatpush.msra.mxu0 %v2724
      %4277 = vmatpush.msra.mxu0 %v2692
      %4278 = vmatpush.msra.mxu0 %v2660
      %4279 = vmatpush.msra.mxu0 %v2628
      %4280 = vmatpush.msra.mxu0 %v2596
      %4281 = vmatpush.msra.mxu0 %v2564
      %4282 = vmatpush.msra.mxu0 %v2532
      %4283 = vmatpush.msra.mxu0 %v2500
      %4284 = vmatpush.msra.mxu0 %v2468
      %4285 = vmatpush.msra.mxu0 %v2436
      %4286 = vmatpush.msra.mxu0 %v2404
      %4287 = vmatpush.msra.mxu0 %v2372
      %4288 = vmatpush.msra.mxu0 %v2340
      %4289 = vmatpush.msra.mxu0 %v2308
      %4290 = vmatpush.msra.mxu0 %v2276
      %4291 = vmatmul.f32.gmra.mxu0 %v2209
      %v4292 = vpop.f32.mrf.mxu0
      %v4293 = vadd.f32 0.0, %v4292
      %4294 = vdwg.mxu0
      %4295 = vmatpush.msra.mxu0 %v3268
      %4296 = vmatpush.msra.mxu0 %v3236
      %4297 = vmatpush.msra.mxu0 %v3204
      %4298 = vmatpush.msra.mxu0 %v3172
      %4299 = vmatpush.msra.mxu0 %v3140
      %4300 = vmatpush.msra.mxu0 %v3108
      %4301 = vmatpush.msra.mxu0 %v3076
      %4302 = vmatpush.msra.mxu0 %v3044
      %4303 = vmatpush.msra.mxu0 %v3012
      %4304 = vmatpush.msra.mxu0 %v2980
      %4305 = vmatpush.msra.mxu0 %v2948
      %4306 = vmatpush.msra.mxu0 %v2916
      %4307 = vmatpush.msra.mxu0 %v2884
      %4308 = vmatpush.msra.mxu0 %v2852
      %4309 = vmatpush.msra.mxu0 %v2820
      %4310 = vmatpush.msra.mxu0 %v2788
      %4311 = vmatmul.f32.gmra.mxu0 %v2249
      %v4312 = vpop.f32.mrf.mxu0
      %v4313 = vadd.f32 %v4293, %v4312
      %4314 = vdwg.mxu0
      %4315 = vmatpush.msra.mxu0 %v2757
      %4316 = vmatpush.msra.mxu0 %v2725
      %4317 = vmatpush.msra.mxu0 %v2693
      %4318 = vmatpush.msra.mxu0 %v2661
      %4319 = vmatpush.msra.mxu0 %v2629
      %4320 = vmatpush.msra.mxu0 %v2597
      %4321 = vmatpush.msra.mxu0 %v2565
      %4322 = vmatpush.msra.mxu0 %v2533
      %4323 = vmatpush.msra.mxu0 %v2501
      %4324 = vmatpush.msra.mxu0 %v2469
      %4325 = vmatpush.msra.mxu0 %v2437
      %4326 = vmatpush.msra.mxu0 %v2405
      %4327 = vmatpush.msra.mxu0 %v2373
      %4328 = vmatpush.msra.mxu0 %v2341
      %4329 = vmatpush.msra.mxu0 %v2309
      %4330 = vmatpush.msra.mxu0 %v2277
      %4331 = vmatmul.f32.gmra.mxu0 %v2209
      %v4332 = vpop.f32.mrf.mxu0
      %v4333 = vadd.f32 0.0, %v4332
      %4334 = vdwg.mxu0
      %4335 = vmatpush.msra.mxu0 %v3269
      %4336 = vmatpush.msra.mxu0 %v3237
      %4337 = vmatpush.msra.mxu0 %v3205
      %4338 = vmatpush.msra.mxu0 %v3173
      %4339 = vmatpush.msra.mxu0 %v3141
      %4340 = vmatpush.msra.mxu0 %v3109
      %4341 = vmatpush.msra.mxu0 %v3077
      %4342 = vmatpush.msra.mxu0 %v3045
      %4343 = vmatpush.msra.mxu0 %v3013
      %4344 = vmatpush.msra.mxu0 %v2981
      %4345 = vmatpush.msra.mxu0 %v2949
      %4346 = vmatpush.msra.mxu0 %v2917
      %4347 = vmatpush.msra.mxu0 %v2885
      %4348 = vmatpush.msra.mxu0 %v2853
      %4349 = vmatpush.msra.mxu0 %v2821
      %4350 = vmatpush.msra.mxu0 %v2789
      %4351 = vmatmul.f32.gmra.mxu0 %v2249
      %v4352 = vpop.f32.mrf.mxu0
      %v4353 = vadd.f32 %v4333, %v4352
      %4354 = vdwg.mxu0
      %4355 = vmatpush.msra.mxu0 %v2758
      %4356 = vmatpush.msra.mxu0 %v2726
      %4357 = vmatpush.msra.mxu0 %v2694
      %4358 = vmatpush.msra.mxu0 %v2662
      %4359 = vmatpush.msra.mxu0 %v2630
      %4360 = vmatpush.msra.mxu0 %v2598
      %4361 = vmatpush.msra.mxu0 %v2566
      %4362 = vmatpush.msra.mxu0 %v2534
      %4363 = vmatpush.msra.mxu0 %v2502
      %4364 = vmatpush.msra.mxu0 %v2470
      %4365 = vmatpush.msra.mxu0 %v2438
      %4366 = vmatpush.msra.mxu0 %v2406
      %4367 = vmatpush.msra.mxu0 %v2374
      %4368 = vmatpush.msra.mxu0 %v2342
      %4369 = vmatpush.msra.mxu0 %v2310
      %4370 = vmatpush.msra.mxu0 %v2278
      %4371 = vmatmul.f32.gmra.mxu0 %v2209
      %v4372 = vpop.f32.mrf.mxu0
      %v4373 = vadd.f32 0.0, %v4372
      %4374 = vdwg.mxu0
      %4375 = vmatpush.msra.mxu0 %v3270
      %4376 = vmatpush.msra.mxu0 %v3238
      %4377 = vmatpush.msra.mxu0 %v3206
      %4378 = vmatpush.msra.mxu0 %v3174
      %4379 = vmatpush.msra.mxu0 %v3142
      %4380 = vmatpush.msra.mxu0 %v3110
      %4381 = vmatpush.msra.mxu0 %v3078
      %4382 = vmatpush.msra.mxu0 %v3046
      %4383 = vmatpush.msra.mxu0 %v3014
      %4384 = vmatpush.msra.mxu0 %v2982
      %4385 = vmatpush.msra.mxu0 %v2950
      %4386 = vmatpush.msra.mxu0 %v2918
      %4387 = vmatpush.msra.mxu0 %v2886
      %4388 = vmatpush.msra.mxu0 %v2854
      %4389 = vmatpush.msra.mxu0 %v2822
      %4390 = vmatpush.msra.mxu0 %v2790
      %4391 = vmatmul.f32.gmra.mxu0 %v2249
      %v4392 = vpop.f32.mrf.mxu0
      %v4393 = vadd.f32 %v4373, %v4392
      %4394 = vdwg.mxu0
      %4395 = vmatpush.msra.mxu0 %v2759
      %4396 = vmatpush.msra.mxu0 %v2727
      %4397 = vmatpush.msra.mxu0 %v2695
      %4398 = vmatpush.msra.mxu0 %v2663
      %4399 = vmatpush.msra.mxu0 %v2631
      %4400 = vmatpush.msra.mxu0 %v2599
      %4401 = vmatpush.msra.mxu0 %v2567
      %4402 = vmatpush.msra.mxu0 %v2535
      %4403 = vmatpush.msra.mxu0 %v2503
      %4404 = vmatpush.msra.mxu0 %v2471
      %4405 = vmatpush.msra.mxu0 %v2439
      %4406 = vmatpush.msra.mxu0 %v2407
      %4407 = vmatpush.msra.mxu0 %v2375
      %4408 = vmatpush.msra.mxu0 %v2343
      %4409 = vmatpush.msra.mxu0 %v2311
      %4410 = vmatpush.msra.mxu0 %v2279
      %4411 = vmatmul.f32.gmra.mxu0 %v2209
      %v4412 = vpop.f32.mrf.mxu0
      %v4413 = vadd.f32 0.0, %v4412
      %4414 = vdwg.mxu0
      %4415 = vmatpush.msra.mxu0 %v3271
      %4416 = vmatpush.msra.mxu0 %v3239
      %4417 = vmatpush.msra.mxu0 %v3207
      %4418 = vmatpush.msra.mxu0 %v3175
      %4419 = vmatpush.msra.mxu0 %v3143
      %4420 = vmatpush.msra.mxu0 %v3111
      %4421 = vmatpush.msra.mxu0 %v3079
      %4422 = vmatpush.msra.mxu0 %v3047
      %4423 = vmatpush.msra.mxu0 %v3015
      %4424 = vmatpush.msra.mxu0 %v2983
      %4425 = vmatpush.msra.mxu0 %v2951
      %4426 = vmatpush.msra.mxu0 %v2919
      %4427 = vmatpush.msra.mxu0 %v2887
      %4428 = vmatpush.msra.mxu0 %v2855
      %4429 = vmatpush.msra.mxu0 %v2823
      %4430 = vmatpush.msra.mxu0 %v2791
      %4431 = vmatmul.f32.gmra.mxu0 %v2249
      %v4432 = vpop.f32.mrf.mxu0
      %v4433 = vadd.f32 %v4413, %v4432
      %4434 = vdwg.mxu0
      %4435 = vmatpush.msra.mxu0 %v2760
      %4436 = vmatpush.msra.mxu0 %v2728
      %4437 = vmatpush.msra.mxu0 %v2696
      %4438 = vmatpush.msra.mxu0 %v2664
      %4439 = vmatpush.msra.mxu0 %v2632
      %4440 = vmatpush.msra.mxu0 %v2600
      %4441 = vmatpush.msra.mxu0 %v2568
      %4442 = vmatpush.msra.mxu0 %v2536
      %4443 = vmatpush.msra.mxu0 %v2504
      %4444 = vmatpush.msra.mxu0 %v2472
      %4445 = vmatpush.msra.mxu0 %v2440
      %4446 = vmatpush.msra.mxu0 %v2408
      %4447 = vmatpush.msra.mxu0 %v2376
      %4448 = vmatpush.msra.mxu0 %v2344
      %4449 = vmatpush.msra.mxu0 %v2312
      %4450 = vmatpush.msra.mxu0 %v2280
      %4451 = vmatmul.f32.gmra.mxu0 %v2209
      %v4452 = vpop.f32.mrf.mxu0
      %v4453 = vadd.f32 0.0, %v4452
      %4454 = vdwg.mxu0
      %4455 = vmatpush.msra.mxu0 %v3272
      %4456 = vmatpush.msra.mxu0 %v3240
      %4457 = vmatpush.msra.mxu0 %v3208
      %4458 = vmatpush.msra.mxu0 %v3176
      %4459 = vmatpush.msra.mxu0 %v3144
      %4460 = vmatpush.msra.mxu0 %v3112
      %4461 = vmatpush.msra.mxu0 %v3080
      %4462 = vmatpush.msra.mxu0 %v3048
      %4463 = vmatpush.msra.mxu0 %v3016
      %4464 = vmatpush.msra.mxu0 %v2984
      %4465 = vmatpush.msra.mxu0 %v2952
      %4466 = vmatpush.msra.mxu0 %v2920
      %4467 = vmatpush.msra.mxu0 %v2888
      %4468 = vmatpush.msra.mxu0 %v2856
      %4469 = vmatpush.msra.mxu0 %v2824
      %4470 = vmatpush.msra.mxu0 %v2792
      %4471 = vmatmul.f32.gmra.mxu0 %v2249
      %v4472 = vpop.f32.mrf.mxu0
      %v4473 = vadd.f32 %v4453, %v4472
      %4474 = vdwg.mxu0
      %4475 = vmatpush.msra.mxu0 %v2761
      %4476 = vmatpush.msra.mxu0 %v2729
      %4477 = vmatpush.msra.mxu0 %v2697
      %4478 = vmatpush.msra.mxu0 %v2665
      %4479 = vmatpush.msra.mxu0 %v2633
      %4480 = vmatpush.msra.mxu0 %v2601
      %4481 = vmatpush.msra.mxu0 %v2569
      %4482 = vmatpush.msra.mxu0 %v2537
      %4483 = vmatpush.msra.mxu0 %v2505
      %4484 = vmatpush.msra.mxu0 %v2473
      %4485 = vmatpush.msra.mxu0 %v2441
      %4486 = vmatpush.msra.mxu0 %v2409
      %4487 = vmatpush.msra.mxu0 %v2377
      %4488 = vmatpush.msra.mxu0 %v2345
      %4489 = vmatpush.msra.mxu0 %v2313
      %4490 = vmatpush.msra.mxu0 %v2281
      %4491 = vmatmul.f32.gmra.mxu0 %v2209
      %v4492 = vpop.f32.mrf.mxu0
      %v4493 = vadd.f32 0.0, %v4492
      %4494 = vdwg.mxu0
      %4495 = vmatpush.msra.mxu0 %v3273
      %4496 = vmatpush.msra.mxu0 %v3241
      %4497 = vmatpush.msra.mxu0 %v3209
      %4498 = vmatpush.msra.mxu0 %v3177
      %4499 = vmatpush.msra.mxu0 %v3145
      %4500 = vmatpush.msra.mxu0 %v3113
      %4501 = vmatpush.msra.mxu0 %v3081
      %4502 = vmatpush.msra.mxu0 %v3049
      %4503 = vmatpush.msra.mxu0 %v3017
      %4504 = vmatpush.msra.mxu0 %v2985
      %4505 = vmatpush.msra.mxu0 %v2953
      %4506 = vmatpush.msra.mxu0 %v2921
      %4507 = vmatpush.msra.mxu0 %v2889
      %4508 = vmatpush.msra.mxu0 %v2857
      %4509 = vmatpush.msra.mxu0 %v2825
      %4510 = vmatpush.msra.mxu0 %v2793
      %4511 = vmatmul.f32.gmra.mxu0 %v2249
      %v4512 = vpop.f32.mrf.mxu0
      %v4513 = vadd.f32 %v4493, %v4512
      %4514 = vdwg.mxu0
      %4515 = vmatpush.msra.mxu0 %v2762
      %4516 = vmatpush.msra.mxu0 %v2730
      %4517 = vmatpush.msra.mxu0 %v2698
      %4518 = vmatpush.msra.mxu0 %v2666
      %4519 = vmatpush.msra.mxu0 %v2634
      %4520 = vmatpush.msra.mxu0 %v2602
      %4521 = vmatpush.msra.mxu0 %v2570
      %4522 = vmatpush.msra.mxu0 %v2538
      %4523 = vmatpush.msra.mxu0 %v2506
      %4524 = vmatpush.msra.mxu0 %v2474
      %4525 = vmatpush.msra.mxu0 %v2442
      %4526 = vmatpush.msra.mxu0 %v2410
      %4527 = vmatpush.msra.mxu0 %v2378
      %4528 = vmatpush.msra.mxu0 %v2346
      %4529 = vmatpush.msra.mxu0 %v2314
      %4530 = vmatpush.msra.mxu0 %v2282
      %4531 = vmatmul.f32.gmra.mxu0 %v2209
      %v4532 = vpop.f32.mrf.mxu0
      %v4533 = vadd.f32 0.0, %v4532
      %4534 = vdwg.mxu0
      %4535 = vmatpush.msra.mxu0 %v3274
      %4536 = vmatpush.msra.mxu0 %v3242
      %4537 = vmatpush.msra.mxu0 %v3210
      %4538 = vmatpush.msra.mxu0 %v3178
      %4539 = vmatpush.msra.mxu0 %v3146
      %4540 = vmatpush.msra.mxu0 %v3114
      %4541 = vmatpush.msra.mxu0 %v3082
      %4542 = vmatpush.msra.mxu0 %v3050
      %4543 = vmatpush.msra.mxu0 %v3018
      %4544 = vmatpush.msra.mxu0 %v2986
      %4545 = vmatpush.msra.mxu0 %v2954
      %4546 = vmatpush.msra.mxu0 %v2922
      %4547 = vmatpush.msra.mxu0 %v2890
      %4548 = vmatpush.msra.mxu0 %v2858
      %4549 = vmatpush.msra.mxu0 %v2826
      %4550 = vmatpush.msra.mxu0 %v2794
      %4551 = vmatmul.f32.gmra.mxu0 %v2249
      %v4552 = vpop.f32.mrf.mxu0
      %v4553 = vadd.f32 %v4533, %v4552
      %4554 = vdwg.mxu0
      %v4587 = vrot.slane %v3353, 6
      %v4588 = vrot.slane %v3393, 4
      %v4589 = vrot.slane %v3433, 2
      %v4590 = vrot.slane %v3513, 6
      %v4591 = vrot.slane %v3553, 4
      %v4592 = vrot.slane %v3593, 2
      %v4593 = vrot.slane %v3673, 6
      %v4594 = vrot.slane %v3713, 4
      %v4595 = vrot.slane %v3753, 2
      %v4596 = vrot.slane %v3833, 6
      %v4597 = vrot.slane %v3873, 4
      %v4598 = vrot.slane %v3913, 2
      %v4599 = vrot.slane %v3993, 6
      %v4600 = vrot.slane %v4033, 4
      %v4601 = vrot.slane %v4073, 2
      %v4602 = vrot.slane %v4153, 6
      %v4603 = vrot.slane %v4193, 4
      %v4604 = vrot.slane %v4233, 2
      %v4605 = vrot.slane %v4313, 6
      %v4606 = vrot.slane %v4353, 4
      %v4607 = vrot.slane %v4393, 2
      %v4608 = vrot.slane %v4473, 6
      %v4609 = vrot.slane %v4513, 4
      %v4610 = vrot.slane %v4553, 2
      %vm4611 = vcmask 1041408
      %v4612 = vsel %vm4611, %v3313, %v4587
      %vm4613 = vcmask 1045508
      %v4614 = vsel %vm4613, %v4588, %v4589
      %vm4615 = vcmask 1043456
      %v4616 = vsel %vm4615, %v4612, %v4614
      %v4617 = vsel %vm4611, %v3473, %v4590
      %v4618 = vsel %vm4613, %v4591, %v4592
      %v4619 = vsel %vm4615, %v4617, %v4618
      %v4620 = vsel %vm4611, %v3633, %v4593
      %v4621 = vsel %vm4613, %v4594, %v4595
      %v4622 = vsel %vm4615, %v4620, %v4621
      %v4623 = vsel %vm4611, %v3793, %v4596
      %v4624 = vsel %vm4613, %v4597, %v4598
      %v4625 = vsel %vm4615, %v4623, %v4624
      %v4626 = vsel %vm4611, %v3953, %v4599
      %v4627 = vsel %vm4613, %v4600, %v4601
      %v4628 = vsel %vm4615, %v4626, %v4627
      %v4629 = vsel %vm4611, %v4113, %v4602
      %v4630 = vsel %vm4613, %v4603, %v4604
      %v4631 = vsel %vm4615, %v4629, %v4630
      %v4632 = vsel %vm4611, %v4273, %v4605
      %v4633 = vsel %vm4613, %v4606, %v4607
      %v4634 = vsel %vm4615, %v4632, %v4633
      %v4635 = vsel %vm4611, %v4433, %v4608
      %v4636 = vsel %vm4613, %v4609, %v4610
      %v4637 = vsel %vm4615, %v4635, %v4636
      %4646 = vst [vmem:[%s399] sm:$0xff] %v4616
      %4647 = vst [vmem:[%s399 + $0x8] sm:$0xff] %v4619
      %4648 = vst [vmem:[%s399 + $0x10] sm:$0xff] %v4622
      %4649 = vst [vmem:[%s399 + $0x18] sm:$0xff] %v4625
      %4650 = vst [vmem:[%s399 + $0x20] sm:$0xff] %v4628
      %4651 = vst [vmem:[%s399 + $0x28] sm:$0xff] %v4631
      %4652 = vst [vmem:[%s399 + $0x30] sm:$0xff] %v4634
      %4653 = vst [vmem:[%s399 + $0x38] sm:$0xff] %v4637
      %p4654 = scmp.lt.s32.totalorder %s21, 1
      %s4655 = scalar_select %p4654, %s21, 1
      %s4656 = smul.addr %s4655, 32
      %s4657 = smul.addr %s4656, 2
      %s4658 = scalar_lea.vmem %s10, %s4657
      // Predicated region
      $region61: #{topformer_forward.1} parent=59 // pred_check
        %p4659 = pneg %p264
      $region62: #{topformer_forward.1} parent=59 // pred_check_branch
        %4661 = sbr.rel (%p4659) target = $region64
      $region63: #{topformer_forward.1} parent=59 // pred_region
        _
      $region64: #{topformer_forward.1} parent=59 // pred_fallthru
        _
    $region60: #{topformer_forward.1} parent=5 // pred_fallthru
      _
    %p4662 = scmp.le.s32.totalorder 2, %s16
    // Predicated region
    $region65: #{topformer_forward.1} parent=5 // pred_check
      %p4663 = pneg %p4662
    $region66: #{topformer_forward.1} parent=5 // pred_check_branch
      %4665 = sbr.rel (%p4663) target = $region68
    $region67: #{topformer_forward.1} parent=5 // pred_region
      %s4666 = ssub.s32 %s16, 2
      // Predicated region
      $region69: #{topformer_forward.1} parent=67 // pred_check
        %p4667 = pneg %p270
      $region70: #{topformer_forward.1} parent=67 // pred_check_branch
        %4669 = sbr.rel (%p4667) target = $region72
      $region71: #{topformer_forward.1} parent=67 // pred_region
        %p4670 = scmp.lt.s32.totalorder %s22, 1
        %s4671 = scalar_select %p4670, %s22, 1
        %s4672 = smul.addr %s4671, 32
        %s4673 = smul.addr %s4672, 2
        %s4674 = scalar_lea.vmem %s10, %s4673
      $region72: #{topformer_forward.1} parent=67 // pred_fallthru
        _
    $region68: #{topformer_forward.1} parent=5 // pred_fallthru
      _
  $region6: #{topformer_forward.1} parent=0 // loop_footer
    %s20 = sadd.s32 1, %s16
  $region7: #{topformer_forward.1} parent=0 // loop_footer_branch
    %15 = sbr.rel target = $region3
  $region8: #{topformer_forward.1} parent=0 // loop_exit
    _

</llo_original>
